<compile_context>
chip_gen: v7x
topology: tpu7x:2x2x1
jax: 0.10.0
libtpu: 0.0.40
codegen_flags: <defaults>
</compile_context>

<pallas_src>
import math

import jax
import jax.numpy as jnp
from jax.experimental import pallas as pl
from jax.experimental.pallas import tpu as pltpu

# ----------------------------- configuration ------------------------------
SEQ_LEN = 16
PATCH = 4
STRIDE = 4
D_MODEL = 32
N_HEAD = 4
HEAD_DIM = D_MODEL // N_HEAD                   # 8
GPT_LAYERS = 2
PRED_LEN = 8
B = 2
M = 1                                          # n_vars (must be 1, see layout note)
D_FF = 4 * D_MODEL                             # 128
assert PATCH == STRIDE and SEQ_LEN % STRIDE == 0           # unfold == static reshape
PATCH_NUM = (SEQ_LEN - PATCH) // STRIDE + 1 + 1            # 5 (+1 after ReplicationPad1d)
MAX_POS = 64
LN_EPS = 1e-5
NEG_INF = -1e30

# per-batch token-matrix layout: 16 rows, prompt segment rows [0,8), series rows [8,16)
SERIES_ROW0 = 8
N_ROWS = 16
TOKW = 40            # lanes [0:4]=patch values, [4:36]=prompt d_model, [36:40]=zero pad

# ---- packed width-32 weight buffer ("wd") row offsets (all section starts % 8 == 0) --
R_WIN = 0                              # (TOKW, D)  in_layer weight (zero-padded rows)
R_WPROMPT = R_WIN + TOKW               # 40: (TOKW, D) prompt_layer weight (zero-padded)
R_WPE = R_WPROMPT + TOKW               # 80: (N_ROWS, D) positional rows, token layout
R_VEC = R_WPE + N_ROWS                 # 96: (1, D) parameter rows
V_IN_B = R_VEC + 0
V_PROMPT_B = R_VEC + 1
V_LNF_G = R_VEC + 2
V_LNF_B = R_VEC + 3
V_LAYER0 = R_VEC + 4
V_PER_LAYER = 9                        # ln1_g ln1_b b_q b_k b_v b_ao ln2_g ln2_b b_po
N_VEC_ROWS = 24                        # 4 + 2*9 = 22, padded to 24
R_MAT0 = R_VEC + N_VEC_ROWS            # 120
MAT_PER_LAYER = 4 * D_MODEL + D_FF     # w_q w_k w_v w_ao (32 rows each) + w_po (128)
WD_ROWS = R_MAT0 + GPT_LAYERS * MAT_PER_LAYER   # 632

# ---- packed width-128 buffer ("wwide") ----
WWIDE_PER_LAYER = D_MODEL + 8          # w_fc (32 rows) + b_fc row (padded to 8 rows)
WWIDE_ROWS = GPT_LAYERS * WWIDE_PER_LAYER        # 80

# ---- packed out-layer buffer ("wout") ----
R_OUT_B = PATCH_NUM * D_MODEL          # 160
WOUT_ROWS = 168


# ------------------------------ fused Pallas kernel ------------------------
def _gpt4mts_kernel(tok_ref, stats_ref, wd_ref, wwide_ref, wout_ref, out_ref):
    f32 = jnp.float32

    def vrow(r):                           # (1, D_MODEL) parameter row
        return wd_ref[r:r + 1, :]

    def layer_norm(v, g, b):
        mu = jnp.mean(v, axis=-1, keepdims=True)
        var = jnp.mean((v - mu) ** 2, axis=-1, keepdims=True)
        return (v - mu) * jax.lax.rsqrt(var + LN_EPS) * g + b

    tok = tok_ref[...]                                           # (N_ROWS, TOKW)

    # ---- in_layer (series patches) and prompt_layer + ReLU (prompt tokens) ----
    # The two weight blocks are zero-padded row-wise, so the shared 40-lane token slab
    # feeds both matmuls with no lane slicing; a row-mask select merges the results.
    e_in = jnp.dot(tok, wd_ref[R_WIN:R_WIN + TOKW, :],
                   preferred_element_type=f32) + vrow(V_IN_B)
    e_pr = jnp.dot(tok, wd_ref[R_WPROMPT:R_WPROMPT + TOKW, :],
                   preferred_element_type=f32) + vrow(V_PROMPT_B)
    e_pr = jnp.maximum(e_pr, 0.0)

    row_d = jax.lax.broadcasted_iota(jnp.int32, (N_ROWS, D_MODEL), 0)
    h = jnp.where(row_d < SERIES_ROW0, e_pr, e_in) + wd_ref[R_WPE:R_WPE + N_ROWS, :]

    # ---- additive attention mask (causal over positions + pad-column mask) ----
    row = jax.lax.broadcasted_iota(jnp.int32, (N_ROWS, N_ROWS), 0)
    col = jax.lax.broadcasted_iota(jnp.int32, (N_ROWS, N_ROWS), 1)
    pos_r = jnp.where(row < SERIES_ROW0, row, row - SERIES_ROW0 + PATCH_NUM)
    pos_c = jnp.where(col < SERIES_ROW0, col, col - SERIES_ROW0 + PATCH_NUM)
    col_valid = (col < PATCH_NUM) | ((col >= SERIES_ROW0) & (col < SERIES_ROW0 + PATCH_NUM))
    mask = jnp.where(col_valid & (pos_c <= pos_r), 0.0, NEG_INF).astype(f32)

    # per-head 0/1 lane masks (head select without 8-lane slicing)
    lane = jax.lax.broadcasted_iota(jnp.int32, (N_ROWS, D_MODEL), 1)
    head_masks = [((lane >= hi * HEAD_DIM) & (lane < (hi + 1) * HEAD_DIM)).astype(f32)
                  for hi in range(N_HEAD)]

    # ---- GPT2 blocks (static Python loop over the 2 layers) ----
    for li in range(GPT_LAYERS):
        vb = V_LAYER0 + li * V_PER_LAYER
        mb = R_MAT0 + li * MAT_PER_LAYER
        wb = li * WWIDE_PER_LAYER

        # attention (1/sqrt(head_dim) is folded into w_q / b_q at pack time)
        xn1 = layer_norm(h, vrow(vb + 0), vrow(vb + 1))
        q = jnp.dot(xn1, wd_ref[mb:mb + D_MODEL, :],
                    preferred_element_type=f32) + vrow(vb + 2)
        k = jnp.dot(xn1, wd_ref[mb + D_MODEL:mb + 2 * D_MODEL, :],
                    preferred_element_type=f32) + vrow(vb + 3)
        v = jnp.dot(xn1, wd_ref[mb + 2 * D_MODEL:mb + 3 * D_MODEL, :],
                    preferred_element_type=f32) + vrow(vb + 4)

        ctx = jnp.zeros((N_ROWS, D_MODEL), f32)
        for hm in head_masks:
            # scores: contract full 32 lanes, non-head lanes zeroed in q
            s = jax.lax.dot_general(q * hm, k, (((1,), (1,)), ((), ())),
                                    preferred_element_type=f32) + mask
            s = s - jnp.max(s, axis=-1, keepdims=True)
            e = jnp.exp(s)
            p = e * pl.reciprocal(jnp.sum(e, axis=-1, keepdims=True), approx=True)
            # masking v lane-packs this head's context straight into ctx
            ctx = ctx + jnp.dot(p, v * hm, preferred_element_type=f32)
        h = h + jnp.dot(ctx, wd_ref[mb + 3 * D_MODEL:mb + 4 * D_MODEL, :],
                        preferred_element_type=f32) + vrow(vb + 5)

        # MLP (gelu_new tanh approximation, as in GPT2)
        xn2 = layer_norm(h, vrow(vb + 6), vrow(vb + 7))
        u = jnp.dot(xn2, wwide_ref[wb:wb + D_MODEL, :],
                    preferred_element_type=f32) + wwide_ref[wb + D_MODEL:wb + D_MODEL + 1, :]
        g = 0.5 * u * (1.0 + jnp.tanh(0.7978845608028654 * (u + 0.044715 * u * u * u)))
        h = h + jnp.dot(g, wd_ref[mb + 4 * D_MODEL:mb + 4 * D_MODEL + D_FF, :],
                        preferred_element_type=f32) + vrow(vb + 8)

    # ---- ln_f, keep series tokens, out_layer, de-normalisation ----
    hf = layer_norm(h, vrow(V_LNF_G), vrow(V_LNF_B))
    hs = hf[SERIES_ROW0:SERIES_ROW0 + 8, :]                      # aligned (8, D) slab
    out = wout_ref[R_OUT_B:R_OUT_B + 1, :]                       # out_b  (1, PRED_LEN)
    for i in range(PATCH_NUM):
        out = out + jnp.dot(hs[i:i + 1, :],
                            wout_ref[i * D_MODEL:(i + 1) * D_MODEL, :],
                            preferred_element_type=f32)
    out_ref[...] = (out * stats_ref[1:2, :] + stats_ref[0:1, :]).astype(out_ref.dtype)


# ------------------------------ wrapper ------------------------------------
@jax.jit
def _forward_impl(x, summary, packed):
    b = x.shape[0]
    x2d = x.reshape(b, SEQ_LEN)                                  # M == 1

    # series normalisation (revin=False branch of forward())
    means = jnp.mean(x2d, axis=1, keepdims=True)                 # (B, 1)
    xc = x2d - means
    var = jnp.mean(xc * xc, axis=1, keepdims=True)               # unbiased=False
    stdev = jnp.sqrt(var + 1e-5)
    xn = xc / stdev

    # get_patch: ReplicationPad1d((0, stride)) + unfold(PATCH, STRIDE); PATCH == STRIDE
    x_pad = jnp.concatenate([xn, jnp.broadcast_to(xn[:, -1:], (b, STRIDE))], axis=1)
    xp = x_pad.reshape(b, PATCH_NUM, PATCH)                      # (B, PN, PATCH)

    # prompt tokens: per-patch mean of (replication-padded) summary
    s_pad = jnp.concatenate(
        [summary, jnp.broadcast_to(summary[:, -1:, :], (b, STRIDE, D_MODEL))], axis=1)
    s_tok = s_pad.reshape(b, PATCH_NUM, PATCH, D_MODEL).mean(axis=2)   # (B, PN, D)

    # combined per-batch token slab matching the in-kernel 16-row layout
    tok = jnp.zeros((b, N_ROWS, TOKW), jnp.float32)
    tok = tok.at[:, 0:PATCH_NUM, PATCH:PATCH + D_MODEL].set(s_tok)     # prompt rows
    tok = tok.at[:, SERIES_ROW0:SERIES_ROW0 + PATCH_NUM, 0:PATCH].set(xp)  # series rows

    # per-batch (mean, std) broadcast across the PRED_LEN lanes for the in-kernel denorm
    stats = jnp.stack([means[:, 0], stdev[:, 0]], axis=1)              # (B, 2)
    stats = jnp.broadcast_to(stats[:, :, None], (b, 2, PRED_LEN))

    out = pl.pallas_call(
        _gpt4mts_kernel,
        out_shape=jax.ShapeDtypeStruct((b, 1, PRED_LEN), jnp.float32),
        grid=(b,),
        in_specs=[
            pl.BlockSpec((None, N_ROWS, TOKW), lambda i: (i, 0, 0)),
            pl.BlockSpec((None, 2, PRED_LEN), lambda i: (i, 0, 0)),
            pl.BlockSpec((WD_ROWS, D_MODEL), lambda i: (0, 0)),
            pl.BlockSpec((WWIDE_ROWS, D_FF), lambda i: (0, 0)),
            pl.BlockSpec((WOUT_ROWS, PRED_LEN), lambda i: (0, 0)),
        ],
        out_specs=pl.BlockSpec((None, 1, PRED_LEN), lambda i: (i, 0, 0)),
        compiler_params=pltpu.CompilerParams(dimension_semantics=("parallel",)),
    )(tok, stats, packed["wd"], packed["wwide"], packed["wout"])
    return out.reshape(b, PRED_LEN, M)


def gpt4mts_forward(x, itr, summary, packed):
    """x: (B, L, M=1) f32, summary: (B, L, d_model) f32 -> (B, pred_len, M)."""
    del itr  # unused, as in the PyTorch forward
    return _forward_impl(x, summary, packed)


# ------------------------------ parameters ---------------------------------
def init_params(key):
    def nrm(k, shape, scale=0.02):
        return scale * jax.random.normal(k, shape, dtype=jnp.float32)

    keys = jax.random.split(key, 8)
    return {
        "in_w": nrm(keys[0], (PATCH, D_MODEL)),
        "in_b": jnp.zeros((1, D_MODEL), jnp.float32),
        "prompt_w": nrm(keys[1], (D_MODEL, D_MODEL)),
        "prompt_b": jnp.zeros((1, D_MODEL), jnp.float32),
        "out_w": nrm(keys[2], (D_MODEL * PATCH_NUM, PRED_LEN)),
        "out_b": jnp.zeros((1, PRED_LEN), jnp.float32),
        "wpe": nrm(keys[3], (MAX_POS, D_MODEL)),
        "lnf_g": jnp.ones((1, D_MODEL), jnp.float32),
        "lnf_b": jnp.zeros((1, D_MODEL), jnp.float32),
        "ln1_g": jnp.ones((GPT_LAYERS, 1, D_MODEL), jnp.float32),
        "ln1_b": jnp.zeros((GPT_LAYERS, 1, D_MODEL), jnp.float32),
        "w_qkv": nrm(keys[4], (GPT_LAYERS, D_MODEL, 3 * D_MODEL)),
        "b_qkv": jnp.zeros((GPT_LAYERS, 1, 3 * D_MODEL), jnp.float32),
        "w_ao": nrm(keys[5], (GPT_LAYERS, D_MODEL, D_MODEL)),
        "b_ao": jnp.zeros((GPT_LAYERS, 1, D_MODEL), jnp.float32),
        "ln2_g": jnp.ones((GPT_LAYERS, 1, D_MODEL), jnp.float32),
        "ln2_b": jnp.zeros((GPT_LAYERS, 1, D_MODEL), jnp.float32),
        "w_fc": nrm(keys[6], (GPT_LAYERS, D_MODEL, D_FF)),
        "b_fc": jnp.zeros((GPT_LAYERS, 1, D_FF), jnp.float32),
        "w_po": nrm(keys[7], (GPT_LAYERS, D_FF, D_MODEL)),
        "b_po": jnp.zeros((GPT_LAYERS, 1, D_MODEL), jnp.float32),
    }


def pack_params(params):
    """One-time packing of the ~24 raw parameter arrays into 3 contiguous f32 buffers."""
    f32 = jnp.float32
    D = D_MODEL
    scale = 1.0 / math.sqrt(HEAD_DIM)

    # width-32 buffer
    wd = jnp.zeros((WD_ROWS, D), f32)
    wd = wd.at[R_WIN:R_WIN + PATCH, :].set(params["in_w"])
    wd = wd.at[R_WPROMPT + PATCH:R_WPROMPT + PATCH + D, :].set(params["prompt_w"])
    wpe_rows = jnp.zeros((N_ROWS, D), f32)
    wpe_rows = wpe_rows.at[0:PATCH_NUM, :].set(params["wpe"][0:PATCH_NUM])
    wpe_rows = wpe_rows.at[SERIES_ROW0:SERIES_ROW0 + PATCH_NUM, :].set(
        params["wpe"][PATCH_NUM:2 * PATCH_NUM])
    wd = wd.at[R_WPE:R_WPE + N_ROWS, :].set(wpe_rows)

    def setrow(w, r, v):
        return w.at[r, :].set(v.reshape(-1))

    wd = setrow(wd, V_IN_B, params["in_b"])
    wd = setrow(wd, V_PROMPT_B, params["prompt_b"])
    wd = setrow(wd, V_LNF_G, params["lnf_g"])
    wd = setrow(wd, V_LNF_B, params["lnf_b"])
    for li in range(GPT_LAYERS):
        vb = V_LAYER0 + li * V_PER_LAYER
        wd = setrow(wd, vb + 0, params["ln1_g"][li])
        wd = setrow(wd, vb + 1, params["ln1_b"][li])
        wd = setrow(wd, vb + 2, params["b_qkv"][li][0, 0:D] * scale)       # b_q (scaled)
        wd = setrow(wd, vb + 3, params["b_qkv"][li][0, D:2 * D])           # b_k
        wd = setrow(wd, vb + 4, params["b_qkv"][li][0, 2 * D:3 * D])       # b_v
        wd = setrow(wd, vb + 5, params["b_ao"][li])
        wd = setrow(wd, vb + 6, params["ln2_g"][li])
        wd = setrow(wd, vb + 7, params["ln2_b"][li])
        wd = setrow(wd, vb + 8, params["b_po"][li])
        mb = R_MAT0 + li * MAT_PER_LAYER
        wd = wd.at[mb + 0:mb + D, :].set(params["w_qkv"][li][:, 0:D] * scale)   # w_q
        wd = wd.at[mb + D:mb + 2 * D, :].set(params["w_qkv"][li][:, D:2 * D])   # w_k
        wd = wd.at[mb + 2 * D:mb + 3 * D, :].set(params["w_qkv"][li][:, 2 * D:3 * D])
        wd = wd.at[mb + 3 * D:mb + 4 * D, :].set(params["w_ao"][li])
        wd = wd.at[mb + 4 * D:mb + 4 * D + D_FF, :].set(params["w_po"][li])

    # width-128 buffer
    wwide = jnp.zeros((WWIDE_ROWS, D_FF), f32)
    for li in range(GPT_LAYERS):
        wb = li * WWIDE_PER_LAYER
        wwide = wwide.at[wb:wb + D, :].set(params["w_fc"][li])
        wwide = wwide.at[wb + D, :].set(params["b_fc"][li].reshape(-1))

    # out-layer buffer
    wout = jnp.zeros((WOUT_ROWS, PRED_LEN), f32)
    wout = wout.at[0:PATCH_NUM * D, :].set(params["out_w"])
    wout = wout.at[R_OUT_B, :].set(params["out_b"].reshape(-1))

    return {"wd": wd, "wwide": wwide, "wout": wout}


# --------------------------------- main ------------------------------------
if __name__ == "__main__":
    key = jax.random.PRNGKey(0)
    k_p, k_x, k_s = jax.random.split(key, 3)

    params = init_params(k_p)
    packed = pack_params(params)

    x = jax.random.normal(k_x, (B, SEQ_LEN, M), dtype=jnp.float32)
    summary = jax.random.normal(k_s, (B, SEQ_LEN, D_MODEL), dtype=jnp.float32)

    out = gpt4mts_forward(x, 0, summary, packed)
    out = jax.block_until_ready(out)
    assert out.shape == (B, PRED_LEN, M), out.shape
    assert bool(jnp.all(jnp.isfinite(out)))
    print("KERNEL_OK")
</pallas_src>

<mosaic_0001>
module attributes {stable_mosaic.version = 11 : i64} {
  func.func @_gpt4mts_kernel(%arg0: i32, %arg1: memref<1x16x40xf32, #tpu.memory_space<vmem>>, %arg2: memref<1x2x8xf32, #tpu.memory_space<vmem>>, %arg3: memref<632x32xf32, #tpu.memory_space<vmem>>, %arg4: memref<80x128xf32, #tpu.memory_space<vmem>>, %arg5: memref<168x8xf32, #tpu.memory_space<vmem>>, %arg6: memref<1x1x8xf32, #tpu.memory_space<vmem>>) attributes {dimension_semantics = [#tpu.dimension_semantics<parallel>], iteration_bounds = array<i64: 2>, scalar_prefetch = 0 : i64, scratch_operands = 0 : i64, tpu.core_type = #tpu.core_type<tc>, window_params = [{transform_indices = @transform_0, window_bounds = array<i64: 1, 16, 40>}, {transform_indices = @transform_1, window_bounds = array<i64: 1, 2, 8>}, {pipeline_mode = #tpu.pipeline_mode<synchronous>, transform_indices = @transform_2, window_bounds = array<i64: 632, 32>}, {pipeline_mode = #tpu.pipeline_mode<synchronous>, transform_indices = @transform_3, window_bounds = array<i64: 80, 128>}, {pipeline_mode = #tpu.pipeline_mode<synchronous>, transform_indices = @transform_4, window_bounds = array<i64: 168, 8>}, {transform_indices = @transform_5, window_bounds = array<i64: 1, 1, 8>}]} {
    %c0 = arith.constant 0 : index
    %c0_0 = arith.constant 0 : index
    %c0_1 = arith.constant 0 : index
    %0 = vector.load %arg1[%c0, %c0_0, %c0_1] : memref<1x16x40xf32, #tpu.memory_space<vmem>>, vector<1x16x40xf32>
    %1 = vector.shape_cast %0 : vector<1x16x40xf32> to vector<16x40xf32>
    %c0_2 = arith.constant 0 : index
    %c0_3 = arith.constant 0 : index
    %2 = vector.load %arg3[%c0_2, %c0_3] : memref<632x32xf32, #tpu.memory_space<vmem>>, vector<40x32xf32>
    %cst = arith.constant dense<0.000000e+00> : vector<16x32xf32>
    %3 = tpu.matmul %1, %2, %cst {dimension_numbers = #tpu.dot_dimension_numbers<[1], [0], [0], [1], [0, 0, 1, 1], [], []>} : vector<16x40xf32>, vector<40x32xf32>, vector<16x32xf32> -> vector<16x32xf32>
    %c96 = arith.constant 96 : index
    %c0_4 = arith.constant 0 : index
    %4 = vector.load %arg3[%c96, %c0_4] : memref<632x32xf32, #tpu.memory_space<vmem>>, vector<1x32xf32>
    %5 = vector.broadcast %4 : vector<1x32xf32> to vector<16x32xf32>
    %6 = arith.addf %3, %5 : vector<16x32xf32>
    %c40 = arith.constant 40 : index
    %c0_5 = arith.constant 0 : index
    %7 = vector.load %arg3[%c40, %c0_5] : memref<632x32xf32, #tpu.memory_space<vmem>>, vector<40x32xf32>
    %cst_6 = arith.constant dense<0.000000e+00> : vector<16x32xf32>
    %8 = tpu.matmul %1, %7, %cst_6 {dimension_numbers = #tpu.dot_dimension_numbers<[1], [0], [0], [1], [0, 0, 1, 1], [], []>} : vector<16x40xf32>, vector<40x32xf32>, vector<16x32xf32> -> vector<16x32xf32>
    %c97 = arith.constant 97 : index
    %c0_7 = arith.constant 0 : index
    %9 = vector.load %arg3[%c97, %c0_7] : memref<632x32xf32, #tpu.memory_space<vmem>>, vector<1x32xf32>
    %10 = vector.broadcast %9 : vector<1x32xf32> to vector<16x32xf32>
    %11 = arith.addf %8, %10 : vector<16x32xf32>
    %cst_8 = arith.constant 0.000000e+00 : f32
    %12 = vector.broadcast %cst_8 : f32 to vector<16x32xf32>
    %13 = arith.maximumf %11, %12 : vector<16x32xf32>
    %14 = tpu.iota {dimensions = array<i32: 0>} : vector<16x32xi32>
    %c8_i32 = arith.constant 8 : i32
    %15 = vector.broadcast %c8_i32 : i32 to vector<16x32xi32>
    %16 = arith.cmpi slt, %14, %15 : vector<16x32xi32>
    %17 = arith.select %16, %13, %6 : vector<16x32xi1>, vector<16x32xf32>
    %c80 = arith.constant 80 : index
    %c0_9 = arith.constant 0 : index
    %18 = vector.load %arg3[%c80, %c0_9] : memref<632x32xf32, #tpu.memory_space<vmem>>, vector<16x32xf32>
    %19 = arith.addf %17, %18 : vector<16x32xf32>
    %20 = tpu.iota {dimensions = array<i32: 0>} : vector<16x16xi32>
    %21 = tpu.iota {dimensions = array<i32: 1>} : vector<16x16xi32>
    %c8_i32_10 = arith.constant 8 : i32
    %22 = vector.broadcast %c8_i32_10 : i32 to vector<16x16xi32>
    %23 = arith.cmpi slt, %20, %22 : vector<16x16xi32>
    %c8_i32_11 = arith.constant 8 : i32
    %24 = vector.broadcast %c8_i32_11 : i32 to vector<16x16xi32>
    %25 = arith.subi %20, %24 : vector<16x16xi32>
    %c5_i32 = arith.constant 5 : i32
    %26 = vector.broadcast %c5_i32 : i32 to vector<16x16xi32>
    %27 = arith.addi %25, %26 : vector<16x16xi32>
    %28 = arith.select %23, %20, %27 : vector<16x16xi1>, vector<16x16xi32>
    %c8_i32_12 = arith.constant 8 : i32
    %29 = vector.broadcast %c8_i32_12 : i32 to vector<16x16xi32>
    %30 = arith.cmpi slt, %21, %29 : vector<16x16xi32>
    %c8_i32_13 = arith.constant 8 : i32
    %31 = vector.broadcast %c8_i32_13 : i32 to vector<16x16xi32>
    %32 = arith.subi %21, %31 : vector<16x16xi32>
    %c5_i32_14 = arith.constant 5 : i32
    %33 = vector.broadcast %c5_i32_14 : i32 to vector<16x16xi32>
    %34 = arith.addi %32, %33 : vector<16x16xi32>
    %35 = arith.select %30, %21, %34 : vector<16x16xi1>, vector<16x16xi32>
    %c5_i32_15 = arith.constant 5 : i32
    %36 = vector.broadcast %c5_i32_15 : i32 to vector<16x16xi32>
    %37 = arith.cmpi slt, %21, %36 : vector<16x16xi32>
    %c8_i32_16 = arith.constant 8 : i32
    %38 = vector.broadcast %c8_i32_16 : i32 to vector<16x16xi32>
    %39 = arith.cmpi sge, %21, %38 : vector<16x16xi32>
    %c13_i32 = arith.constant 13 : i32
    %40 = vector.broadcast %c13_i32 : i32 to vector<16x16xi32>
    %41 = arith.cmpi slt, %21, %40 : vector<16x16xi32>
    %42 = arith.andi %39, %41 : vector<16x16xi1>
    %43 = arith.ori %37, %42 : vector<16x16xi1>
    %44 = arith.cmpi sle, %35, %28 : vector<16x16xi32>
    %45 = arith.andi %43, %44 : vector<16x16xi1>
    %cst_17 = arith.constant 0.000000e+00 : f32
    %cst_18 = arith.constant -1.000000e+30 : f32
    %46 = vector.broadcast %cst_17 : f32 to vector<16x16xf32>
    %47 = vector.broadcast %cst_18 : f32 to vector<16x16xf32>
    %48 = arith.select %45, %46, %47 : vector<16x16xi1>, vector<16x16xf32>
    %49 = tpu.iota {dimensions = array<i32: 1>} : vector<16x32xi32>
    %c0_i32 = arith.constant 0 : i32
    %50 = vector.broadcast %c0_i32 : i32 to vector<16x32xi32>
    %51 = arith.cmpi sge, %49, %50 : vector<16x32xi32>
    %c8_i32_19 = arith.constant 8 : i32
    %52 = vector.broadcast %c8_i32_19 : i32 to vector<16x32xi32>
    %53 = arith.cmpi slt, %49, %52 : vector<16x32xi32>
    %54 = arith.andi %51, %53 : vector<16x32xi1>
    %55 = arith.extui %54 : vector<16x32xi1> to vector<16x32xi32>
    %56 = arith.sitofp %55 : vector<16x32xi32> to vector<16x32xf32>
    %c8_i32_20 = arith.constant 8 : i32
    %57 = vector.broadcast %c8_i32_20 : i32 to vector<16x32xi32>
    %58 = arith.cmpi sge, %49, %57 : vector<16x32xi32>
    %c16_i32 = arith.constant 16 : i32
    %59 = vector.broadcast %c16_i32 : i32 to vector<16x32xi32>
    %60 = arith.cmpi slt, %49, %59 : vector<16x32xi32>
    %61 = arith.andi %58, %60 : vector<16x32xi1>
    %62 = arith.extui %61 : vector<16x32xi1> to vector<16x32xi32>
    %63 = arith.sitofp %62 : vector<16x32xi32> to vector<16x32xf32>
    %c16_i32_21 = arith.constant 16 : i32
    %64 = vector.broadcast %c16_i32_21 : i32 to vector<16x32xi32>
    %65 = arith.cmpi sge, %49, %64 : vector<16x32xi32>
    %c24_i32 = arith.constant 24 : i32
    %66 = vector.broadcast %c24_i32 : i32 to vector<16x32xi32>
    %67 = arith.cmpi slt, %49, %66 : vector<16x32xi32>
    %68 = arith.andi %65, %67 : vector<16x32xi1>
    %69 = arith.extui %68 : vector<16x32xi1> to vector<16x32xi32>
    %70 = arith.sitofp %69 : vector<16x32xi32> to vector<16x32xf32>
    %c24_i32_22 = arith.constant 24 : i32
    %71 = vector.broadcast %c24_i32_22 : i32 to vector<16x32xi32>
    %72 = arith.cmpi sge, %49, %71 : vector<16x32xi32>
    %c32_i32 = arith.constant 32 : i32
    %73 = vector.broadcast %c32_i32 : i32 to vector<16x32xi32>
    %74 = arith.cmpi slt, %49, %73 : vector<16x32xi32>
    %75 = arith.andi %72, %74 : vector<16x32xi1>
    %76 = arith.extui %75 : vector<16x32xi1> to vector<16x32xi32>
    %77 = arith.sitofp %76 : vector<16x32xi32> to vector<16x32xf32>
    %c100 = arith.constant 100 : index
    %c0_23 = arith.constant 0 : index
    %78 = vector.load %arg3[%c100, %c0_23] : memref<632x32xf32, #tpu.memory_space<vmem>>, vector<1x32xf32>
    %c101 = arith.constant 101 : index
    %c0_24 = arith.constant 0 : index
    %79 = vector.load %arg3[%c101, %c0_24] : memref<632x32xf32, #tpu.memory_space<vmem>>, vector<1x32xf32>
    %cst_25 = arith.constant dense<0.000000e+00> : vector<16xf32>
    %80 = vector.multi_reduction <add>, %19, %cst_25 [1] : vector<16x32xf32> to vector<16xf32>
    %81 = vector.shape_cast %80 : vector<16xf32> to vector<16x1xf32>
    %cst_26 = arith.constant 3.200000e+01 : f32
    %82 = vector.broadcast %cst_26 : f32 to vector<16x1xf32>
    %83 = arith.divf %81, %82 : vector<16x1xf32>
    %84 = vector.broadcast %83 : vector<16x1xf32> to vector<16x32xf32>
    %85 = arith.subf %19, %84 : vector<16x32xf32>
    %86 = arith.mulf %85, %85 : vector<16x32xf32>
    %cst_27 = arith.constant dense<0.000000e+00> : vector<16xf32>
    %87 = vector.multi_reduction <add>, %86, %cst_27 [1] : vector<16x32xf32> to vector<16xf32>
    %88 = vector.shape_cast %87 : vector<16xf32> to vector<16x1xf32>
    %cst_28 = arith.constant 3.200000e+01 : f32
    %89 = vector.broadcast %cst_28 : f32 to vector<16x1xf32>
    %90 = arith.divf %88, %89 : vector<16x1xf32>
    %91 = vector.broadcast %83 : vector<16x1xf32> to vector<16x32xf32>
    %92 = arith.subf %19, %91 : vector<16x32xf32>
    %cst_29 = arith.constant 9.99999974E-6 : f32
    %93 = vector.broadcast %cst_29 : f32 to vector<16x1xf32>
    %94 = arith.addf %90, %93 : vector<16x1xf32>
    %95 = math.rsqrt %94 : vector<16x1xf32>
    %96 = vector.broadcast %95 : vector<16x1xf32> to vector<16x32xf32>
    %97 = arith.mulf %92, %96 : vector<16x32xf32>
    %98 = vector.broadcast %78 : vector<1x32xf32> to vector<16x32xf32>
    %99 = arith.mulf %97, %98 : vector<16x32xf32>
    %100 = vector.broadcast %79 : vector<1x32xf32> to vector<16x32xf32>
    %101 = arith.addf %99, %100 : vector<16x32xf32>
    %c120 = arith.constant 120 : index
    %c0_30 = arith.constant 0 : index
    %102 = vector.load %arg3[%c120, %c0_30] : memref<632x32xf32, #tpu.memory_space<vmem>>, vector<32x32xf32>
    %cst_31 = arith.constant dense<0.000000e+00> : vector<16x32xf32>
    %103 = tpu.matmul %101, %102, %cst_31 {dimension_numbers = #tpu.dot_dimension_numbers<[1], [0], [0], [1], [0, 0, 1, 1], [], []>} : vector<16x32xf32>, vector<32x32xf32>, vector<16x32xf32> -> vector<16x32xf32>
    %c102 = arith.constant 102 : index
    %c0_32 = arith.constant 0 : index
    %104 = vector.load %arg3[%c102, %c0_32] : memref<632x32xf32, #tpu.memory_space<vmem>>, vector<1x32xf32>
    %105 = vector.broadcast %104 : vector<1x32xf32> to vector<16x32xf32>
    %106 = arith.addf %103, %105 : vector<16x32xf32>
    %c152 = arith.constant 152 : index
    %c0_33 = arith.constant 0 : index
    %107 = vector.load %arg3[%c152, %c0_33] : memref<632x32xf32, #tpu.memory_space<vmem>>, vector<32x32xf32>
    %cst_34 = arith.constant dense<0.000000e+00> : vector<16x32xf32>
    %108 = tpu.matmul %101, %107, %cst_34 {dimension_numbers = #tpu.dot_dimension_numbers<[1], [0], [0], [1], [0, 0, 1, 1], [], []>} : vector<16x32xf32>, vector<32x32xf32>, vector<16x32xf32> -> vector<16x32xf32>
    %c103 = arith.constant 103 : index
    %c0_35 = arith.constant 0 : index
    %109 = vector.load %arg3[%c103, %c0_35] : memref<632x32xf32, #tpu.memory_space<vmem>>, vector<1x32xf32>
    %110 = vector.broadcast %109 : vector<1x32xf32> to vector<16x32xf32>
    %111 = arith.addf %108, %110 : vector<16x32xf32>
    %c184 = arith.constant 184 : index
    %c0_36 = arith.constant 0 : index
    %112 = vector.load %arg3[%c184, %c0_36] : memref<632x32xf32, #tpu.memory_space<vmem>>, vector<32x32xf32>
    %cst_37 = arith.constant dense<0.000000e+00> : vector<16x32xf32>
    %113 = tpu.matmul %101, %112, %cst_37 {dimension_numbers = #tpu.dot_dimension_numbers<[1], [0], [0], [1], [0, 0, 1, 1], [], []>} : vector<16x32xf32>, vector<32x32xf32>, vector<16x32xf32> -> vector<16x32xf32>
    %c104 = arith.constant 104 : index
    %c0_38 = arith.constant 0 : index
    %114 = vector.load %arg3[%c104, %c0_38] : memref<632x32xf32, #tpu.memory_space<vmem>>, vector<1x32xf32>
    %115 = vector.broadcast %114 : vector<1x32xf32> to vector<16x32xf32>
    %116 = arith.addf %113, %115 : vector<16x32xf32>
    %cst_39 = arith.constant 0.000000e+00 : f32
    %117 = vector.broadcast %cst_39 : f32 to vector<16x32xf32>
    %118 = arith.mulf %106, %56 : vector<16x32xf32>
    %cst_40 = arith.constant dense<0.000000e+00> : vector<16x16xf32>
    %119 = tpu.matmul %118, %111, %cst_40 {dimension_numbers = #tpu.dot_dimension_numbers<[1], [1], [0], [0], [0, 0, 1, 0], [], []>} : vector<16x32xf32>, vector<16x32xf32>, vector<16x16xf32> -> vector<16x16xf32>
    %120 = arith.addf %119, %48 : vector<16x16xf32>
    %cst_41 = arith.constant dense<0xFF800000> : vector<16xf32>
    %121 = vector.multi_reduction <maximumf>, %120, %cst_41 [1] : vector<16x16xf32> to vector<16xf32>
    %122 = vector.shape_cast %121 : vector<16xf32> to vector<16x1xf32>
    %123 = vector.broadcast %122 : vector<16x1xf32> to vector<16x16xf32>
    %124 = arith.subf %120, %123 : vector<16x16xf32>
    %125 = math.exp %124 : vector<16x16xf32>
    %cst_42 = arith.constant dense<0.000000e+00> : vector<16xf32>
    %126 = vector.multi_reduction <add>, %125, %cst_42 [1] : vector<16x16xf32> to vector<16xf32>
    %127 = vector.shape_cast %126 : vector<16xf32> to vector<16x1xf32>
    %128 = tpu.reciprocal %127 {approx = true} : vector<16x1xf32> -> vector<16x1xf32>
    %129 = vector.broadcast %128 : vector<16x1xf32> to vector<16x16xf32>
    %130 = arith.mulf %125, %129 : vector<16x16xf32>
    %131 = arith.mulf %116, %56 : vector<16x32xf32>
    %cst_43 = arith.constant dense<0.000000e+00> : vector<16x32xf32>
    %132 = tpu.matmul %130, %131, %cst_43 {dimension_numbers = #tpu.dot_dimension_numbers<[1], [0], [0], [1], [0, 0, 1, 1], [], []>} : vector<16x16xf32>, vector<16x32xf32>, vector<16x32xf32> -> vector<16x32xf32>
    %133 = arith.addf %117, %132 : vector<16x32xf32>
    %134 = arith.mulf %106, %63 : vector<16x32xf32>
    %cst_44 = arith.constant dense<0.000000e+00> : vector<16x16xf32>
    %135 = tpu.matmul %134, %111, %cst_44 {dimension_numbers = #tpu.dot_dimension_numbers<[1], [1], [0], [0], [0, 0, 1, 0], [], []>} : vector<16x32xf32>, vector<16x32xf32>, vector<16x16xf32> -> vector<16x16xf32>
    %136 = arith.addf %135, %48 : vector<16x16xf32>
    %cst_45 = arith.constant dense<0xFF800000> : vector<16xf32>
    %137 = vector.multi_reduction <maximumf>, %136, %cst_45 [1] : vector<16x16xf32> to vector<16xf32>
    %138 = vector.shape_cast %137 : vector<16xf32> to vector<16x1xf32>
    %139 = vector.broadcast %138 : vector<16x1xf32> to vector<16x16xf32>
    %140 = arith.subf %136, %139 : vector<16x16xf32>
    %141 = math.exp %140 : vector<16x16xf32>
    %cst_46 = arith.constant dense<0.000000e+00> : vector<16xf32>
    %142 = vector.multi_reduction <add>, %141, %cst_46 [1] : vector<16x16xf32> to vector<16xf32>
    %143 = vector.shape_cast %142 : vector<16xf32> to vector<16x1xf32>
    %144 = tpu.reciprocal %143 {approx = true} : vector<16x1xf32> -> vector<16x1xf32>
    %145 = vector.broadcast %144 : vector<16x1xf32> to vector<16x16xf32>
    %146 = arith.mulf %141, %145 : vector<16x16xf32>
    %147 = arith.mulf %116, %63 : vector<16x32xf32>
    %cst_47 = arith.constant dense<0.000000e+00> : vector<16x32xf32>
    %148 = tpu.matmul %146, %147, %cst_47 {dimension_numbers = #tpu.dot_dimension_numbers<[1], [0], [0], [1], [0, 0, 1, 1], [], []>} : vector<16x16xf32>, vector<16x32xf32>, vector<16x32xf32> -> vector<16x32xf32>
    %149 = arith.addf %133, %148 : vector<16x32xf32>
    %150 = arith.mulf %106, %70 : vector<16x32xf32>
    %cst_48 = arith.constant dense<0.000000e+00> : vector<16x16xf32>
    %151 = tpu.matmul %150, %111, %cst_48 {dimension_numbers = #tpu.dot_dimension_numbers<[1], [1], [0], [0], [0, 0, 1, 0], [], []>} : vector<16x32xf32>, vector<16x32xf32>, vector<16x16xf32> -> vector<16x16xf32>
    %152 = arith.addf %151, %48 : vector<16x16xf32>
    %cst_49 = arith.constant dense<0xFF800000> : vector<16xf32>
    %153 = vector.multi_reduction <maximumf>, %152, %cst_49 [1] : vector<16x16xf32> to vector<16xf32>
    %154 = vector.shape_cast %153 : vector<16xf32> to vector<16x1xf32>
    %155 = vector.broadcast %154 : vector<16x1xf32> to vector<16x16xf32>
    %156 = arith.subf %152, %155 : vector<16x16xf32>
    %157 = math.exp %156 : vector<16x16xf32>
    %cst_50 = arith.constant dense<0.000000e+00> : vector<16xf32>
    %158 = vector.multi_reduction <add>, %157, %cst_50 [1] : vector<16x16xf32> to vector<16xf32>
    %159 = vector.shape_cast %158 : vector<16xf32> to vector<16x1xf32>
    %160 = tpu.reciprocal %159 {approx = true} : vector<16x1xf32> -> vector<16x1xf32>
    %161 = vector.broadcast %160 : vector<16x1xf32> to vector<16x16xf32>
    %162 = arith.mulf %157, %161 : vector<16x16xf32>
    %163 = arith.mulf %116, %70 : vector<16x32xf32>
    %cst_51 = arith.constant dense<0.000000e+00> : vector<16x32xf32>
    %164 = tpu.matmul %162, %163, %cst_51 {dimension_numbers = #tpu.dot_dimension_numbers<[1], [0], [0], [1], [0, 0, 1, 1], [], []>} : vector<16x16xf32>, vector<16x32xf32>, vector<16x32xf32> -> vector<16x32xf32>
    %165 = arith.addf %149, %164 : vector<16x32xf32>
    %166 = arith.mulf %106, %77 : vector<16x32xf32>
    %cst_52 = arith.constant dense<0.000000e+00> : vector<16x16xf32>
    %167 = tpu.matmul %166, %111, %cst_52 {dimension_numbers = #tpu.dot_dimension_numbers<[1], [1], [0], [0], [0, 0, 1, 0], [], []>} : vector<16x32xf32>, vector<16x32xf32>, vector<16x16xf32> -> vector<16x16xf32>
    %168 = arith.addf %167, %48 : vector<16x16xf32>
    %cst_53 = arith.constant dense<0xFF800000> : vector<16xf32>
    %169 = vector.multi_reduction <maximumf>, %168, %cst_53 [1] : vector<16x16xf32> to vector<16xf32>
    %170 = vector.shape_cast %169 : vector<16xf32> to vector<16x1xf32>
    %171 = vector.broadcast %170 : vector<16x1xf32> to vector<16x16xf32>
    %172 = arith.subf %168, %171 : vector<16x16xf32>
    %173 = math.exp %172 : vector<16x16xf32>
    %cst_54 = arith.constant dense<0.000000e+00> : vector<16xf32>
    %174 = vector.multi_reduction <add>, %173, %cst_54 [1] : vector<16x16xf32> to vector<16xf32>
    %175 = vector.shape_cast %174 : vector<16xf32> to vector<16x1xf32>
    %176 = tpu.reciprocal %175 {approx = true} : vector<16x1xf32> -> vector<16x1xf32>
    %177 = vector.broadcast %176 : vector<16x1xf32> to vector<16x16xf32>
    %178 = arith.mulf %173, %177 : vector<16x16xf32>
    %179 = arith.mulf %116, %77 : vector<16x32xf32>
    %cst_55 = arith.constant dense<0.000000e+00> : vector<16x32xf32>
    %180 = tpu.matmul %178, %179, %cst_55 {dimension_numbers = #tpu.dot_dimension_numbers<[1], [0], [0], [1], [0, 0, 1, 1], [], []>} : vector<16x16xf32>, vector<16x32xf32>, vector<16x32xf32> -> vector<16x32xf32>
    %181 = arith.addf %165, %180 : vector<16x32xf32>
    %c216 = arith.constant 216 : index
    %c0_56 = arith.constant 0 : index
    %182 = vector.load %arg3[%c216, %c0_56] : memref<632x32xf32, #tpu.memory_space<vmem>>, vector<32x32xf32>
    %cst_57 = arith.constant dense<0.000000e+00> : vector<16x32xf32>
    %183 = tpu.matmul %181, %182, %cst_57 {dimension_numbers = #tpu.dot_dimension_numbers<[1], [0], [0], [1], [0, 0, 1, 1], [], []>} : vector<16x32xf32>, vector<32x32xf32>, vector<16x32xf32> -> vector<16x32xf32>
    %184 = arith.addf %19, %183 : vector<16x32xf32>
    %c105 = arith.constant 105 : index
    %c0_58 = arith.constant 0 : index
    %185 = vector.load %arg3[%c105, %c0_58] : memref<632x32xf32, #tpu.memory_space<vmem>>, vector<1x32xf32>
    %186 = vector.broadcast %185 : vector<1x32xf32> to vector<16x32xf32>
    %187 = arith.addf %184, %186 : vector<16x32xf32>
    %c106 = arith.constant 106 : index
    %c0_59 = arith.constant 0 : index
    %188 = vector.load %arg3[%c106, %c0_59] : memref<632x32xf32, #tpu.memory_space<vmem>>, vector<1x32xf32>
    %c107 = arith.constant 107 : index
    %c0_60 = arith.constant 0 : index
    %189 = vector.load %arg3[%c107, %c0_60] : memref<632x32xf32, #tpu.memory_space<vmem>>, vector<1x32xf32>
    %cst_61 = arith.constant dense<0.000000e+00> : vector<16xf32>
    %190 = vector.multi_reduction <add>, %187, %cst_61 [1] : vector<16x32xf32> to vector<16xf32>
    %191 = vector.shape_cast %190 : vector<16xf32> to vector<16x1xf32>
    %cst_62 = arith.constant 3.200000e+01 : f32
    %192 = vector.broadcast %cst_62 : f32 to vector<16x1xf32>
    %193 = arith.divf %191, %192 : vector<16x1xf32>
    %194 = vector.broadcast %193 : vector<16x1xf32> to vector<16x32xf32>
    %195 = arith.subf %187, %194 : vector<16x32xf32>
    %196 = arith.mulf %195, %195 : vector<16x32xf32>
    %cst_63 = arith.constant dense<0.000000e+00> : vector<16xf32>
    %197 = vector.multi_reduction <add>, %196, %cst_63 [1] : vector<16x32xf32> to vector<16xf32>
    %198 = vector.shape_cast %197 : vector<16xf32> to vector<16x1xf32>
    %cst_64 = arith.constant 3.200000e+01 : f32
    %199 = vector.broadcast %cst_64 : f32 to vector<16x1xf32>
    %200 = arith.divf %198, %199 : vector<16x1xf32>
    %201 = vector.broadcast %193 : vector<16x1xf32> to vector<16x32xf32>
    %202 = arith.subf %187, %201 : vector<16x32xf32>
    %cst_65 = arith.constant 9.99999974E-6 : f32
    %203 = vector.broadcast %cst_65 : f32 to vector<16x1xf32>
    %204 = arith.addf %200, %203 : vector<16x1xf32>
    %205 = math.rsqrt %204 : vector<16x1xf32>
    %206 = vector.broadcast %205 : vector<16x1xf32> to vector<16x32xf32>
    %207 = arith.mulf %202, %206 : vector<16x32xf32>
    %208 = vector.broadcast %188 : vector<1x32xf32> to vector<16x32xf32>
    %209 = arith.mulf %207, %208 : vector<16x32xf32>
    %210 = vector.broadcast %189 : vector<1x32xf32> to vector<16x32xf32>
    %211 = arith.addf %209, %210 : vector<16x32xf32>
    %c0_66 = arith.constant 0 : index
    %c0_67 = arith.constant 0 : index
    %212 = vector.load %arg4[%c0_66, %c0_67] : memref<80x128xf32, #tpu.memory_space<vmem>>, vector<32x128xf32>
    %cst_68 = arith.constant dense<0.000000e+00> : vector<16x128xf32>
    %213 = tpu.matmul %211, %212, %cst_68 {dimension_numbers = #tpu.dot_dimension_numbers<[1], [0], [0], [1], [0, 0, 1, 1], [], []>} : vector<16x32xf32>, vector<32x128xf32>, vector<16x128xf32> -> vector<16x128xf32>
    %c32 = arith.constant 32 : index
    %c0_69 = arith.constant 0 : index
    %214 = vector.load %arg4[%c32, %c0_69] : memref<80x128xf32, #tpu.memory_space<vmem>>, vector<1x128xf32>
    %215 = vector.broadcast %214 : vector<1x128xf32> to vector<16x128xf32>
    %216 = arith.addf %213, %215 : vector<16x128xf32>
    %cst_70 = arith.constant 5.000000e-01 : f32
    %217 = vector.broadcast %cst_70 : f32 to vector<16x128xf32>
    %218 = arith.mulf %217, %216 : vector<16x128xf32>
    %cst_71 = arith.constant 4.471500e-02 : f32
    %219 = vector.broadcast %cst_71 : f32 to vector<16x128xf32>
    %220 = arith.mulf %219, %216 : vector<16x128xf32>
    %221 = arith.mulf %220, %216 : vector<16x128xf32>
    %222 = arith.mulf %221, %216 : vector<16x128xf32>
    %223 = arith.addf %216, %222 : vector<16x128xf32>
    %cst_72 = arith.constant 0.797884583 : f32
    %224 = vector.broadcast %cst_72 : f32 to vector<16x128xf32>
    %225 = arith.mulf %224, %223 : vector<16x128xf32>
    %226 = math.tanh %225 : vector<16x128xf32>
    %cst_73 = arith.constant 1.000000e+00 : f32
    %227 = vector.broadcast %cst_73 : f32 to vector<16x128xf32>
    %228 = arith.addf %227, %226 : vector<16x128xf32>
    %229 = arith.mulf %218, %228 : vector<16x128xf32>
    %c248 = arith.constant 248 : index
    %c0_74 = arith.constant 0 : index
    %230 = vector.load %arg3[%c248, %c0_74] : memref<632x32xf32, #tpu.memory_space<vmem>>, vector<128x32xf32>
    %cst_75 = arith.constant dense<0.000000e+00> : vector<16x32xf32>
    %231 = tpu.matmul %229, %230, %cst_75 {dimension_numbers = #tpu.dot_dimension_numbers<[1], [0], [0], [1], [0, 0, 1, 1], [], []>} : vector<16x128xf32>, vector<128x32xf32>, vector<16x32xf32> -> vector<16x32xf32>
    %232 = arith.addf %187, %231 : vector<16x32xf32>
    %c108 = arith.constant 108 : index
    %c0_76 = arith.constant 0 : index
    %233 = vector.load %arg3[%c108, %c0_76] : memref<632x32xf32, #tpu.memory_space<vmem>>, vector<1x32xf32>
    %234 = vector.broadcast %233 : vector<1x32xf32> to vector<16x32xf32>
    %235 = arith.addf %232, %234 : vector<16x32xf32>
    %c109 = arith.constant 109 : index
    %c0_77 = arith.constant 0 : index
    %236 = vector.load %arg3[%c109, %c0_77] : memref<632x32xf32, #tpu.memory_space<vmem>>, vector<1x32xf32>
    %c110 = arith.constant 110 : index
    %c0_78 = arith.constant 0 : index
    %237 = vector.load %arg3[%c110, %c0_78] : memref<632x32xf32, #tpu.memory_space<vmem>>, vector<1x32xf32>
    %cst_79 = arith.constant dense<0.000000e+00> : vector<16xf32>
    %238 = vector.multi_reduction <add>, %235, %cst_79 [1] : vector<16x32xf32> to vector<16xf32>
    %239 = vector.shape_cast %238 : vector<16xf32> to vector<16x1xf32>
    %cst_80 = arith.constant 3.200000e+01 : f32
    %240 = vector.broadcast %cst_80 : f32 to vector<16x1xf32>
    %241 = arith.divf %239, %240 : vector<16x1xf32>
    %242 = vector.broadcast %241 : vector<16x1xf32> to vector<16x32xf32>
    %243 = arith.subf %235, %242 : vector<16x32xf32>
    %244 = arith.mulf %243, %243 : vector<16x32xf32>
    %cst_81 = arith.constant dense<0.000000e+00> : vector<16xf32>
    %245 = vector.multi_reduction <add>, %244, %cst_81 [1] : vector<16x32xf32> to vector<16xf32>
    %246 = vector.shape_cast %245 : vector<16xf32> to vector<16x1xf32>
    %cst_82 = arith.constant 3.200000e+01 : f32
    %247 = vector.broadcast %cst_82 : f32 to vector<16x1xf32>
    %248 = arith.divf %246, %247 : vector<16x1xf32>
    %249 = vector.broadcast %241 : vector<16x1xf32> to vector<16x32xf32>
    %250 = arith.subf %235, %249 : vector<16x32xf32>
    %cst_83 = arith.constant 9.99999974E-6 : f32
    %251 = vector.broadcast %cst_83 : f32 to vector<16x1xf32>
    %252 = arith.addf %248, %251 : vector<16x1xf32>
    %253 = math.rsqrt %252 : vector<16x1xf32>
    %254 = vector.broadcast %253 : vector<16x1xf32> to vector<16x32xf32>
    %255 = arith.mulf %250, %254 : vector<16x32xf32>
    %256 = vector.broadcast %236 : vector<1x32xf32> to vector<16x32xf32>
    %257 = arith.mulf %255, %256 : vector<16x32xf32>
    %258 = vector.broadcast %237 : vector<1x32xf32> to vector<16x32xf32>
    %259 = arith.addf %257, %258 : vector<16x32xf32>
    %c376 = arith.constant 376 : index
    %c0_84 = arith.constant 0 : index
    %260 = vector.load %arg3[%c376, %c0_84] : memref<632x32xf32, #tpu.memory_space<vmem>>, vector<32x32xf32>
    %cst_85 = arith.constant dense<0.000000e+00> : vector<16x32xf32>
    %261 = tpu.matmul %259, %260, %cst_85 {dimension_numbers = #tpu.dot_dimension_numbers<[1], [0], [0], [1], [0, 0, 1, 1], [], []>} : vector<16x32xf32>, vector<32x32xf32>, vector<16x32xf32> -> vector<16x32xf32>
    %c111 = arith.constant 111 : index
    %c0_86 = arith.constant 0 : index
    %262 = vector.load %arg3[%c111, %c0_86] : memref<632x32xf32, #tpu.memory_space<vmem>>, vector<1x32xf32>
    %263 = vector.broadcast %262 : vector<1x32xf32> to vector<16x32xf32>
    %264 = arith.addf %261, %263 : vector<16x32xf32>
    %c408 = arith.constant 408 : index
    %c0_87 = arith.constant 0 : index
    %265 = vector.load %arg3[%c408, %c0_87] : memref<632x32xf32, #tpu.memory_space<vmem>>, vector<32x32xf32>
    %cst_88 = arith.constant dense<0.000000e+00> : vector<16x32xf32>
    %266 = tpu.matmul %259, %265, %cst_88 {dimension_numbers = #tpu.dot_dimension_numbers<[1], [0], [0], [1], [0, 0, 1, 1], [], []>} : vector<16x32xf32>, vector<32x32xf32>, vector<16x32xf32> -> vector<16x32xf32>
    %c112 = arith.constant 112 : index
    %c0_89 = arith.constant 0 : index
    %267 = vector.load %arg3[%c112, %c0_89] : memref<632x32xf32, #tpu.memory_space<vmem>>, vector<1x32xf32>
    %268 = vector.broadcast %267 : vector<1x32xf32> to vector<16x32xf32>
    %269 = arith.addf %266, %268 : vector<16x32xf32>
    %c440 = arith.constant 440 : index
    %c0_90 = arith.constant 0 : index
    %270 = vector.load %arg3[%c440, %c0_90] : memref<632x32xf32, #tpu.memory_space<vmem>>, vector<32x32xf32>
    %cst_91 = arith.constant dense<0.000000e+00> : vector<16x32xf32>
    %271 = tpu.matmul %259, %270, %cst_91 {dimension_numbers = #tpu.dot_dimension_numbers<[1], [0], [0], [1], [0, 0, 1, 1], [], []>} : vector<16x32xf32>, vector<32x32xf32>, vector<16x32xf32> -> vector<16x32xf32>
    %c113 = arith.constant 113 : index
    %c0_92 = arith.constant 0 : index
    %272 = vector.load %arg3[%c113, %c0_92] : memref<632x32xf32, #tpu.memory_space<vmem>>, vector<1x32xf32>
    %273 = vector.broadcast %272 : vector<1x32xf32> to vector<16x32xf32>
    %274 = arith.addf %271, %273 : vector<16x32xf32>
    %cst_93 = arith.constant 0.000000e+00 : f32
    %275 = vector.broadcast %cst_93 : f32 to vector<16x32xf32>
    %276 = arith.mulf %264, %56 : vector<16x32xf32>
    %cst_94 = arith.constant dense<0.000000e+00> : vector<16x16xf32>
    %277 = tpu.matmul %276, %269, %cst_94 {dimension_numbers = #tpu.dot_dimension_numbers<[1], [1], [0], [0], [0, 0, 1, 0], [], []>} : vector<16x32xf32>, vector<16x32xf32>, vector<16x16xf32> -> vector<16x16xf32>
    %278 = arith.addf %277, %48 : vector<16x16xf32>
    %cst_95 = arith.constant dense<0xFF800000> : vector<16xf32>
    %279 = vector.multi_reduction <maximumf>, %278, %cst_95 [1] : vector<16x16xf32> to vector<16xf32>
    %280 = vector.shape_cast %279 : vector<16xf32> to vector<16x1xf32>
    %281 = vector.broadcast %280 : vector<16x1xf32> to vector<16x16xf32>
    %282 = arith.subf %278, %281 : vector<16x16xf32>
    %283 = math.exp %282 : vector<16x16xf32>
    %cst_96 = arith.constant dense<0.000000e+00> : vector<16xf32>
    %284 = vector.multi_reduction <add>, %283, %cst_96 [1] : vector<16x16xf32> to vector<16xf32>
    %285 = vector.shape_cast %284 : vector<16xf32> to vector<16x1xf32>
    %286 = tpu.reciprocal %285 {approx = true} : vector<16x1xf32> -> vector<16x1xf32>
    %287 = vector.broadcast %286 : vector<16x1xf32> to vector<16x16xf32>
    %288 = arith.mulf %283, %287 : vector<16x16xf32>
    %289 = arith.mulf %274, %56 : vector<16x32xf32>
    %cst_97 = arith.constant dense<0.000000e+00> : vector<16x32xf32>
    %290 = tpu.matmul %288, %289, %cst_97 {dimension_numbers = #tpu.dot_dimension_numbers<[1], [0], [0], [1], [0, 0, 1, 1], [], []>} : vector<16x16xf32>, vector<16x32xf32>, vector<16x32xf32> -> vector<16x32xf32>
    %291 = arith.addf %275, %290 : vector<16x32xf32>
    %292 = arith.mulf %264, %63 : vector<16x32xf32>
    %cst_98 = arith.constant dense<0.000000e+00> : vector<16x16xf32>
    %293 = tpu.matmul %292, %269, %cst_98 {dimension_numbers = #tpu.dot_dimension_numbers<[1], [1], [0], [0], [0, 0, 1, 0], [], []>} : vector<16x32xf32>, vector<16x32xf32>, vector<16x16xf32> -> vector<16x16xf32>
    %294 = arith.addf %293, %48 : vector<16x16xf32>
    %cst_99 = arith.constant dense<0xFF800000> : vector<16xf32>
    %295 = vector.multi_reduction <maximumf>, %294, %cst_99 [1] : vector<16x16xf32> to vector<16xf32>
    %296 = vector.shape_cast %295 : vector<16xf32> to vector<16x1xf32>
    %297 = vector.broadcast %296 : vector<16x1xf32> to vector<16x16xf32>
    %298 = arith.subf %294, %297 : vector<16x16xf32>
    %299 = math.exp %298 : vector<16x16xf32>
    %cst_100 = arith.constant dense<0.000000e+00> : vector<16xf32>
    %300 = vector.multi_reduction <add>, %299, %cst_100 [1] : vector<16x16xf32> to vector<16xf32>
    %301 = vector.shape_cast %300 : vector<16xf32> to vector<16x1xf32>
    %302 = tpu.reciprocal %301 {approx = true} : vector<16x1xf32> -> vector<16x1xf32>
    %303 = vector.broadcast %302 : vector<16x1xf32> to vector<16x16xf32>
    %304 = arith.mulf %299, %303 : vector<16x16xf32>
    %305 = arith.mulf %274, %63 : vector<16x32xf32>
    %cst_101 = arith.constant dense<0.000000e+00> : vector<16x32xf32>
    %306 = tpu.matmul %304, %305, %cst_101 {dimension_numbers = #tpu.dot_dimension_numbers<[1], [0], [0], [1], [0, 0, 1, 1], [], []>} : vector<16x16xf32>, vector<16x32xf32>, vector<16x32xf32> -> vector<16x32xf32>
    %307 = arith.addf %291, %306 : vector<16x32xf32>
    %308 = arith.mulf %264, %70 : vector<16x32xf32>
    %cst_102 = arith.constant dense<0.000000e+00> : vector<16x16xf32>
    %309 = tpu.matmul %308, %269, %cst_102 {dimension_numbers = #tpu.dot_dimension_numbers<[1], [1], [0], [0], [0, 0, 1, 0], [], []>} : vector<16x32xf32>, vector<16x32xf32>, vector<16x16xf32> -> vector<16x16xf32>
    %310 = arith.addf %309, %48 : vector<16x16xf32>
    %cst_103 = arith.constant dense<0xFF800000> : vector<16xf32>
    %311 = vector.multi_reduction <maximumf>, %310, %cst_103 [1] : vector<16x16xf32> to vector<16xf32>
    %312 = vector.shape_cast %311 : vector<16xf32> to vector<16x1xf32>
    %313 = vector.broadcast %312 : vector<16x1xf32> to vector<16x16xf32>
    %314 = arith.subf %310, %313 : vector<16x16xf32>
    %315 = math.exp %314 : vector<16x16xf32>
    %cst_104 = arith.constant dense<0.000000e+00> : vector<16xf32>
    %316 = vector.multi_reduction <add>, %315, %cst_104 [1] : vector<16x16xf32> to vector<16xf32>
    %317 = vector.shape_cast %316 : vector<16xf32> to vector<16x1xf32>
    %318 = tpu.reciprocal %317 {approx = true} : vector<16x1xf32> -> vector<16x1xf32>
    %319 = vector.broadcast %318 : vector<16x1xf32> to vector<16x16xf32>
    %320 = arith.mulf %315, %319 : vector<16x16xf32>
    %321 = arith.mulf %274, %70 : vector<16x32xf32>
    %cst_105 = arith.constant dense<0.000000e+00> : vector<16x32xf32>
    %322 = tpu.matmul %320, %321, %cst_105 {dimension_numbers = #tpu.dot_dimension_numbers<[1], [0], [0], [1], [0, 0, 1, 1], [], []>} : vector<16x16xf32>, vector<16x32xf32>, vector<16x32xf32> -> vector<16x32xf32>
    %323 = arith.addf %307, %322 : vector<16x32xf32>
    %324 = arith.mulf %264, %77 : vector<16x32xf32>
    %cst_106 = arith.constant dense<0.000000e+00> : vector<16x16xf32>
    %325 = tpu.matmul %324, %269, %cst_106 {dimension_numbers = #tpu.dot_dimension_numbers<[1], [1], [0], [0], [0, 0, 1, 0], [], []>} : vector<16x32xf32>, vector<16x32xf32>, vector<16x16xf32> -> vector<16x16xf32>
    %326 = arith.addf %325, %48 : vector<16x16xf32>
    %cst_107 = arith.constant dense<0xFF800000> : vector<16xf32>
    %327 = vector.multi_reduction <maximumf>, %326, %cst_107 [1] : vector<16x16xf32> to vector<16xf32>
    %328 = vector.shape_cast %327 : vector<16xf32> to vector<16x1xf32>
    %329 = vector.broadcast %328 : vector<16x1xf32> to vector<16x16xf32>
    %330 = arith.subf %326, %329 : vector<16x16xf32>
    %331 = math.exp %330 : vector<16x16xf32>
    %cst_108 = arith.constant dense<0.000000e+00> : vector<16xf32>
    %332 = vector.multi_reduction <add>, %331, %cst_108 [1] : vector<16x16xf32> to vector<16xf32>
    %333 = vector.shape_cast %332 : vector<16xf32> to vector<16x1xf32>
    %334 = tpu.reciprocal %333 {approx = true} : vector<16x1xf32> -> vector<16x1xf32>
    %335 = vector.broadcast %334 : vector<16x1xf32> to vector<16x16xf32>
    %336 = arith.mulf %331, %335 : vector<16x16xf32>
    %337 = arith.mulf %274, %77 : vector<16x32xf32>
    %cst_109 = arith.constant dense<0.000000e+00> : vector<16x32xf32>
    %338 = tpu.matmul %336, %337, %cst_109 {dimension_numbers = #tpu.dot_dimension_numbers<[1], [0], [0], [1], [0, 0, 1, 1], [], []>} : vector<16x16xf32>, vector<16x32xf32>, vector<16x32xf32> -> vector<16x32xf32>
    %339 = arith.addf %323, %338 : vector<16x32xf32>
    %c472 = arith.constant 472 : index
    %c0_110 = arith.constant 0 : index
    %340 = vector.load %arg3[%c472, %c0_110] : memref<632x32xf32, #tpu.memory_space<vmem>>, vector<32x32xf32>
    %cst_111 = arith.constant dense<0.000000e+00> : vector<16x32xf32>
    %341 = tpu.matmul %339, %340, %cst_111 {dimension_numbers = #tpu.dot_dimension_numbers<[1], [0], [0], [1], [0, 0, 1, 1], [], []>} : vector<16x32xf32>, vector<32x32xf32>, vector<16x32xf32> -> vector<16x32xf32>
    %342 = arith.addf %235, %341 : vector<16x32xf32>
    %c114 = arith.constant 114 : index
    %c0_112 = arith.constant 0 : index
    %343 = vector.load %arg3[%c114, %c0_112] : memref<632x32xf32, #tpu.memory_space<vmem>>, vector<1x32xf32>
    %344 = vector.broadcast %343 : vector<1x32xf32> to vector<16x32xf32>
    %345 = arith.addf %342, %344 : vector<16x32xf32>
    %c115 = arith.constant 115 : index
    %c0_113 = arith.constant 0 : index
    %346 = vector.load %arg3[%c115, %c0_113] : memref<632x32xf32, #tpu.memory_space<vmem>>, vector<1x32xf32>
    %c116 = arith.constant 116 : index
    %c0_114 = arith.constant 0 : index
    %347 = vector.load %arg3[%c116, %c0_114] : memref<632x32xf32, #tpu.memory_space<vmem>>, vector<1x32xf32>
    %cst_115 = arith.constant dense<0.000000e+00> : vector<16xf32>
    %348 = vector.multi_reduction <add>, %345, %cst_115 [1] : vector<16x32xf32> to vector<16xf32>
    %349 = vector.shape_cast %348 : vector<16xf32> to vector<16x1xf32>
    %cst_116 = arith.constant 3.200000e+01 : f32
    %350 = vector.broadcast %cst_116 : f32 to vector<16x1xf32>
    %351 = arith.divf %349, %350 : vector<16x1xf32>
    %352 = vector.broadcast %351 : vector<16x1xf32> to vector<16x32xf32>
    %353 = arith.subf %345, %352 : vector<16x32xf32>
    %354 = arith.mulf %353, %353 : vector<16x32xf32>
    %cst_117 = arith.constant dense<0.000000e+00> : vector<16xf32>
    %355 = vector.multi_reduction <add>, %354, %cst_117 [1] : vector<16x32xf32> to vector<16xf32>
    %356 = vector.shape_cast %355 : vector<16xf32> to vector<16x1xf32>
    %cst_118 = arith.constant 3.200000e+01 : f32
    %357 = vector.broadcast %cst_118 : f32 to vector<16x1xf32>
    %358 = arith.divf %356, %357 : vector<16x1xf32>
    %359 = vector.broadcast %351 : vector<16x1xf32> to vector<16x32xf32>
    %360 = arith.subf %345, %359 : vector<16x32xf32>
    %cst_119 = arith.constant 9.99999974E-6 : f32
    %361 = vector.broadcast %cst_119 : f32 to vector<16x1xf32>
    %362 = arith.addf %358, %361 : vector<16x1xf32>
    %363 = math.rsqrt %362 : vector<16x1xf32>
    %364 = vector.broadcast %363 : vector<16x1xf32> to vector<16x32xf32>
    %365 = arith.mulf %360, %364 : vector<16x32xf32>
    %366 = vector.broadcast %346 : vector<1x32xf32> to vector<16x32xf32>
    %367 = arith.mulf %365, %366 : vector<16x32xf32>
    %368 = vector.broadcast %347 : vector<1x32xf32> to vector<16x32xf32>
    %369 = arith.addf %367, %368 : vector<16x32xf32>
    %c40_120 = arith.constant 40 : index
    %c0_121 = arith.constant 0 : index
    %370 = vector.load %arg4[%c40_120, %c0_121] : memref<80x128xf32, #tpu.memory_space<vmem>>, vector<32x128xf32>
    %cst_122 = arith.constant dense<0.000000e+00> : vector<16x128xf32>
    %371 = tpu.matmul %369, %370, %cst_122 {dimension_numbers = #tpu.dot_dimension_numbers<[1], [0], [0], [1], [0, 0, 1, 1], [], []>} : vector<16x32xf32>, vector<32x128xf32>, vector<16x128xf32> -> vector<16x128xf32>
    %c72 = arith.constant 72 : index
    %c0_123 = arith.constant 0 : index
    %372 = vector.load %arg4[%c72, %c0_123] : memref<80x128xf32, #tpu.memory_space<vmem>>, vector<1x128xf32>
    %373 = vector.broadcast %372 : vector<1x128xf32> to vector<16x128xf32>
    %374 = arith.addf %371, %373 : vector<16x128xf32>
    %cst_124 = arith.constant 5.000000e-01 : f32
    %375 = vector.broadcast %cst_124 : f32 to vector<16x128xf32>
    %376 = arith.mulf %375, %374 : vector<16x128xf32>
    %cst_125 = arith.constant 4.471500e-02 : f32
    %377 = vector.broadcast %cst_125 : f32 to vector<16x128xf32>
    %378 = arith.mulf %377, %374 : vector<16x128xf32>
    %379 = arith.mulf %378, %374 : vector<16x128xf32>
    %380 = arith.mulf %379, %374 : vector<16x128xf32>
    %381 = arith.addf %374, %380 : vector<16x128xf32>
    %cst_126 = arith.constant 0.797884583 : f32
    %382 = vector.broadcast %cst_126 : f32 to vector<16x128xf32>
    %383 = arith.mulf %382, %381 : vector<16x128xf32>
    %384 = math.tanh %383 : vector<16x128xf32>
    %cst_127 = arith.constant 1.000000e+00 : f32
    %385 = vector.broadcast %cst_127 : f32 to vector<16x128xf32>
    %386 = arith.addf %385, %384 : vector<16x128xf32>
    %387 = arith.mulf %376, %386 : vector<16x128xf32>
    %c504 = arith.constant 504 : index
    %c0_128 = arith.constant 0 : index
    %388 = vector.load %arg3[%c504, %c0_128] : memref<632x32xf32, #tpu.memory_space<vmem>>, vector<128x32xf32>
    %cst_129 = arith.constant dense<0.000000e+00> : vector<16x32xf32>
    %389 = tpu.matmul %387, %388, %cst_129 {dimension_numbers = #tpu.dot_dimension_numbers<[1], [0], [0], [1], [0, 0, 1, 1], [], []>} : vector<16x128xf32>, vector<128x32xf32>, vector<16x32xf32> -> vector<16x32xf32>
    %390 = arith.addf %345, %389 : vector<16x32xf32>
    %c117 = arith.constant 117 : index
    %c0_130 = arith.constant 0 : index
    %391 = vector.load %arg3[%c117, %c0_130] : memref<632x32xf32, #tpu.memory_space<vmem>>, vector<1x32xf32>
    %392 = vector.broadcast %391 : vector<1x32xf32> to vector<16x32xf32>
    %393 = arith.addf %390, %392 : vector<16x32xf32>
    %c98 = arith.constant 98 : index
    %c0_131 = arith.constant 0 : index
    %394 = vector.load %arg3[%c98, %c0_131] : memref<632x32xf32, #tpu.memory_space<vmem>>, vector<1x32xf32>
    %c99 = arith.constant 99 : index
    %c0_132 = arith.constant 0 : index
    %395 = vector.load %arg3[%c99, %c0_132] : memref<632x32xf32, #tpu.memory_space<vmem>>, vector<1x32xf32>
    %cst_133 = arith.constant dense<0.000000e+00> : vector<16xf32>
    %396 = vector.multi_reduction <add>, %393, %cst_133 [1] : vector<16x32xf32> to vector<16xf32>
    %397 = vector.shape_cast %396 : vector<16xf32> to vector<16x1xf32>
    %cst_134 = arith.constant 3.200000e+01 : f32
    %398 = vector.broadcast %cst_134 : f32 to vector<16x1xf32>
    %399 = arith.divf %397, %398 : vector<16x1xf32>
    %400 = vector.broadcast %399 : vector<16x1xf32> to vector<16x32xf32>
    %401 = arith.subf %393, %400 : vector<16x32xf32>
    %402 = arith.mulf %401, %401 : vector<16x32xf32>
    %cst_135 = arith.constant dense<0.000000e+00> : vector<16xf32>
    %403 = vector.multi_reduction <add>, %402, %cst_135 [1] : vector<16x32xf32> to vector<16xf32>
    %404 = vector.shape_cast %403 : vector<16xf32> to vector<16x1xf32>
    %cst_136 = arith.constant 3.200000e+01 : f32
    %405 = vector.broadcast %cst_136 : f32 to vector<16x1xf32>
    %406 = arith.divf %404, %405 : vector<16x1xf32>
    %407 = vector.broadcast %399 : vector<16x1xf32> to vector<16x32xf32>
    %408 = arith.subf %393, %407 : vector<16x32xf32>
    %cst_137 = arith.constant 9.99999974E-6 : f32
    %409 = vector.broadcast %cst_137 : f32 to vector<16x1xf32>
    %410 = arith.addf %406, %409 : vector<16x1xf32>
    %411 = math.rsqrt %410 : vector<16x1xf32>
    %412 = vector.broadcast %411 : vector<16x1xf32> to vector<16x32xf32>
    %413 = arith.mulf %408, %412 : vector<16x32xf32>
    %414 = vector.broadcast %394 : vector<1x32xf32> to vector<16x32xf32>
    %415 = arith.mulf %413, %414 : vector<16x32xf32>
    %416 = vector.broadcast %395 : vector<1x32xf32> to vector<16x32xf32>
    %417 = arith.addf %415, %416 : vector<16x32xf32>
    %418 = vector.extract_strided_slice %417 {offsets = [8, 0], sizes = [8, 32], strides = [1, 1]} : vector<16x32xf32> to vector<8x32xf32>
    %c160 = arith.constant 160 : index
    %c0_138 = arith.constant 0 : index
    %419 = vector.load %arg5[%c160, %c0_138] : memref<168x8xf32, #tpu.memory_space<vmem>>, vector<1x8xf32>
    %420 = vector.extract_strided_slice %418 {offsets = [0, 0], sizes = [1, 32], strides = [1, 1]} : vector<8x32xf32> to vector<1x32xf32>
    %c0_139 = arith.constant 0 : index
    %c0_140 = arith.constant 0 : index
    %421 = vector.load %arg5[%c0_139, %c0_140] : memref<168x8xf32, #tpu.memory_space<vmem>>, vector<32x8xf32>
    %cst_141 = arith.constant dense<0.000000e+00> : vector<1x8xf32>
    %422 = tpu.matmul %420, %421, %cst_141 {dimension_numbers = #tpu.dot_dimension_numbers<[1], [0], [0], [1], [0, 0, 1, 1], [], []>} : vector<1x32xf32>, vector<32x8xf32>, vector<1x8xf32> -> vector<1x8xf32>
    %423 = arith.addf %419, %422 : vector<1x8xf32>
    %424 = vector.extract_strided_slice %418 {offsets = [1, 0], sizes = [1, 32], strides = [1, 1]} : vector<8x32xf32> to vector<1x32xf32>
    %c32_142 = arith.constant 32 : index
    %c0_143 = arith.constant 0 : index
    %425 = vector.load %arg5[%c32_142, %c0_143] : memref<168x8xf32, #tpu.memory_space<vmem>>, vector<32x8xf32>
    %cst_144 = arith.constant dense<0.000000e+00> : vector<1x8xf32>
    %426 = tpu.matmul %424, %425, %cst_144 {dimension_numbers = #tpu.dot_dimension_numbers<[1], [0], [0], [1], [0, 0, 1, 1], [], []>} : vector<1x32xf32>, vector<32x8xf32>, vector<1x8xf32> -> vector<1x8xf32>
    %427 = arith.addf %423, %426 : vector<1x8xf32>
    %428 = vector.extract_strided_slice %418 {offsets = [2, 0], sizes = [1, 32], strides = [1, 1]} : vector<8x32xf32> to vector<1x32xf32>
    %c64 = arith.constant 64 : index
    %c0_145 = arith.constant 0 : index
    %429 = vector.load %arg5[%c64, %c0_145] : memref<168x8xf32, #tpu.memory_space<vmem>>, vector<32x8xf32>
    %cst_146 = arith.constant dense<0.000000e+00> : vector<1x8xf32>
    %430 = tpu.matmul %428, %429, %cst_146 {dimension_numbers = #tpu.dot_dimension_numbers<[1], [0], [0], [1], [0, 0, 1, 1], [], []>} : vector<1x32xf32>, vector<32x8xf32>, vector<1x8xf32> -> vector<1x8xf32>
    %431 = arith.addf %427, %430 : vector<1x8xf32>
    %432 = vector.extract_strided_slice %418 {offsets = [3, 0], sizes = [1, 32], strides = [1, 1]} : vector<8x32xf32> to vector<1x32xf32>
    %c96_147 = arith.constant 96 : index
    %c0_148 = arith.constant 0 : index
    %433 = vector.load %arg5[%c96_147, %c0_148] : memref<168x8xf32, #tpu.memory_space<vmem>>, vector<32x8xf32>
    %cst_149 = arith.constant dense<0.000000e+00> : vector<1x8xf32>
    %434 = tpu.matmul %432, %433, %cst_149 {dimension_numbers = #tpu.dot_dimension_numbers<[1], [0], [0], [1], [0, 0, 1, 1], [], []>} : vector<1x32xf32>, vector<32x8xf32>, vector<1x8xf32> -> vector<1x8xf32>
    %435 = arith.addf %431, %434 : vector<1x8xf32>
    %436 = vector.extract_strided_slice %418 {offsets = [4, 0], sizes = [1, 32], strides = [1, 1]} : vector<8x32xf32> to vector<1x32xf32>
    %c128 = arith.constant 128 : index
    %c0_150 = arith.constant 0 : index
    %437 = vector.load %arg5[%c128, %c0_150] : memref<168x8xf32, #tpu.memory_space<vmem>>, vector<32x8xf32>
    %cst_151 = arith.constant dense<0.000000e+00> : vector<1x8xf32>
    %438 = tpu.matmul %436, %437, %cst_151 {dimension_numbers = #tpu.dot_dimension_numbers<[1], [0], [0], [1], [0, 0, 1, 1], [], []>} : vector<1x32xf32>, vector<32x8xf32>, vector<1x8xf32> -> vector<1x8xf32>
    %439 = arith.addf %435, %438 : vector<1x8xf32>
    %c0_152 = arith.constant 0 : index
    %c1 = arith.constant 1 : index
    %c0_153 = arith.constant 0 : index
    %440 = vector.load %arg2[%c0_152, %c1, %c0_153] : memref<1x2x8xf32, #tpu.memory_space<vmem>>, vector<1x1x8xf32>
    %441 = vector.shape_cast %440 : vector<1x1x8xf32> to vector<1x8xf32>
    %442 = arith.mulf %439, %441 : vector<1x8xf32>
    %c0_154 = arith.constant 0 : index
    %c0_155 = arith.constant 0 : index
    %c0_156 = arith.constant 0 : index
    %443 = vector.load %arg2[%c0_154, %c0_155, %c0_156] : memref<1x2x8xf32, #tpu.memory_space<vmem>>, vector<1x1x8xf32>
    %444 = vector.shape_cast %443 : vector<1x1x8xf32> to vector<1x8xf32>
    %445 = arith.addf %442, %444 : vector<1x8xf32>
    %c0_157 = arith.constant 0 : index
    %c0_158 = arith.constant 0 : index
    %c0_159 = arith.constant 0 : index
    %446 = vector.load %arg6[%c0_157, %c0_158, %c0_159] : memref<1x1x8xf32, #tpu.memory_space<vmem>>, vector<1x1x8xf32>
    %447 = vector.shape_cast %446 : vector<1x1x8xf32> to vector<1x8xf32>
    %448 = vector.shape_cast %445 : vector<1x8xf32> to vector<1x1x8xf32>
    tpu.vector_store %arg6[%c0_157, %c0_158, %c0_159], %448 {strides = array<i32>} : memref<1x1x8xf32, #tpu.memory_space<vmem>>, vector<1x1x8xf32>,
    return
  }
  func.func @transform_0(%arg0: i32) -> (i32, i32, i32) {
    %c0_i32 = arith.constant 0 : i32
    %c0_i32_0 = arith.constant 0 : i32
    %c0_i32_1 = arith.constant 0 : i32
    return %arg0, %c0_i32, %c0_i32_0 : i32, i32, i32
  }
  func.func @transform_1(%arg0: i32) -> (i32, i32, i32) {
    %c0_i32 = arith.constant 0 : i32
    %c0_i32_0 = arith.constant 0 : i32
    %c0_i32_1 = arith.constant 0 : i32
    return %arg0, %c0_i32, %c0_i32_0 : i32, i32, i32
  }
  func.func @transform_2(%arg0: i32) -> (i32, i32) {
    %c0_i32 = arith.constant 0 : i32
    %c0_i32_0 = arith.constant 0 : i32
    %c0_i32_1 = arith.constant 0 : i32
    return %c0_i32, %c0_i32_0 : i32, i32
  }
  func.func @transform_3(%arg0: i32) -> (i32, i32) {
    %c0_i32 = arith.constant 0 : i32
    %c0_i32_0 = arith.constant 0 : i32
    %c0_i32_1 = arith.constant 0 : i32
    return %c0_i32, %c0_i32_0 : i32, i32
  }
  func.func @transform_4(%arg0: i32) -> (i32, i32) {
    %c0_i32 = arith.constant 0 : i32
    %c0_i32_0 = arith.constant 0 : i32
    %c0_i32_1 = arith.constant 0 : i32
    return %c0_i32, %c0_i32_0 : i32, i32
  }
  func.func @transform_5(%arg0: i32) -> (i32, i32, i32) {
    %c0_i32 = arith.constant 0 : i32
    %c0_i32_0 = arith.constant 0 : i32
    %c0_i32_1 = arith.constant 0 : i32
    return %arg0, %c0_i32, %c0_i32_0 : i32, i32, i32
  }
}

</mosaic_0001>

<llo_original>
// kernel: _forward_impl.1
$region0: #{_forward_impl.1}
  #allocation0 [shape = 'u32[]', space=smem, size = 0x4, offset = 0x4, fixed_abs, tag = 'smem constant byte address 0x4 - core index']
  #allocation1 [shape = 'u32[144,128]{1,0:T(1,128)}', space=vmem, size = 0x12000, scoped, tag = 'internal scratch']
  %s0 = inlined_call_operand.vmem [shape: f32[2,16,40], index: 0, kind: input, shape index: {}]
  %s1 = inlined_call_operand.vmem [shape: f32[2,2,8], index: 1, kind: input, shape index: {}]
  %s2 = inlined_call_operand.vmem [shape: f32[632,32], index: 2, kind: input, shape index: {}]
  %s3 = inlined_call_operand.vmem [shape: f32[80,128], index: 3, kind: input, shape index: {}]
  %s4 = inlined_call_operand.vmem [shape: f32[168,8], index: 4, kind: input, shape index: {}]
  %s5 = inlined_call_operand.hbm [shape: f32[2,1,8], index: 5, kind: output, shape index: {}]
  %s6 = sld [smem:[#allocation0]]
  $region53: #{_forward_impl.1} parent=0
    _
  %s8 = ssub.s32 1, %s6
  %s9 = scalar_select 0, %s8, %s6
  $region1: #{_forward_impl.1} parent=0
    #allocation2 [shape = 'u8[1024]{0}', space=vmem, size = 0x400, scoped, tag = 'output window, operand 0']
    #allocation3 [shape = 's32[2]{0}', space=sflag, size = 0x8, scoped, tag = 'scoped memory for _forward_impl.1']
    %10 = vsyncpa [#allocation3], 0
    %s11 = scalar_lea.sflag [#allocation3], 1
    %12 = vsyncpa %s11, 0
    loop: start=0, step=1, limit=4
    $region2: #{_forward_impl.1} parent=1 // loop_pre_header
      _
    $region3: #{_forward_impl.1} parent=1 // loop_header
      %s14 = sphi 0, %s18
      %p15 = scmp.ge.s32.totalorder %s14, 4
      %s24 = sphi 0, %s26
      %s27 = sphi 0, %s24
      %s28 = sphi 0, %s27
      %s44 = sphi 0, %s28
      %s50 = sphi 0, %s52
      %s53 = sphi 0, %s50
      %s54 = sphi 0, %s53
      %s70 = sphi 0, %s54
      %s74 = sphi 0, %s74
      %s76 = sphi 0, %s74
      %s77 = sphi 0, %s76
      %s91 = sphi 0, %s77
      %s95 = sphi 0, %s95
      %s97 = sphi 0, %s95
      %s98 = sphi 0, %s97
      %s112 = sphi 0, %s98
      %s116 = sphi 0, %s116
      %s118 = sphi 0, %s116
      %s119 = sphi 0, %s118
      %s133 = sphi 0, %s119
      %s139 = sphi 0, %s141
      %s142 = sphi 0, %s139
      %s143 = sphi 0, %s142
      %s159 = sphi 0, %s143
    $region4: #{_forward_impl.1} parent=1 // loop_header_branch
      %17 = sbr.rel (%p15) target = $region8
    $region5: #{_forward_impl.1} parent=1 // loop_body
      %s19 = ssub.s32 %s14, 1
      %s20 = ssub.s32 %s14, 2
      %s21 = sadd.s32 %s14, 1
      %s22 = ssub.s32 %s14, %s21
      %p23 = scmp.eq.s32.totalorder %s22, 0
      %s25 = sadd.s32 %s24, 1
      %s26 = scalar_select %p23, %s24, %s25
      %p29 = pneg %p23
      %p30 = scmp.eq.s32.totalorder %s14, 1
      %p31 = por %p29, %p30
      %p32 = scmp.ne.s32.totalorder %s24, %s27
      %p33 = scmp.eq.s32.totalorder %s14, 0
      %p34 = por %p32, %p33
      %p35 = scmp.ne.s32.totalorder %s24, %s27
      %p36 = scmp.eq.s32.totalorder %s19, 1
      %p37 = por %p35, %p36
      %p38 = scmp.ne.s32.totalorder %s27, %s28
      %p39 = scmp.eq.s32.totalorder %s19, 0
      %p40 = por %p38, %p39
      %p41 = scmp.ne.s32.totalorder %s27, %s28
      %p42 = scmp.eq.s32.totalorder %s20, 1
      %p43 = por %p41, %p42
      %p45 = scmp.ne.s32.totalorder %s28, %s44
      %p46 = scmp.eq.s32.totalorder %s20, 0
      %p47 = por %p45, %p46
      %s48 = ssub.s32 %s14, %s21
      %p49 = scmp.eq.s32.totalorder %s48, 0
      %s51 = sadd.s32 %s50, 1
      %s52 = scalar_select %p49, %s50, %s51
      %p55 = pneg %p49
      %p56 = scmp.eq.s32.totalorder %s14, 1
      %p57 = por %p55, %p56
      %p58 = scmp.ne.s32.totalorder %s50, %s53
      %p59 = scmp.eq.s32.totalorder %s14, 0
      %p60 = por %p58, %p59
      %p61 = scmp.ne.s32.totalorder %s50, %s53
      %p62 = scmp.eq.s32.totalorder %s19, 1
      %p63 = por %p61, %p62
      %p64 = scmp.ne.s32.totalorder %s53, %s54
      %p65 = scmp.eq.s32.totalorder %s19, 0
      %p66 = por %p64, %p65
      %p67 = scmp.ne.s32.totalorder %s53, %s54
      %p68 = scmp.eq.s32.totalorder %s20, 1
      %p69 = por %p67, %p68
      %p71 = scmp.ne.s32.totalorder %s54, %s70
      %p72 = scmp.eq.s32.totalorder %s20, 0
      %p73 = por %p71, %p72
      %s75 = sadd.s32 %s74, 1
      %p78 = scmp.eq.s32.totalorder %s14, 1
      %p79 = scmp.ne.s32.totalorder %s74, %s76
      %p80 = scmp.eq.s32.totalorder %s14, 0
      %p81 = por %p79, %p80
      %p82 = scmp.ne.s32.totalorder %s74, %s76
      %p83 = scmp.eq.s32.totalorder %s19, 1
      %p84 = por %p82, %p83
      %p85 = scmp.ne.s32.totalorder %s76, %s77
      %p86 = scmp.eq.s32.totalorder %s19, 0
      %p87 = por %p85, %p86
      %p88 = scmp.ne.s32.totalorder %s76, %s77
      %p89 = scmp.eq.s32.totalorder %s20, 1
      %p90 = por %p88, %p89
      %p92 = scmp.ne.s32.totalorder %s77, %s91
      %p93 = scmp.eq.s32.totalorder %s20, 0
      %p94 = por %p92, %p93
      %s96 = sadd.s32 %s95, 1
      %p99 = scmp.eq.s32.totalorder %s14, 1
      %p100 = scmp.ne.s32.totalorder %s95, %s97
      %p101 = scmp.eq.s32.totalorder %s14, 0
      %p102 = por %p100, %p101
      %p103 = scmp.ne.s32.totalorder %s95, %s97
      %p104 = scmp.eq.s32.totalorder %s19, 1
      %p105 = por %p103, %p104
      %p106 = scmp.ne.s32.totalorder %s97, %s98
      %p107 = scmp.eq.s32.totalorder %s19, 0
      %p108 = por %p106, %p107
      %p109 = scmp.ne.s32.totalorder %s97, %s98
      %p110 = scmp.eq.s32.totalorder %s20, 1
      %p111 = por %p109, %p110
      %p113 = scmp.ne.s32.totalorder %s98, %s112
      %p114 = scmp.eq.s32.totalorder %s20, 0
      %p115 = por %p113, %p114
      %s117 = sadd.s32 %s116, 1
      %p120 = scmp.eq.s32.totalorder %s14, 1
      %p121 = scmp.ne.s32.totalorder %s116, %s118
      %p122 = scmp.eq.s32.totalorder %s14, 0
      %p123 = por %p121, %p122
      %p124 = scmp.ne.s32.totalorder %s116, %s118
      %p125 = scmp.eq.s32.totalorder %s19, 1
      %p126 = por %p124, %p125
      %p127 = scmp.ne.s32.totalorder %s118, %s119
      %p128 = scmp.eq.s32.totalorder %s19, 0
      %p129 = por %p127, %p128
      %p130 = scmp.ne.s32.totalorder %s118, %s119
      %p131 = scmp.eq.s32.totalorder %s20, 1
      %p132 = por %p130, %p131
      %p134 = scmp.ne.s32.totalorder %s119, %s133
      %p135 = scmp.eq.s32.totalorder %s20, 0
      %p136 = por %p134, %p135
      %s137 = ssub.s32 %s14, %s21
      %p138 = scmp.eq.s32.totalorder %s137, 0
      %s140 = sadd.s32 %s139, 1
      %s141 = scalar_select %p138, %s139, %s140
      %p144 = pneg %p138
      %p145 = scmp.eq.s32.totalorder %s14, 1
      %p146 = por %p144, %p145
      %p147 = scmp.ne.s32.totalorder %s139, %s142
      %p148 = scmp.eq.s32.totalorder %s14, 0
      %p149 = por %p147, %p148
      %p150 = scmp.ne.s32.totalorder %s139, %s142
      %p151 = scmp.eq.s32.totalorder %s19, 1
      %p152 = por %p150, %p151
      %p153 = scmp.ne.s32.totalorder %s142, %s143
      %p154 = scmp.eq.s32.totalorder %s19, 0
      %p155 = por %p153, %p154
      %p156 = scmp.ne.s32.totalorder %s142, %s143
      %p157 = scmp.eq.s32.totalorder %s20, 1
      %p158 = por %p156, %p157
      %p160 = scmp.ne.s32.totalorder %s143, %s159
      %p161 = scmp.eq.s32.totalorder %s20, 0
      %p162 = por %p160, %p161
      %p163 = scmp.le.s32.totalorder 1, %s14
      %p164 = scmp.lt.s32.totalorder %s14, 3
      %p165 = pnand %p163, %p164
      %p166 = pneg %p165
      // Predicated region
      $region9: #{_forward_impl.1} parent=5 // pred_check
        _
      $region10: #{_forward_impl.1} parent=5 // pred_check_branch
        %168 = sbr.rel (%p165) target = $region12
      $region11: #{_forward_impl.1} parent=5 // pred_region
        %s169 = ssub.s32 %s14, 1
        // Predicated region
        $region13: #{_forward_impl.1} parent=11 // pred_check
          %p170 = pneg %p87
        $region14: #{_forward_impl.1} parent=11 // pred_check_branch
          %172 = sbr.rel (%p170) target = $region16
        $region15: #{_forward_impl.1} parent=11 // pred_region
          _
        $region16: #{_forward_impl.1} parent=11 // pred_fallthru
          _
        // Predicated region
        $region17: #{_forward_impl.1} parent=11 // pred_check
          %p173 = pneg %p108
        $region18: #{_forward_impl.1} parent=11 // pred_check_branch
          %175 = sbr.rel (%p173) target = $region20
        $region19: #{_forward_impl.1} parent=11 // pred_region
          _
        $region20: #{_forward_impl.1} parent=11 // pred_fallthru
          _
        // Predicated region
        $region21: #{_forward_impl.1} parent=11 // pred_check
          %p176 = pneg %p129
        $region22: #{_forward_impl.1} parent=11 // pred_check_branch
          %178 = sbr.rel (%p176) target = $region24
        $region23: #{_forward_impl.1} parent=11 // pred_region
          _
        $region24: #{_forward_impl.1} parent=11 // pred_fallthru
          _
      $region12: #{_forward_impl.1} parent=5 // pred_fallthru
        _
      %p179 = scmp.lt.s32.totalorder %s14, 2
      // Predicated region
      $region25: #{_forward_impl.1} parent=5 // pred_check
        %p180 = pneg %p179
      $region26: #{_forward_impl.1} parent=5 // pred_check_branch
        %182 = sbr.rel (%p180) target = $region28
      $region27: #{_forward_impl.1} parent=5 // pred_region
        // Predicated region
        $region29: #{_forward_impl.1} parent=27 // pred_check
          %p183 = pneg %p34
        $region30: #{_forward_impl.1} parent=27 // pred_check_branch
          %185 = sbr.rel (%p183) target = $region32
        $region31: #{_forward_impl.1} parent=27 // pred_region
          %p186 = scmp.lt.s32.totalorder %s14, 1
          %s187 = scalar_select %p186, %s14, 1
          %s188 = smul.addr %s187, 2
          %s189 = smul.addr %s188, 8
          %s190 = scalar_lea.vmem %s0, %s189
        $region32: #{_forward_impl.1} parent=27 // pred_fallthru
          _
        // Predicated region
        $region33: #{_forward_impl.1} parent=27 // pred_check
          %p191 = pneg %p60
        $region34: #{_forward_impl.1} parent=27 // pred_check_branch
          %193 = sbr.rel (%p191) target = $region36
        $region35: #{_forward_impl.1} parent=27 // pred_region
          %p194 = scmp.lt.s32.totalorder %s14, 1
          %s195 = scalar_select %p194, %s14, 1
          %s196 = smul.addr %s195, 2
          %s197 = scalar_lea.vmem %s1, %s196
        $region36: #{_forward_impl.1} parent=27 // pred_fallthru
          _
      $region28: #{_forward_impl.1} parent=5 // pred_fallthru
        _
      %p198 = scmp.le.s32.totalorder 1, %s14
      %p199 = scmp.lt.s32.totalorder %s14, 3
      %p200 = pnand %p198, %p199
      %p201 = pneg %p200
      // Predicated region
      $region37: #{_forward_impl.1} parent=5 // pred_check
        _
      $region38: #{_forward_impl.1} parent=5 // pred_check_branch
        %203 = sbr.rel (%p200) target = $region40
      $region39: #{_forward_impl.1} parent=5 // pred_region
        %s204 = ssub.s32 %s14, 1
        %p205 = scmp.lt.s32.totalorder %s19, 1
        %s206 = scalar_select %p205, %s19, 1
        %s207 = smul.addr %s206, 2
        %s208 = smul.addr %s207, 8
        %s209 = scalar_lea.vmem %s0, %s208
        %p210 = pneg %p40
        %p211 = pneg %p37
        %p212 = scmp.lt.s32.totalorder %s19, 1
        %s213 = scalar_select %p212, %s19, 1
        %s214 = smul.addr %s213, 2
        %s215 = scalar_lea.vmem %s1, %s214
        %p216 = pneg %p66
        %p217 = pneg %p63
        %p218 = pneg %p87
        %p219 = pneg %p84
        %p220 = pneg %p108
        %p221 = pneg %p105
        %p222 = pneg %p129
        %p223 = pneg %p126
        %p224 = pneg %p155
        %p225 = pneg %p152
        %s226 = sand.u32 %s142, 1
        %s227 = scalar_lea.sflag [#allocation3], %s226
        %s228 = sand.u32 %s142, 1
        %s229 = scalar_lea.vmem [#allocation2], %s228
        %p230 = scmp.lt.s32.totalorder %s19, 1
        %s231 = scalar_select %p230, %s19, 1
        %s232 = smul.addr %s231, 2
        %s233 = smul.addr %s232, 8
        %s234 = scalar_lea.vmem %s0, %s233
        %p235 = scmp.lt.s32.totalorder %s19, 1
        %s236 = scalar_select %p235, %s19, 1
        %s237 = smul.addr %s236, 2
        %s238 = scalar_lea.vmem %s1, %s237
        %v239 = vld [vmem:[%s234] sm:$0xff]
        %v240 = vld [vmem:[%s234 + $0x8] sm:$0xff]
        %v241 = vld [vmem:[%s2] sm:$0xff]
        %v242 = vld [vmem:[%s2 + $0x8] sm:$0xff]
        %v243 = vld [vmem:[%s2 + $0x10] sm:$0xff]
        %v244 = vld [vmem:[%s2 + $0x18] sm:$0xff]
        %v245 = vld [vmem:[%s2 + $0x20] sm:$0xff]
        %v246 = vld [vmem:[%s2 + $0x60] sm:$0x1]
        %v247 = vlaneseq
        %v248 = vshrl.u32 %v247, 7
        %v249 = vsub.s32 0, %v248
        %v250 = vrot.slane %v246, %v249
        %vm251 = vcmask 326656
        %v253 = vsel %vm251, %v239, 0
        %v256 = vsel %vm251, %v240, 0
        %258 = vmatprep.subr.mxu0 0.0
        %259 = vmatpush1.msra.mxu0 %v241
        %260 = vmatprep.subr.mxu0 0.0
        %261 = vmatpush1.msra.mxu0 %v242
        %262 = vmatprep.subr.mxu0 0.0
        %263 = vmatpush1.msra.mxu0 %v243
        %264 = vmatprep.subr.mxu0 0.0
        %265 = vmatpush1.msra.mxu0 %v244
        %266 = vmatprep.subr.mxu0 0.0
        %267 = vmatpush1.msra.mxu0 %v245
        %268 = vmatprep.subr.mxu0 0.0
        %269 = vmatpush1.msra.mxu0 0.0
        %270 = vmatprep.subr.mxu0 0.0
        %271 = vmatpush1.msra.mxu0 0.0
        %272 = vmatprep.subr.mxu0 0.0
        %273 = vmatpush1.msra.mxu0 0.0
        %274 = vmatprep.subr.mxu0 0.0
        %275 = vmatpush1.msra.mxu0 0.0
        %276 = vmatprep.subr.mxu0 0.0
        %277 = vmatpush1.msra.mxu0 0.0
        %278 = vmatprep.subr.mxu0 0.0
        %279 = vmatpush1.msra.mxu0 0.0
        %280 = vmatprep.subr.mxu0 0.0
        %281 = vmatpush1.msra.mxu0 0.0
        %282 = vmatprep.subr.mxu0 0.0
        %283 = vmatpush1.msra.mxu0 0.0
        %284 = vmatprep.subr.mxu0 0.0
        %285 = vmatpush1.msra.mxu0 0.0
        %286 = vmatprep.subr.mxu0 0.0
        %287 = vmatpush1.msra.mxu0 0.0
        %288 = vmatprep.subr.mxu0 0.0
        %289 = vmatpush1.msra.mxu0 0.0
        %290 = vmatprep.subr.mxu0 0.0
        %291 = vmatpush1.msra.mxu0 0.0
        %292 = vmatprep.subr.mxu0 0.0
        %293 = vmatpush1.msra.mxu0 0.0
        %294 = vmatprep.subr.mxu0 0.0
        %295 = vmatpush1.msra.mxu0 0.0
        %296 = vmatprep.subr.mxu0 0.0
        %297 = vmatpush1.msra.mxu0 0.0
        %298 = vmatprep.subr.mxu0 0.0
        %299 = vmatpush1.msra.mxu0 0.0
        %300 = vmatprep.subr.mxu0 0.0
        %301 = vmatpush1.msra.mxu0 0.0
        %302 = vmatprep.subr.mxu0 0.0
        %303 = vmatpush1.msra.mxu0 0.0
        %304 = vmatprep.subr.mxu0 0.0
        %305 = vmatpush1.msra.mxu0 0.0
        %306 = vmatprep.subr.mxu0 0.0
        %307 = vmatpush1.msra.mxu0 0.0
        %308 = vmatprep.subr.mxu0 0.0
        %309 = vmatpush1.msra.mxu0 0.0
        %310 = vmatprep.subr.mxu0 0.0
        %311 = vmatpush1.msra.mxu0 0.0
        %312 = vmatprep.subr.mxu0 0.0
        %313 = vmatpush1.msra.mxu0 0.0
        %314 = vmatprep.subr.mxu0 0.0
        %315 = vmatpush1.msra.mxu0 0.0
        %316 = vmatprep.subr.mxu0 0.0
        %317 = vmatpush1.msra.mxu0 0.0
        %318 = vmatprep.subr.mxu0 0.0
        %319 = vmatpush1.msra.mxu0 0.0
        %320 = vmatprep.subr.mxu0 0.0
        %321 = vmatpush1.msra.mxu0 0.0
        %322 = vmatprep.mubr.f32.mxu0 0.0
        %323 = vmatmul.mubr.f32.gmra.mrb[0].mxu0 %v253
        %v324 = vpop.f32.mrb[0].mxu0
        %v325 = vadd.f32 %v250, %v324
        %v326 = vpop.f32.mrb[0].mxu0
        %327 = vmatprep.mubr.f32.mxu0 0.0
        %328 = vmatmul.mubr.f32.gmra.mrb[0].mxu0 %v256
        %v329 = vpop.f32.mrb[0].mxu0
        %v330 = vadd.f32 %v250, %v329
        %v331 = vpop.f32.mrb[0].mxu0
        %332 = vdwg.mxu0
        %v333 = vld [vmem:[%s2 + $0x28] sm:$0xff]
        %v334 = vld [vmem:[%s2 + $0x30] sm:$0xff]
        %v335 = vld [vmem:[%s2 + $0x38] sm:$0xff]
        %v336 = vld [vmem:[%s2 + $0x40] sm:$0xff]
        %v337 = vld [vmem:[%s2 + $0x48] sm:$0xff]
        %v338 = vld [vmem:[%s2 + $0x61] sm:$0x1]
        %v339 = vlaneseq
        %v340 = vshrl.u32 %v339, 7
        %v341 = vsub.s32 0, %v340
        %v342 = vrot.slane %v338, %v341
        %343 = vmatprep.subr.mxu0 0.0
        %344 = vmatpush1.msra.mxu0 %v333
        %345 = vmatprep.subr.mxu0 0.0
        %346 = vmatpush1.msra.mxu0 %v334
        %347 = vmatprep.subr.mxu0 0.0
        %348 = vmatpush1.msra.mxu0 %v335
        %349 = vmatprep.subr.mxu0 0.0
        %350 = vmatpush1.msra.mxu0 %v336
        %351 = vmatprep.subr.mxu0 0.0
        %352 = vmatpush1.msra.mxu0 %v337
        %353 = vmatprep.subr.mxu0 0.0
        %354 = vmatpush1.msra.mxu0 0.0
        %355 = vmatprep.subr.mxu0 0.0
        %356 = vmatpush1.msra.mxu0 0.0
        %357 = vmatprep.subr.mxu0 0.0
        %358 = vmatpush1.msra.mxu0 0.0
        %359 = vmatprep.subr.mxu0 0.0
        %360 = vmatpush1.msra.mxu0 0.0
        %361 = vmatprep.subr.mxu0 0.0
        %362 = vmatpush1.msra.mxu0 0.0
        %363 = vmatprep.subr.mxu0 0.0
        %364 = vmatpush1.msra.mxu0 0.0
        %365 = vmatprep.subr.mxu0 0.0
        %366 = vmatpush1.msra.mxu0 0.0
        %367 = vmatprep.subr.mxu0 0.0
        %368 = vmatpush1.msra.mxu0 0.0
        %369 = vmatprep.subr.mxu0 0.0
        %370 = vmatpush1.msra.mxu0 0.0
        %371 = vmatprep.subr.mxu0 0.0
        %372 = vmatpush1.msra.mxu0 0.0
        %373 = vmatprep.subr.mxu0 0.0
        %374 = vmatpush1.msra.mxu0 0.0
        %375 = vmatprep.subr.mxu0 0.0
        %376 = vmatpush1.msra.mxu0 0.0
        %377 = vmatprep.subr.mxu0 0.0
        %378 = vmatpush1.msra.mxu0 0.0
        %379 = vmatprep.subr.mxu0 0.0
        %380 = vmatpush1.msra.mxu0 0.0
        %381 = vmatprep.subr.mxu0 0.0
        %382 = vmatpush1.msra.mxu0 0.0
        %383 = vmatprep.subr.mxu0 0.0
        %384 = vmatpush1.msra.mxu0 0.0
        %385 = vmatprep.subr.mxu0 0.0
        %386 = vmatpush1.msra.mxu0 0.0
        %387 = vmatprep.subr.mxu0 0.0
        %388 = vmatpush1.msra.mxu0 0.0
        %389 = vmatprep.subr.mxu0 0.0
        %390 = vmatpush1.msra.mxu0 0.0
        %391 = vmatprep.subr.mxu0 0.0
        %392 = vmatpush1.msra.mxu0 0.0
        %393 = vmatprep.subr.mxu0 0.0
        %394 = vmatpush1.msra.mxu0 0.0
        %395 = vmatprep.subr.mxu0 0.0
        %396 = vmatpush1.msra.mxu0 0.0
        %397 = vmatprep.subr.mxu0 0.0
        %398 = vmatpush1.msra.mxu0 0.0
        %399 = vmatprep.subr.mxu0 0.0
        %400 = vmatpush1.msra.mxu0 0.0
        %401 = vmatprep.subr.mxu0 0.0
        %402 = vmatpush1.msra.mxu0 0.0
        %403 = vmatprep.subr.mxu0 0.0
        %404 = vmatpush1.msra.mxu0 0.0
        %405 = vmatprep.subr.mxu0 0.0
        %406 = vmatpush1.msra.mxu0 0.0
        %407 = vmatprep.mubr.f32.mxu0 0.0
        %408 = vmatmul.mubr.f32.gmra.mrb[0].mxu0 %v253
        %v409 = vpop.f32.mrb[0].mxu0
        %v410 = vadd.f32 %v342, %v409
        %v411 = vpop.f32.mrb[0].mxu0
        %412 = vmatprep.mubr.f32.mxu0 0.0
        %413 = vmatmul.mubr.f32.gmra.mrb[0].mxu0 %v256
        %v414 = vpop.f32.mrb[0].mxu0
        %v415 = vadd.f32 %v342, %v414
        %v416 = vpop.f32.mrb[0].mxu0
        %417 = vdwg.mxu0
        %v418 = vmax.f32 %v410, 0.0
        %v419 = vmax.f32 %v415, 0.0
        %v420 = vlaneseq
        %v421 = vshrl.u32 %v420, 7
        %v422 = vadd.s32 %v421, 8
        %vm423 = vcmp.lt.s32.totalorder %v421, 8
        %vm424 = vcmp.lt.s32.totalorder %v422, 8
        %v425 = vsel %vm423, %v418, %v325
        %v426 = vsel %vm424, %v419, %v330
        %v427 = vld [vmem:[%s2 + $0x50] sm:$0xff]
        %v428 = vld [vmem:[%s2 + $0x58] sm:$0xff]
        %v429 = vadd.f32 %v425, %v427
        %v430 = vadd.f32 %v426, %v428
        %v431 = vlaneseq
        %v432 = vand.u32 %v431, 127
        %v433 = vsub.s32 %v421, 8
        %v434 = vadd.s32 %v433, 5
        %v435 = vadd.s32 %v421, 5
        %v436 = vsel %vm423, %v421, %v434
        %v437 = vsel %vm424, %v422, %v435
        %vm438 = vcmp.lt.s32.totalorder %v432, 8
        %v439 = vsub.s32 %v432, 8
        %v440 = vadd.s32 %v439, 5
        %v441 = vsel %vm438, %v432, %v440
        %vm442 = vcmp.lt.s32.totalorder %v432, 5
        %vm443 = vcmp.ge.s32.totalorder %v432, 8
        %vm444 = vcmp.lt.s32.totalorder %v432, 13
        %vm445 = vmand %vm443, %vm444
        %vm446 = vmor %vm442, %vm445
        %vm447 = vcmp.le.s32.totalorder %v441, %v436
        %vm448 = vcmp.le.s32.totalorder %v441, %v437
        %vm449 = vmand %vm446, %vm447
        %vm450 = vmand %vm446, %vm448
        %v451 = vsel %vm449, 0.0, -1e+30
        %v452 = vsel %vm450, 0.0, -1e+30
        %vm453 = vcmp.ge.s32.totalorder %v432, 0
        %vm454 = vmand %vm453, %vm438
        %v455 = vsel %vm454, 1, 0
        %v456 = vcvt.s32.f32 %v455
        %vm457 = vcmp.lt.s32.totalorder %v432, 16
        %vm458 = vmand %vm443, %vm457
        %v459 = vsel %vm458, 1, 0
        %v460 = vcvt.s32.f32 %v459
        %vm461 = vcmp.ge.s32.totalorder %v432, 16
        %vm462 = vcmp.lt.s32.totalorder %v432, 24
        %vm463 = vmand %vm461, %vm462
        %v464 = vsel %vm463, 1, 0
        %v465 = vcvt.s32.f32 %v464
        %vm466 = vcmp.ge.s32.totalorder %v432, 24
        %vm467 = vcmp.lt.s32.totalorder %v432, 32
        %vm468 = vmand %vm466, %vm467
        %v469 = vsel %vm468, 1, 0
        %v470 = vcvt.s32.f32 %v469
        %v471 = vld [vmem:[%s2 + $0x64] sm:$0x1]
        %v472 = vld [vmem:[%s2 + $0x65] sm:$0x1]
        %vm473 = vcmask 261120
        %v474 = vsel %vm473, %v429, 0.0
        %475 = vadd.xlane.f32.xlu0 %v474
        %v476 = vpop.xlane.xlu0 %475
        %v477 = vsel %vm473, %v430, 0.0
        %478 = vadd.xlane.f32.xlu0 %v477
        %v479 = vpop.xlane.xlu0 %478
        %v480 = vrcp.pop 32.0
        %v481 = vmul.f32 %v476, %v480
        %v482 = vmul.f32 %v479, %v480
        %v483 = vsub.f32 %v429, %v481
        %v484 = vsub.f32 %v430, %v482
        %v485 = vmul.f32 %v483, %v483
        %v486 = vmul.f32 %v484, %v484
        %v487 = vsel %vm473, %v485, 0.0
        %488 = vadd.xlane.f32.xlu0 %v487
        %v489 = vpop.xlane.xlu0 %488
        %v490 = vsel %vm473, %v486, 0.0
        %491 = vadd.xlane.f32.xlu0 %v490
        %v492 = vpop.xlane.xlu0 %491
        %v493 = vmul.f32 %v489, %v480
        %v494 = vmul.f32 %v492, %v480
        %v495 = vadd.f32 %v493, 1e-05
        %v496 = vadd.f32 %v494, 1e-05
        %v497 = vrsqrt.pop %v495
        %v498 = vrsqrt.pop %v496
        %v499 = vmul.f32 %v483, %v497
        %v500 = vmul.f32 %v484, %v498
        %v501 = vlaneseq
        %v502 = vshrl.u32 %v501, 7
        %v503 = vsub.s32 0, %v502
        %v504 = vrot.slane %v471, %v503
        %v505 = vmul.f32 %v499, %v504
        %v506 = vmul.f32 %v500, %v504
        %v507 = vlaneseq
        %v508 = vshrl.u32 %v507, 7
        %v509 = vsub.s32 0, %v508
        %v510 = vrot.slane %v472, %v509
        %v511 = vadd.f32 %v505, %v510
        %v512 = vadd.f32 %v506, %v510
        %v513 = vld [vmem:[%s2 + $0x78] sm:$0xff]
        %v514 = vld [vmem:[%s2 + $0x80] sm:$0xff]
        %v515 = vld [vmem:[%s2 + $0x88] sm:$0xff]
        %v516 = vld [vmem:[%s2 + $0x90] sm:$0xff]
        %v517 = vld [vmem:[%s2 + $0x66] sm:$0x1]
        %v518 = vlaneseq
        %v519 = vshrl.u32 %v518, 7
        %v520 = vsub.s32 0, %v519
        %v521 = vrot.slane %v517, %v520
        %v523 = vsel %vm473, %v511, 0
        %v526 = vsel %vm473, %v512, 0
        %528 = vmatprep.subr.mxu0 0.0
        %529 = vmatpush1.msra.mxu0 %v513
        %530 = vmatprep.subr.mxu0 0.0
        %531 = vmatpush1.msra.mxu0 %v514
        %532 = vmatprep.subr.mxu0 0.0
        %533 = vmatpush1.msra.mxu0 %v515
        %534 = vmatprep.subr.mxu0 0.0
        %535 = vmatpush1.msra.mxu0 %v516
        %536 = vmatprep.subr.mxu0 0.0
        %537 = vmatpush1.msra.mxu0 0.0
        %538 = vmatprep.subr.mxu0 0.0
        %539 = vmatpush1.msra.mxu0 0.0
        %540 = vmatprep.subr.mxu0 0.0
        %541 = vmatpush1.msra.mxu0 0.0
        %542 = vmatprep.subr.mxu0 0.0
        %543 = vmatpush1.msra.mxu0 0.0
        %544 = vmatprep.subr.mxu0 0.0
        %545 = vmatpush1.msra.mxu0 0.0
        %546 = vmatprep.subr.mxu0 0.0
        %547 = vmatpush1.msra.mxu0 0.0
        %548 = vmatprep.subr.mxu0 0.0
        %549 = vmatpush1.msra.mxu0 0.0
        %550 = vmatprep.subr.mxu0 0.0
        %551 = vmatpush1.msra.mxu0 0.0
        %552 = vmatprep.subr.mxu0 0.0
        %553 = vmatpush1.msra.mxu0 0.0
        %554 = vmatprep.subr.mxu0 0.0
        %555 = vmatpush1.msra.mxu0 0.0
        %556 = vmatprep.subr.mxu0 0.0
        %557 = vmatpush1.msra.mxu0 0.0
        %558 = vmatprep.subr.mxu0 0.0
        %559 = vmatpush1.msra.mxu0 0.0
        %560 = vmatprep.subr.mxu0 0.0
        %561 = vmatpush1.msra.mxu0 0.0
        %562 = vmatprep.subr.mxu0 0.0
        %563 = vmatpush1.msra.mxu0 0.0
        %564 = vmatprep.subr.mxu0 0.0
        %565 = vmatpush1.msra.mxu0 0.0
        %566 = vmatprep.subr.mxu0 0.0
        %567 = vmatpush1.msra.mxu0 0.0
        %568 = vmatprep.subr.mxu0 0.0
        %569 = vmatpush1.msra.mxu0 0.0
        %570 = vmatprep.subr.mxu0 0.0
        %571 = vmatpush1.msra.mxu0 0.0
        %572 = vmatprep.subr.mxu0 0.0
        %573 = vmatpush1.msra.mxu0 0.0
        %574 = vmatprep.subr.mxu0 0.0
        %575 = vmatpush1.msra.mxu0 0.0
        %576 = vmatprep.subr.mxu0 0.0
        %577 = vmatpush1.msra.mxu0 0.0
        %578 = vmatprep.subr.mxu0 0.0
        %579 = vmatpush1.msra.mxu0 0.0
        %580 = vmatprep.subr.mxu0 0.0
        %581 = vmatpush1.msra.mxu0 0.0
        %582 = vmatprep.subr.mxu0 0.0
        %583 = vmatpush1.msra.mxu0 0.0
        %584 = vmatprep.subr.mxu0 0.0
        %585 = vmatpush1.msra.mxu0 0.0
        %586 = vmatprep.subr.mxu0 0.0
        %587 = vmatpush1.msra.mxu0 0.0
        %588 = vmatprep.subr.mxu0 0.0
        %589 = vmatpush1.msra.mxu0 0.0
        %590 = vmatprep.subr.mxu0 0.0
        %591 = vmatpush1.msra.mxu0 0.0
        %592 = vmatprep.mubr.f32.mxu0 0.0
        %593 = vmatmul.mubr.f32.gmra.mrb[0].mxu0 %v523
        %v594 = vpop.f32.mrb[0].mxu0
        %v595 = vadd.f32 %v521, %v594
        %v596 = vpop.f32.mrb[0].mxu0
        %597 = vmatprep.mubr.f32.mxu0 0.0
        %598 = vmatmul.mubr.f32.gmra.mrb[0].mxu0 %v526
        %v599 = vpop.f32.mrb[0].mxu0
        %v600 = vadd.f32 %v521, %v599
        %v601 = vpop.f32.mrb[0].mxu0
        %602 = vdwg.mxu0
        %v603 = vld [vmem:[%s2 + $0x98] sm:$0xff]
        %v604 = vld [vmem:[%s2 + $0xa0] sm:$0xff]
        %v605 = vld [vmem:[%s2 + $0xa8] sm:$0xff]
        %v606 = vld [vmem:[%s2 + $0xb0] sm:$0xff]
        %v607 = vld [vmem:[%s2 + $0x67] sm:$0x1]
        %v608 = vlaneseq
        %v609 = vshrl.u32 %v608, 7
        %v610 = vsub.s32 0, %v609
        %v611 = vrot.slane %v607, %v610
        %612 = vmatprep.subr.mxu0 0.0
        %613 = vmatpush1.msra.mxu0 %v603
        %614 = vmatprep.subr.mxu0 0.0
        %615 = vmatpush1.msra.mxu0 %v604
        %616 = vmatprep.subr.mxu0 0.0
        %617 = vmatpush1.msra.mxu0 %v605
        %618 = vmatprep.subr.mxu0 0.0
        %619 = vmatpush1.msra.mxu0 %v606
        %620 = vmatprep.subr.mxu0 0.0
        %621 = vmatpush1.msra.mxu0 0.0
        %622 = vmatprep.subr.mxu0 0.0
        %623 = vmatpush1.msra.mxu0 0.0
        %624 = vmatprep.subr.mxu0 0.0
        %625 = vmatpush1.msra.mxu0 0.0
        %626 = vmatprep.subr.mxu0 0.0
        %627 = vmatpush1.msra.mxu0 0.0
        %628 = vmatprep.subr.mxu0 0.0
        %629 = vmatpush1.msra.mxu0 0.0
        %630 = vmatprep.subr.mxu0 0.0
        %631 = vmatpush1.msra.mxu0 0.0
        %632 = vmatprep.subr.mxu0 0.0
        %633 = vmatpush1.msra.mxu0 0.0
        %634 = vmatprep.subr.mxu0 0.0
        %635 = vmatpush1.msra.mxu0 0.0
        %636 = vmatprep.subr.mxu0 0.0
        %637 = vmatpush1.msra.mxu0 0.0
        %638 = vmatprep.subr.mxu0 0.0
        %639 = vmatpush1.msra.mxu0 0.0
        %640 = vmatprep.subr.mxu0 0.0
        %641 = vmatpush1.msra.mxu0 0.0
        %642 = vmatprep.subr.mxu0 0.0
        %643 = vmatpush1.msra.mxu0 0.0
        %644 = vmatprep.subr.mxu0 0.0
        %645 = vmatpush1.msra.mxu0 0.0
        %646 = vmatprep.subr.mxu0 0.0
        %647 = vmatpush1.msra.mxu0 0.0
        %648 = vmatprep.subr.mxu0 0.0
        %649 = vmatpush1.msra.mxu0 0.0
        %650 = vmatprep.subr.mxu0 0.0
        %651 = vmatpush1.msra.mxu0 0.0
        %652 = vmatprep.subr.mxu0 0.0
        %653 = vmatpush1.msra.mxu0 0.0
        %654 = vmatprep.subr.mxu0 0.0
        %655 = vmatpush1.msra.mxu0 0.0
        %656 = vmatprep.subr.mxu0 0.0
        %657 = vmatpush1.msra.mxu0 0.0
        %658 = vmatprep.subr.mxu0 0.0
        %659 = vmatpush1.msra.mxu0 0.0
        %660 = vmatprep.subr.mxu0 0.0
        %661 = vmatpush1.msra.mxu0 0.0
        %662 = vmatprep.subr.mxu0 0.0
        %663 = vmatpush1.msra.mxu0 0.0
        %664 = vmatprep.subr.mxu0 0.0
        %665 = vmatpush1.msra.mxu0 0.0
        %666 = vmatprep.subr.mxu0 0.0
        %667 = vmatpush1.msra.mxu0 0.0
        %668 = vmatprep.subr.mxu0 0.0
        %669 = vmatpush1.msra.mxu0 0.0
        %670 = vmatprep.subr.mxu0 0.0
        %671 = vmatpush1.msra.mxu0 0.0
        %672 = vmatprep.subr.mxu0 0.0
        %673 = vmatpush1.msra.mxu0 0.0
        %674 = vmatprep.subr.mxu0 0.0
        %675 = vmatpush1.msra.mxu0 0.0
        %676 = vmatprep.mubr.f32.mxu0 0.0
        %677 = vmatmul.mubr.f32.gmra.mrb[0].mxu0 %v523
        %v678 = vpop.f32.mrb[0].mxu0
        %v679 = vadd.f32 %v611, %v678
        %v680 = vpop.f32.mrb[0].mxu0
        %681 = vmatprep.mubr.f32.mxu0 0.0
        %682 = vmatmul.mubr.f32.gmra.mrb[0].mxu0 %v526
        %v683 = vpop.f32.mrb[0].mxu0
        %v684 = vadd.f32 %v611, %v683
        %v685 = vpop.f32.mrb[0].mxu0
        %686 = vdwg.mxu0
        %v687 = vld [vmem:[%s2 + $0xb8] sm:$0xff]
        %v688 = vld [vmem:[%s2 + $0xc0] sm:$0xff]
        %v689 = vld [vmem:[%s2 + $0xc8] sm:$0xff]
        %v690 = vld [vmem:[%s2 + $0xd0] sm:$0xff]
        %v691 = vld [vmem:[%s2 + $0x68] sm:$0x1]
        %v692 = vlaneseq
        %v693 = vshrl.u32 %v692, 7
        %v694 = vsub.s32 0, %v693
        %v695 = vrot.slane %v691, %v694
        %696 = vmatprep.subr.mxu0 0.0
        %697 = vmatpush1.msra.mxu0 %v687
        %698 = vmatprep.subr.mxu0 0.0
        %699 = vmatpush1.msra.mxu0 %v688
        %700 = vmatprep.subr.mxu0 0.0
        %701 = vmatpush1.msra.mxu0 %v689
        %702 = vmatprep.subr.mxu0 0.0
        %703 = vmatpush1.msra.mxu0 %v690
        %704 = vmatprep.subr.mxu0 0.0
        %705 = vmatpush1.msra.mxu0 0.0
        %706 = vmatprep.subr.mxu0 0.0
        %707 = vmatpush1.msra.mxu0 0.0
        %708 = vmatprep.subr.mxu0 0.0
        %709 = vmatpush1.msra.mxu0 0.0
        %710 = vmatprep.subr.mxu0 0.0
        %711 = vmatpush1.msra.mxu0 0.0
        %712 = vmatprep.subr.mxu0 0.0
        %713 = vmatpush1.msra.mxu0 0.0
        %714 = vmatprep.subr.mxu0 0.0
        %715 = vmatpush1.msra.mxu0 0.0
        %716 = vmatprep.subr.mxu0 0.0
        %717 = vmatpush1.msra.mxu0 0.0
        %718 = vmatprep.subr.mxu0 0.0
        %719 = vmatpush1.msra.mxu0 0.0
        %720 = vmatprep.subr.mxu0 0.0
        %721 = vmatpush1.msra.mxu0 0.0
        %722 = vmatprep.subr.mxu0 0.0
        %723 = vmatpush1.msra.mxu0 0.0
        %724 = vmatprep.subr.mxu0 0.0
        %725 = vmatpush1.msra.mxu0 0.0
        %726 = vmatprep.subr.mxu0 0.0
        %727 = vmatpush1.msra.mxu0 0.0
        %728 = vmatprep.subr.mxu0 0.0
        %729 = vmatpush1.msra.mxu0 0.0
        %730 = vmatprep.subr.mxu0 0.0
        %731 = vmatpush1.msra.mxu0 0.0
        %732 = vmatprep.subr.mxu0 0.0
        %733 = vmatpush1.msra.mxu0 0.0
        %734 = vmatprep.subr.mxu0 0.0
        %735 = vmatpush1.msra.mxu0 0.0
        %736 = vmatprep.subr.mxu0 0.0
        %737 = vmatpush1.msra.mxu0 0.0
        %738 = vmatprep.subr.mxu0 0.0
        %739 = vmatpush1.msra.mxu0 0.0
        %740 = vmatprep.subr.mxu0 0.0
        %741 = vmatpush1.msra.mxu0 0.0
        %742 = vmatprep.subr.mxu0 0.0
        %743 = vmatpush1.msra.mxu0 0.0
        %744 = vmatprep.subr.mxu0 0.0
        %745 = vmatpush1.msra.mxu0 0.0
        %746 = vmatprep.subr.mxu0 0.0
        %747 = vmatpush1.msra.mxu0 0.0
        %748 = vmatprep.subr.mxu0 0.0
        %749 = vmatpush1.msra.mxu0 0.0
        %750 = vmatprep.subr.mxu0 0.0
        %751 = vmatpush1.msra.mxu0 0.0
        %752 = vmatprep.subr.mxu0 0.0
        %753 = vmatpush1.msra.mxu0 0.0
        %754 = vmatprep.subr.mxu0 0.0
        %755 = vmatpush1.msra.mxu0 0.0
        %756 = vmatprep.subr.mxu0 0.0
        %757 = vmatpush1.msra.mxu0 0.0
        %758 = vmatprep.subr.mxu0 0.0
        %759 = vmatpush1.msra.mxu0 0.0
        %760 = vmatprep.mubr.f32.mxu0 0.0
        %761 = vmatmul.mubr.f32.gmra.mrb[0].mxu0 %v523
        %v762 = vpop.f32.mrb[0].mxu0
        %v763 = vadd.f32 %v695, %v762
        %v764 = vpop.f32.mrb[0].mxu0
        %765 = vmatprep.mubr.f32.mxu0 0.0
        %766 = vmatmul.mubr.f32.gmra.mrb[0].mxu0 %v526
        %v767 = vpop.f32.mrb[0].mxu0
        %v768 = vadd.f32 %v695, %v767
        %v769 = vpop.f32.mrb[0].mxu0
        %770 = vdwg.mxu0
        %v771 = vmul.f32 %v595, %v456
        %v772 = vmul.f32 %v600, %v456
        %v774 = vsel %vm473, %v771, 0
        %v777 = vsel %vm473, %v772, 0
        %v780 = vsel %vm473, %v679, 0
        %v783 = vsel %vm473, %v684, 0
        %785 = vmatprep.subr.mxu0 0.0
        %786 = vmatpush1.xpose.msra.mxu0 %v780
        %787 = vmatprep.subr.mxu0 0.0
        %788 = vmatpush1.xpose.msra.mxu0 %v783
        %789 = vmatprep.subr.mxu0 0.0
        %790 = vmatpush1.xpose.msra.mxu0 0.0
        %791 = vmatprep.subr.mxu0 0.0
        %792 = vmatpush1.xpose.msra.mxu0 0.0
        %793 = vmatprep.subr.mxu0 0.0
        %794 = vmatpush1.xpose.msra.mxu0 0.0
        %795 = vmatprep.subr.mxu0 0.0
        %796 = vmatpush1.xpose.msra.mxu0 0.0
        %797 = vmatprep.subr.mxu0 0.0
        %798 = vmatpush1.xpose.msra.mxu0 0.0
        %799 = vmatprep.subr.mxu0 0.0
        %800 = vmatpush1.xpose.msra.mxu0 0.0
        %801 = vmatprep.subr.mxu0 0.0
        %802 = vmatpush1.xpose.msra.mxu0 0.0
        %803 = vmatprep.subr.mxu0 0.0
        %804 = vmatpush1.xpose.msra.mxu0 0.0
        %805 = vmatprep.subr.mxu0 0.0
        %806 = vmatpush1.xpose.msra.mxu0 0.0
        %807 = vmatprep.subr.mxu0 0.0
        %808 = vmatpush1.xpose.msra.mxu0 0.0
        %809 = vmatprep.subr.mxu0 0.0
        %810 = vmatpush1.xpose.msra.mxu0 0.0
        %811 = vmatprep.subr.mxu0 0.0
        %812 = vmatpush1.xpose.msra.mxu0 0.0
        %813 = vmatprep.subr.mxu0 0.0
        %814 = vmatpush1.xpose.msra.mxu0 0.0
        %815 = vmatprep.subr.mxu0 0.0
        %816 = vmatpush1.xpose.msra.mxu0 0.0
        %817 = vmatprep.subr.mxu0 0.0
        %818 = vmatpush1.xpose.msra.mxu0 0.0
        %819 = vmatprep.subr.mxu0 0.0
        %820 = vmatpush1.xpose.msra.mxu0 0.0
        %821 = vmatprep.subr.mxu0 0.0
        %822 = vmatpush1.xpose.msra.mxu0 0.0
        %823 = vmatprep.subr.mxu0 0.0
        %824 = vmatpush1.xpose.msra.mxu0 0.0
        %825 = vmatprep.subr.mxu0 0.0
        %826 = vmatpush1.xpose.msra.mxu0 0.0
        %827 = vmatprep.subr.mxu0 0.0
        %828 = vmatpush1.xpose.msra.mxu0 0.0
        %829 = vmatprep.subr.mxu0 0.0
        %830 = vmatpush1.xpose.msra.mxu0 0.0
        %831 = vmatprep.subr.mxu0 0.0
        %832 = vmatpush1.xpose.msra.mxu0 0.0
        %833 = vmatprep.subr.mxu0 0.0
        %834 = vmatpush1.xpose.msra.mxu0 0.0
        %835 = vmatprep.subr.mxu0 0.0
        %836 = vmatpush1.xpose.msra.mxu0 0.0
        %837 = vmatprep.subr.mxu0 0.0
        %838 = vmatpush1.xpose.msra.mxu0 0.0
        %839 = vmatprep.subr.mxu0 0.0
        %840 = vmatpush1.xpose.msra.mxu0 0.0
        %841 = vmatprep.subr.mxu0 0.0
        %842 = vmatpush1.xpose.msra.mxu0 0.0
        %843 = vmatprep.subr.mxu0 0.0
        %844 = vmatpush1.xpose.msra.mxu0 0.0
        %845 = vmatprep.subr.mxu0 0.0
        %846 = vmatpush1.xpose.msra.mxu0 0.0
        %847 = vmatprep.subr.mxu0 0.0
        %848 = vmatpush1.xpose.msra.mxu0 0.0
        %849 = vmatprep.mubr.f32.mxu0 0.0
        %850 = vmatmul.mubr.f32.gmra.mrb[0].mxu0 %v774
        %v851 = vpop.f32.mrb[0].mxu0
        %v852 = vadd.f32 %v451, %v851
        %v853 = vpop.f32.mrb[0].mxu0
        %854 = vmatprep.mubr.f32.mxu0 0.0
        %855 = vmatmul.mubr.f32.gmra.mrb[0].mxu0 %v777
        %v856 = vpop.f32.mrb[0].mxu0
        %v857 = vadd.f32 %v452, %v856
        %v858 = vpop.f32.mrb[0].mxu0
        %859 = vdwg.mxu0
        %vm860 = vcmask 130048
        %v861 = vsel %vm860, %v852, -inf
        %862 = vmax.xlane.f32.xlu0 %v861
        %v863 = vpop.xlane.xlu0 %862
        %v864 = vsel %vm860, %v857, -inf
        %865 = vmax.xlane.f32.xlu0 %v864
        %v866 = vpop.xlane.xlu0 %865
        %v867 = vsub.f32 %v852, %v863
        %v868 = vsub.f32 %v857, %v866
        %v869 = vmul.f32 %v867, 1.442695
        %v870 = vpow.pop %v869
        %v871 = vmul.f32 %v868, 1.442695
        %v872 = vpow.pop %v871
        %v873 = vsel %vm860, %v870, 0.0
        %874 = vadd.xlane.f32.xlu0 %v873
        %v875 = vpop.xlane.xlu0 %874
        %v876 = vsel %vm860, %v872, 0.0
        %877 = vadd.xlane.f32.xlu0 %v876
        %v878 = vpop.xlane.xlu0 %877
        %v879 = vrcp.pop %v875
        %v880 = vrcp.pop %v878
        %v881 = vmul.f32 %v870, %v879
        %v882 = vmul.f32 %v872, %v880
        %v883 = vmul.f32 %v763, %v456
        %v884 = vmul.f32 %v768, %v456
        %v885 = vmul.f32 %v595, %v460
        %v886 = vmul.f32 %v600, %v460
        %v888 = vsel %vm473, %v885, 0
        %v891 = vsel %vm473, %v886, 0
        %893 = vmatprep.subr.mxu0 0.0
        %894 = vmatpush1.xpose.msra.mxu0 %v780
        %895 = vmatprep.subr.mxu0 0.0
        %896 = vmatpush1.xpose.msra.mxu0 %v783
        %897 = vmatprep.subr.mxu0 0.0
        %898 = vmatpush1.xpose.msra.mxu0 0.0
        %899 = vmatprep.subr.mxu0 0.0
        %900 = vmatpush1.xpose.msra.mxu0 0.0
        %901 = vmatprep.subr.mxu0 0.0
        %902 = vmatpush1.xpose.msra.mxu0 0.0
        %903 = vmatprep.subr.mxu0 0.0
        %904 = vmatpush1.xpose.msra.mxu0 0.0
        %905 = vmatprep.subr.mxu0 0.0
        %906 = vmatpush1.xpose.msra.mxu0 0.0
        %907 = vmatprep.subr.mxu0 0.0
        %908 = vmatpush1.xpose.msra.mxu0 0.0
        %909 = vmatprep.subr.mxu0 0.0
        %910 = vmatpush1.xpose.msra.mxu0 0.0
        %911 = vmatprep.subr.mxu0 0.0
        %912 = vmatpush1.xpose.msra.mxu0 0.0
        %913 = vmatprep.subr.mxu0 0.0
        %914 = vmatpush1.xpose.msra.mxu0 0.0
        %915 = vmatprep.subr.mxu0 0.0
        %916 = vmatpush1.xpose.msra.mxu0 0.0
        %917 = vmatprep.subr.mxu0 0.0
        %918 = vmatpush1.xpose.msra.mxu0 0.0
        %919 = vmatprep.subr.mxu0 0.0
        %920 = vmatpush1.xpose.msra.mxu0 0.0
        %921 = vmatprep.subr.mxu0 0.0
        %922 = vmatpush1.xpose.msra.mxu0 0.0
        %923 = vmatprep.subr.mxu0 0.0
        %924 = vmatpush1.xpose.msra.mxu0 0.0
        %925 = vmatprep.subr.mxu0 0.0
        %926 = vmatpush1.xpose.msra.mxu0 0.0
        %927 = vmatprep.subr.mxu0 0.0
        %928 = vmatpush1.xpose.msra.mxu0 0.0
        %929 = vmatprep.subr.mxu0 0.0
        %930 = vmatpush1.xpose.msra.mxu0 0.0
        %931 = vmatprep.subr.mxu0 0.0
        %932 = vmatpush1.xpose.msra.mxu0 0.0
        %933 = vmatprep.subr.mxu0 0.0
        %934 = vmatpush1.xpose.msra.mxu0 0.0
        %935 = vmatprep.subr.mxu0 0.0
        %936 = vmatpush1.xpose.msra.mxu0 0.0
        %937 = vmatprep.subr.mxu0 0.0
        %938 = vmatpush1.xpose.msra.mxu0 0.0
        %939 = vmatprep.subr.mxu0 0.0
        %940 = vmatpush1.xpose.msra.mxu0 0.0
        %941 = vmatprep.subr.mxu0 0.0
        %942 = vmatpush1.xpose.msra.mxu0 0.0
        %943 = vmatprep.subr.mxu0 0.0
        %944 = vmatpush1.xpose.msra.mxu0 0.0
        %945 = vmatprep.subr.mxu0 0.0
        %946 = vmatpush1.xpose.msra.mxu0 0.0
        %947 = vmatprep.subr.mxu0 0.0
        %948 = vmatpush1.xpose.msra.mxu0 0.0
        %949 = vmatprep.subr.mxu0 0.0
        %950 = vmatpush1.xpose.msra.mxu0 0.0
        %951 = vmatprep.subr.mxu0 0.0
        %952 = vmatpush1.xpose.msra.mxu0 0.0
        %953 = vmatprep.subr.mxu0 0.0
        %954 = vmatpush1.xpose.msra.mxu0 0.0
        %955 = vmatprep.subr.mxu0 0.0
        %956 = vmatpush1.xpose.msra.mxu0 0.0
        %957 = vmatprep.mubr.f32.mxu0 0.0
        %958 = vmatmul.mubr.f32.gmra.mrb[0].mxu0 %v888
        %v959 = vpop.f32.mrb[0].mxu0
        %v960 = vadd.f32 %v451, %v959
        %v961 = vpop.f32.mrb[0].mxu0
        %962 = vmatprep.mubr.f32.mxu0 0.0
        %963 = vmatmul.mubr.f32.gmra.mrb[0].mxu0 %v891
        %v964 = vpop.f32.mrb[0].mxu0
        %v965 = vadd.f32 %v452, %v964
        %v966 = vpop.f32.mrb[0].mxu0
        %967 = vdwg.mxu0
        %v968 = vsel %vm860, %v960, -inf
        %969 = vmax.xlane.f32.xlu0 %v968
        %v970 = vpop.xlane.xlu0 %969
        %v971 = vsel %vm860, %v965, -inf
        %972 = vmax.xlane.f32.xlu0 %v971
        %v973 = vpop.xlane.xlu0 %972
        %v974 = vsub.f32 %v960, %v970
        %v975 = vsub.f32 %v965, %v973
        %v976 = vmul.f32 %v974, 1.442695
        %v977 = vpow.pop %v976
        %v978 = vmul.f32 %v975, 1.442695
        %v979 = vpow.pop %v978
        %v980 = vsel %vm860, %v977, 0.0
        %981 = vadd.xlane.f32.xlu0 %v980
        %v982 = vpop.xlane.xlu0 %981
        %v983 = vsel %vm860, %v979, 0.0
        %984 = vadd.xlane.f32.xlu0 %v983
        %v985 = vpop.xlane.xlu0 %984
        %v986 = vrcp.pop %v982
        %v987 = vrcp.pop %v985
        %v988 = vmul.f32 %v977, %v986
        %v989 = vmul.f32 %v979, %v987
        %v990 = vmul.f32 %v763, %v460
        %v991 = vmul.f32 %v768, %v460
        %v993 = vsel %vm860, %v988, 0
        %v996 = vsel %vm860, %v989, 0
        %998 = vmatprep.subr.mxu0 0.0
        %999 = vmatpush1.msra.mxu0 %v990
        %1000 = vmatprep.subr.mxu0 0.0
        %1001 = vmatpush1.msra.mxu0 %v991
        %1002 = vmatprep.subr.mxu0 0.0
        %1003 = vmatpush1.msra.mxu0 0.0
        %1004 = vmatprep.subr.mxu0 0.0
        %1005 = vmatpush1.msra.mxu0 0.0
        %1006 = vmatprep.subr.mxu0 0.0
        %1007 = vmatpush1.msra.mxu0 0.0
        %1008 = vmatprep.subr.mxu0 0.0
        %1009 = vmatpush1.msra.mxu0 0.0
        %1010 = vmatprep.subr.mxu0 0.0
        %1011 = vmatpush1.msra.mxu0 0.0
        %1012 = vmatprep.subr.mxu0 0.0
        %1013 = vmatpush1.msra.mxu0 0.0
        %1014 = vmatprep.subr.mxu0 0.0
        %1015 = vmatpush1.msra.mxu0 0.0
        %1016 = vmatprep.subr.mxu0 0.0
        %1017 = vmatpush1.msra.mxu0 0.0
        %1018 = vmatprep.subr.mxu0 0.0
        %1019 = vmatpush1.msra.mxu0 0.0
        %1020 = vmatprep.subr.mxu0 0.0
        %1021 = vmatpush1.msra.mxu0 0.0
        %1022 = vmatprep.subr.mxu0 0.0
        %1023 = vmatpush1.msra.mxu0 0.0
        %1024 = vmatprep.subr.mxu0 0.0
        %1025 = vmatpush1.msra.mxu0 0.0
        %1026 = vmatprep.subr.mxu0 0.0
        %1027 = vmatpush1.msra.mxu0 0.0
        %1028 = vmatprep.subr.mxu0 0.0
        %1029 = vmatpush1.msra.mxu0 0.0
        %1030 = vmatprep.subr.mxu0 0.0
        %1031 = vmatpush1.msra.mxu0 0.0
        %1032 = vmatprep.subr.mxu0 0.0
        %1033 = vmatpush1.msra.mxu0 0.0
        %1034 = vmatprep.subr.mxu0 0.0
        %1035 = vmatpush1.msra.mxu0 0.0
        %1036 = vmatprep.subr.mxu0 0.0
        %1037 = vmatpush1.msra.mxu0 0.0
        %1038 = vmatprep.subr.mxu0 0.0
        %1039 = vmatpush1.msra.mxu0 0.0
        %1040 = vmatprep.subr.mxu0 0.0
        %1041 = vmatpush1.msra.mxu0 0.0
        %1042 = vmatprep.subr.mxu0 0.0
        %1043 = vmatpush1.msra.mxu0 0.0
        %1044 = vmatprep.subr.mxu0 0.0
        %1045 = vmatpush1.msra.mxu0 0.0
        %1046 = vmatprep.subr.mxu0 0.0
        %1047 = vmatpush1.msra.mxu0 0.0
        %1048 = vmatprep.subr.mxu0 0.0
        %1049 = vmatpush1.msra.mxu0 0.0
        %1050 = vmatprep.subr.mxu0 0.0
        %1051 = vmatpush1.msra.mxu0 0.0
        %1052 = vmatprep.subr.mxu0 0.0
        %1053 = vmatpush1.msra.mxu0 0.0
        %1054 = vmatprep.subr.mxu0 0.0
        %1055 = vmatpush1.msra.mxu0 0.0
        %1056 = vmatprep.subr.mxu0 0.0
        %1057 = vmatpush1.msra.mxu0 0.0
        %1058 = vmatprep.subr.mxu0 0.0
        %1059 = vmatpush1.msra.mxu0 0.0
        %1060 = vmatprep.subr.mxu0 0.0
        %1061 = vmatpush1.msra.mxu0 0.0
        %1062 = vmatprep.mubr.f32.mxu0 0.0
        %1063 = vmatmul.mubr.f32.gmra.mrb[0].mxu0 %v993
        %v1064 = vpop.f32.mrb[0].mxu0
        %v1065 = vadd.f32 0.0, %v1064
        %v1066 = vpop.f32.mrb[0].mxu0
        %1067 = vmatprep.mubr.f32.mxu0 0.0
        %1068 = vmatmul.mubr.f32.gmra.mrb[0].mxu0 %v996
        %v1069 = vpop.f32.mrb[0].mxu0
        %v1070 = vadd.f32 0.0, %v1069
        %v1071 = vpop.f32.mrb[0].mxu0
        %1072 = vdwg.mxu0
        %v1074 = vsel %vm860, %v881, 0
        %v1077 = vsel %vm860, %v882, 0
        %1079 = vmatprep.subr.mxu0 0.0
        %1080 = vmatpush1.msra.mxu0 %v883
        %1081 = vmatprep.subr.mxu0 0.0
        %1082 = vmatpush1.msra.mxu0 %v884
        %1083 = vmatprep.subr.mxu0 0.0
        %1084 = vmatpush1.msra.mxu0 0.0
        %1085 = vmatprep.subr.mxu0 0.0
        %1086 = vmatpush1.msra.mxu0 0.0
        %1087 = vmatprep.subr.mxu0 0.0
        %1088 = vmatpush1.msra.mxu0 0.0
        %1089 = vmatprep.subr.mxu0 0.0
        %1090 = vmatpush1.msra.mxu0 0.0
        %1091 = vmatprep.subr.mxu0 0.0
        %1092 = vmatpush1.msra.mxu0 0.0
        %1093 = vmatprep.subr.mxu0 0.0
        %1094 = vmatpush1.msra.mxu0 0.0
        %1095 = vmatprep.subr.mxu0 0.0
        %1096 = vmatpush1.msra.mxu0 0.0
        %1097 = vmatprep.subr.mxu0 0.0
        %1098 = vmatpush1.msra.mxu0 0.0
        %1099 = vmatprep.subr.mxu0 0.0
        %1100 = vmatpush1.msra.mxu0 0.0
        %1101 = vmatprep.subr.mxu0 0.0
        %1102 = vmatpush1.msra.mxu0 0.0
        %1103 = vmatprep.subr.mxu0 0.0
        %1104 = vmatpush1.msra.mxu0 0.0
        %1105 = vmatprep.subr.mxu0 0.0
        %1106 = vmatpush1.msra.mxu0 0.0
        %1107 = vmatprep.subr.mxu0 0.0
        %1108 = vmatpush1.msra.mxu0 0.0
        %1109 = vmatprep.subr.mxu0 0.0
        %1110 = vmatpush1.msra.mxu0 0.0
        %1111 = vmatprep.subr.mxu0 0.0
        %1112 = vmatpush1.msra.mxu0 0.0
        %1113 = vmatprep.subr.mxu0 0.0
        %1114 = vmatpush1.msra.mxu0 0.0
        %1115 = vmatprep.subr.mxu0 0.0
        %1116 = vmatpush1.msra.mxu0 0.0
        %1117 = vmatprep.subr.mxu0 0.0
        %1118 = vmatpush1.msra.mxu0 0.0
        %1119 = vmatprep.subr.mxu0 0.0
        %1120 = vmatpush1.msra.mxu0 0.0
        %1121 = vmatprep.subr.mxu0 0.0
        %1122 = vmatpush1.msra.mxu0 0.0
        %1123 = vmatprep.subr.mxu0 0.0
        %1124 = vmatpush1.msra.mxu0 0.0
        %1125 = vmatprep.subr.mxu0 0.0
        %1126 = vmatpush1.msra.mxu0 0.0
        %1127 = vmatprep.subr.mxu0 0.0
        %1128 = vmatpush1.msra.mxu0 0.0
        %1129 = vmatprep.subr.mxu0 0.0
        %1130 = vmatpush1.msra.mxu0 0.0
        %1131 = vmatprep.subr.mxu0 0.0
        %1132 = vmatpush1.msra.mxu0 0.0
        %1133 = vmatprep.subr.mxu0 0.0
        %1134 = vmatpush1.msra.mxu0 0.0
        %1135 = vmatprep.subr.mxu0 0.0
        %1136 = vmatpush1.msra.mxu0 0.0
        %1137 = vmatprep.subr.mxu0 0.0
        %1138 = vmatpush1.msra.mxu0 0.0
        %1139 = vmatprep.subr.mxu0 0.0
        %1140 = vmatpush1.msra.mxu0 0.0
        %1141 = vmatprep.subr.mxu0 0.0
        %1142 = vmatpush1.msra.mxu0 0.0
        %1143 = vmatprep.mubr.f32.mxu0 0.0
        %1144 = vmatmul.mubr.f32.gmra.mrb[0].mxu0 %v1074
        %v1145 = vpop.f32.mrb[0].mxu0
        %v1146 = vadd.f32 %v1065, %v1145
        %v1147 = vpop.f32.mrb[0].mxu0
        %1148 = vmatprep.mubr.f32.mxu0 0.0
        %1149 = vmatmul.mubr.f32.gmra.mrb[0].mxu0 %v1077
        %v1150 = vpop.f32.mrb[0].mxu0
        %v1151 = vadd.f32 %v1070, %v1150
        %v1152 = vpop.f32.mrb[0].mxu0
        %1153 = vdwg.mxu0
        %v1154 = vmul.f32 %v595, %v465
        %v1155 = vmul.f32 %v600, %v465
        %v1157 = vsel %vm473, %v1154, 0
        %v1160 = vsel %vm473, %v1155, 0
        %1162 = vmatprep.subr.mxu0 0.0
        %1163 = vmatpush1.xpose.msra.mxu0 %v780
        %1164 = vmatprep.subr.mxu0 0.0
        %1165 = vmatpush1.xpose.msra.mxu0 %v783
        %1166 = vmatprep.subr.mxu0 0.0
        %1167 = vmatpush1.xpose.msra.mxu0 0.0
        %1168 = vmatprep.subr.mxu0 0.0
        %1169 = vmatpush1.xpose.msra.mxu0 0.0
        %1170 = vmatprep.subr.mxu0 0.0
        %1171 = vmatpush1.xpose.msra.mxu0 0.0
        %1172 = vmatprep.subr.mxu0 0.0
        %1173 = vmatpush1.xpose.msra.mxu0 0.0
        %1174 = vmatprep.subr.mxu0 0.0
        %1175 = vmatpush1.xpose.msra.mxu0 0.0
        %1176 = vmatprep.subr.mxu0 0.0
        %1177 = vmatpush1.xpose.msra.mxu0 0.0
        %1178 = vmatprep.subr.mxu0 0.0
        %1179 = vmatpush1.xpose.msra.mxu0 0.0
        %1180 = vmatprep.subr.mxu0 0.0
        %1181 = vmatpush1.xpose.msra.mxu0 0.0
        %1182 = vmatprep.subr.mxu0 0.0
        %1183 = vmatpush1.xpose.msra.mxu0 0.0
        %1184 = vmatprep.subr.mxu0 0.0
        %1185 = vmatpush1.xpose.msra.mxu0 0.0
        %1186 = vmatprep.subr.mxu0 0.0
        %1187 = vmatpush1.xpose.msra.mxu0 0.0
        %1188 = vmatprep.subr.mxu0 0.0
        %1189 = vmatpush1.xpose.msra.mxu0 0.0
        %1190 = vmatprep.subr.mxu0 0.0
        %1191 = vmatpush1.xpose.msra.mxu0 0.0
        %1192 = vmatprep.subr.mxu0 0.0
        %1193 = vmatpush1.xpose.msra.mxu0 0.0
        %1194 = vmatprep.subr.mxu0 0.0
        %1195 = vmatpush1.xpose.msra.mxu0 0.0
        %1196 = vmatprep.subr.mxu0 0.0
        %1197 = vmatpush1.xpose.msra.mxu0 0.0
        %1198 = vmatprep.subr.mxu0 0.0
        %1199 = vmatpush1.xpose.msra.mxu0 0.0
        %1200 = vmatprep.subr.mxu0 0.0
        %1201 = vmatpush1.xpose.msra.mxu0 0.0
        %1202 = vmatprep.subr.mxu0 0.0
        %1203 = vmatpush1.xpose.msra.mxu0 0.0
        %1204 = vmatprep.subr.mxu0 0.0
        %1205 = vmatpush1.xpose.msra.mxu0 0.0
        %1206 = vmatprep.subr.mxu0 0.0
        %1207 = vmatpush1.xpose.msra.mxu0 0.0
        %1208 = vmatprep.subr.mxu0 0.0
        %1209 = vmatpush1.xpose.msra.mxu0 0.0
        %1210 = vmatprep.subr.mxu0 0.0
        %1211 = vmatpush1.xpose.msra.mxu0 0.0
        %1212 = vmatprep.subr.mxu0 0.0
        %1213 = vmatpush1.xpose.msra.mxu0 0.0
        %1214 = vmatprep.subr.mxu0 0.0
        %1215 = vmatpush1.xpose.msra.mxu0 0.0
        %1216 = vmatprep.subr.mxu0 0.0
        %1217 = vmatpush1.xpose.msra.mxu0 0.0
        %1218 = vmatprep.subr.mxu0 0.0
        %1219 = vmatpush1.xpose.msra.mxu0 0.0
        %1220 = vmatprep.subr.mxu0 0.0
        %1221 = vmatpush1.xpose.msra.mxu0 0.0
        %1222 = vmatprep.subr.mxu0 0.0
        %1223 = vmatpush1.xpose.msra.mxu0 0.0
        %1224 = vmatprep.subr.mxu0 0.0
        %1225 = vmatpush1.xpose.msra.mxu0 0.0
        %1226 = vmatprep.mubr.f32.mxu0 0.0
        %1227 = vmatmul.mubr.f32.gmra.mrb[0].mxu0 %v1157
        %v1228 = vpop.f32.mrb[0].mxu0
        %v1229 = vadd.f32 %v451, %v1228
        %v1230 = vpop.f32.mrb[0].mxu0
        %1231 = vmatprep.mubr.f32.mxu0 0.0
        %1232 = vmatmul.mubr.f32.gmra.mrb[0].mxu0 %v1160
        %v1233 = vpop.f32.mrb[0].mxu0
        %v1234 = vadd.f32 %v452, %v1233
        %v1235 = vpop.f32.mrb[0].mxu0
        %1236 = vdwg.mxu0
        %v1237 = vsel %vm860, %v1229, -inf
        %1238 = vmax.xlane.f32.xlu0 %v1237
        %v1239 = vpop.xlane.xlu0 %1238
        %v1240 = vsel %vm860, %v1234, -inf
        %1241 = vmax.xlane.f32.xlu0 %v1240
        %v1242 = vpop.xlane.xlu0 %1241
        %v1243 = vsub.f32 %v1229, %v1239
        %v1244 = vsub.f32 %v1234, %v1242
        %v1245 = vmul.f32 %v1243, 1.442695
        %v1246 = vpow.pop %v1245
        %v1247 = vmul.f32 %v1244, 1.442695
        %v1248 = vpow.pop %v1247
        %v1249 = vsel %vm860, %v1246, 0.0
        %1250 = vadd.xlane.f32.xlu0 %v1249
        %v1251 = vpop.xlane.xlu0 %1250
        %v1252 = vsel %vm860, %v1248, 0.0
        %1253 = vadd.xlane.f32.xlu0 %v1252
        %v1254 = vpop.xlane.xlu0 %1253
        %v1255 = vrcp.pop %v1251
        %v1256 = vrcp.pop %v1254
        %v1257 = vmul.f32 %v1246, %v1255
        %v1258 = vmul.f32 %v1248, %v1256
        %v1259 = vmul.f32 %v763, %v465
        %v1260 = vmul.f32 %v768, %v465
        %v1262 = vsel %vm860, %v1257, 0
        %v1265 = vsel %vm860, %v1258, 0
        %1267 = vmatprep.subr.mxu0 0.0
        %1268 = vmatpush1.msra.mxu0 %v1259
        %1269 = vmatprep.subr.mxu0 0.0
        %1270 = vmatpush1.msra.mxu0 %v1260
        %1271 = vmatprep.subr.mxu0 0.0
        %1272 = vmatpush1.msra.mxu0 0.0
        %1273 = vmatprep.subr.mxu0 0.0
        %1274 = vmatpush1.msra.mxu0 0.0
        %1275 = vmatprep.subr.mxu0 0.0
        %1276 = vmatpush1.msra.mxu0 0.0
        %1277 = vmatprep.subr.mxu0 0.0
        %1278 = vmatpush1.msra.mxu0 0.0
        %1279 = vmatprep.subr.mxu0 0.0
        %1280 = vmatpush1.msra.mxu0 0.0
        %1281 = vmatprep.subr.mxu0 0.0
        %1282 = vmatpush1.msra.mxu0 0.0
        %1283 = vmatprep.subr.mxu0 0.0
        %1284 = vmatpush1.msra.mxu0 0.0
        %1285 = vmatprep.subr.mxu0 0.0
        %1286 = vmatpush1.msra.mxu0 0.0
        %1287 = vmatprep.subr.mxu0 0.0
        %1288 = vmatpush1.msra.mxu0 0.0
        %1289 = vmatprep.subr.mxu0 0.0
        %1290 = vmatpush1.msra.mxu0 0.0
        %1291 = vmatprep.subr.mxu0 0.0
        %1292 = vmatpush1.msra.mxu0 0.0
        %1293 = vmatprep.subr.mxu0 0.0
        %1294 = vmatpush1.msra.mxu0 0.0
        %1295 = vmatprep.subr.mxu0 0.0
        %1296 = vmatpush1.msra.mxu0 0.0
        %1297 = vmatprep.subr.mxu0 0.0
        %1298 = vmatpush1.msra.mxu0 0.0
        %1299 = vmatprep.subr.mxu0 0.0
        %1300 = vmatpush1.msra.mxu0 0.0
        %1301 = vmatprep.subr.mxu0 0.0
        %1302 = vmatpush1.msra.mxu0 0.0
        %1303 = vmatprep.subr.mxu0 0.0
        %1304 = vmatpush1.msra.mxu0 0.0
        %1305 = vmatprep.subr.mxu0 0.0
        %1306 = vmatpush1.msra.mxu0 0.0
        %1307 = vmatprep.subr.mxu0 0.0
        %1308 = vmatpush1.msra.mxu0 0.0
        %1309 = vmatprep.subr.mxu0 0.0
        %1310 = vmatpush1.msra.mxu0 0.0
        %1311 = vmatprep.subr.mxu0 0.0
        %1312 = vmatpush1.msra.mxu0 0.0
        %1313 = vmatprep.subr.mxu0 0.0
        %1314 = vmatpush1.msra.mxu0 0.0
        %1315 = vmatprep.subr.mxu0 0.0
        %1316 = vmatpush1.msra.mxu0 0.0
        %1317 = vmatprep.subr.mxu0 0.0
        %1318 = vmatpush1.msra.mxu0 0.0
        %1319 = vmatprep.subr.mxu0 0.0
        %1320 = vmatpush1.msra.mxu0 0.0
        %1321 = vmatprep.subr.mxu0 0.0
        %1322 = vmatpush1.msra.mxu0 0.0
        %1323 = vmatprep.subr.mxu0 0.0
        %1324 = vmatpush1.msra.mxu0 0.0
        %1325 = vmatprep.subr.mxu0 0.0
        %1326 = vmatpush1.msra.mxu0 0.0
        %1327 = vmatprep.subr.mxu0 0.0
        %1328 = vmatpush1.msra.mxu0 0.0
        %1329 = vmatprep.subr.mxu0 0.0
        %1330 = vmatpush1.msra.mxu0 0.0
        %1331 = vmatprep.mubr.f32.mxu0 0.0
        %1332 = vmatmul.mubr.f32.gmra.mrb[0].mxu0 %v1262
        %v1333 = vpop.f32.mrb[0].mxu0
        %v1334 = vadd.f32 0.0, %v1333
        %v1335 = vpop.f32.mrb[0].mxu0
        %1336 = vmatprep.mubr.f32.mxu0 0.0
        %1337 = vmatmul.mubr.f32.gmra.mrb[0].mxu0 %v1265
        %v1338 = vpop.f32.mrb[0].mxu0
        %v1339 = vadd.f32 0.0, %v1338
        %v1340 = vpop.f32.mrb[0].mxu0
        %1341 = vdwg.mxu0
        %v1342 = vadd.f32 %v1146, %v1334
        %v1343 = vadd.f32 %v1151, %v1339
        %v1344 = vmul.f32 %v595, %v470
        %v1345 = vmul.f32 %v600, %v470
        %v1347 = vsel %vm473, %v1344, 0
        %v1350 = vsel %vm473, %v1345, 0
        %1352 = vmatprep.subr.mxu0 0.0
        %1353 = vmatpush1.xpose.msra.mxu0 %v780
        %1354 = vmatprep.subr.mxu0 0.0
        %1355 = vmatpush1.xpose.msra.mxu0 %v783
        %1356 = vmatprep.subr.mxu0 0.0
        %1357 = vmatpush1.xpose.msra.mxu0 0.0
        %1358 = vmatprep.subr.mxu0 0.0
        %1359 = vmatpush1.xpose.msra.mxu0 0.0
        %1360 = vmatprep.subr.mxu0 0.0
        %1361 = vmatpush1.xpose.msra.mxu0 0.0
        %1362 = vmatprep.subr.mxu0 0.0
        %1363 = vmatpush1.xpose.msra.mxu0 0.0
        %1364 = vmatprep.subr.mxu0 0.0
        %1365 = vmatpush1.xpose.msra.mxu0 0.0
        %1366 = vmatprep.subr.mxu0 0.0
        %1367 = vmatpush1.xpose.msra.mxu0 0.0
        %1368 = vmatprep.subr.mxu0 0.0
        %1369 = vmatpush1.xpose.msra.mxu0 0.0
        %1370 = vmatprep.subr.mxu0 0.0
        %1371 = vmatpush1.xpose.msra.mxu0 0.0
        %1372 = vmatprep.subr.mxu0 0.0
        %1373 = vmatpush1.xpose.msra.mxu0 0.0
        %1374 = vmatprep.subr.mxu0 0.0
        %1375 = vmatpush1.xpose.msra.mxu0 0.0
        %1376 = vmatprep.subr.mxu0 0.0
        %1377 = vmatpush1.xpose.msra.mxu0 0.0
        %1378 = vmatprep.subr.mxu0 0.0
        %1379 = vmatpush1.xpose.msra.mxu0 0.0
        %1380 = vmatprep.subr.mxu0 0.0
        %1381 = vmatpush1.xpose.msra.mxu0 0.0
        %1382 = vmatprep.subr.mxu0 0.0
        %1383 = vmatpush1.xpose.msra.mxu0 0.0
        %1384 = vmatprep.subr.mxu0 0.0
        %1385 = vmatpush1.xpose.msra.mxu0 0.0
        %1386 = vmatprep.subr.mxu0 0.0
        %1387 = vmatpush1.xpose.msra.mxu0 0.0
        %1388 = vmatprep.subr.mxu0 0.0
        %1389 = vmatpush1.xpose.msra.mxu0 0.0
        %1390 = vmatprep.subr.mxu0 0.0
        %1391 = vmatpush1.xpose.msra.mxu0 0.0
        %1392 = vmatprep.subr.mxu0 0.0
        %1393 = vmatpush1.xpose.msra.mxu0 0.0
        %1394 = vmatprep.subr.mxu0 0.0
        %1395 = vmatpush1.xpose.msra.mxu0 0.0
        %1396 = vmatprep.subr.mxu0 0.0
        %1397 = vmatpush1.xpose.msra.mxu0 0.0
        %1398 = vmatprep.subr.mxu0 0.0
        %1399 = vmatpush1.xpose.msra.mxu0 0.0
        %1400 = vmatprep.subr.mxu0 0.0
        %1401 = vmatpush1.xpose.msra.mxu0 0.0
        %1402 = vmatprep.subr.mxu0 0.0
        %1403 = vmatpush1.xpose.msra.mxu0 0.0
        %1404 = vmatprep.subr.mxu0 0.0
        %1405 = vmatpush1.xpose.msra.mxu0 0.0
        %1406 = vmatprep.subr.mxu0 0.0
        %1407 = vmatpush1.xpose.msra.mxu0 0.0
        %1408 = vmatprep.subr.mxu0 0.0
        %1409 = vmatpush1.xpose.msra.mxu0 0.0
        %1410 = vmatprep.subr.mxu0 0.0
        %1411 = vmatpush1.xpose.msra.mxu0 0.0
        %1412 = vmatprep.subr.mxu0 0.0
        %1413 = vmatpush1.xpose.msra.mxu0 0.0
        %1414 = vmatprep.subr.mxu0 0.0
        %1415 = vmatpush1.xpose.msra.mxu0 0.0
        %1416 = vmatprep.mubr.f32.mxu0 0.0
        %1417 = vmatmul.mubr.f32.gmra.mrb[0].mxu0 %v1347
        %v1418 = vpop.f32.mrb[0].mxu0
        %v1419 = vadd.f32 %v451, %v1418
        %v1420 = vpop.f32.mrb[0].mxu0
        %1421 = vmatprep.mubr.f32.mxu0 0.0
        %1422 = vmatmul.mubr.f32.gmra.mrb[0].mxu0 %v1350
        %v1423 = vpop.f32.mrb[0].mxu0
        %v1424 = vadd.f32 %v452, %v1423
        %v1425 = vpop.f32.mrb[0].mxu0
        %1426 = vdwg.mxu0
        %v1427 = vsel %vm860, %v1419, -inf
        %1428 = vmax.xlane.f32.xlu0 %v1427
        %v1429 = vpop.xlane.xlu0 %1428
        %v1430 = vsel %vm860, %v1424, -inf
        %1431 = vmax.xlane.f32.xlu0 %v1430
        %v1432 = vpop.xlane.xlu0 %1431
        %v1433 = vsub.f32 %v1419, %v1429
        %v1434 = vsub.f32 %v1424, %v1432
        %v1435 = vmul.f32 %v1433, 1.442695
        %v1436 = vpow.pop %v1435
        %v1437 = vmul.f32 %v1434, 1.442695
        %v1438 = vpow.pop %v1437
        %v1439 = vsel %vm860, %v1436, 0.0
        %1440 = vadd.xlane.f32.xlu0 %v1439
        %v1441 = vpop.xlane.xlu0 %1440
        %v1442 = vsel %vm860, %v1438, 0.0
        %1443 = vadd.xlane.f32.xlu0 %v1442
        %v1444 = vpop.xlane.xlu0 %1443
        %v1445 = vrcp.pop %v1441
        %v1446 = vrcp.pop %v1444
        %v1447 = vmul.f32 %v1436, %v1445
        %v1448 = vmul.f32 %v1438, %v1446
        %v1449 = vmul.f32 %v763, %v470
        %v1450 = vmul.f32 %v768, %v470
        %v1452 = vsel %vm860, %v1447, 0
        %v1455 = vsel %vm860, %v1448, 0
        %1457 = vmatprep.subr.mxu0 0.0
        %1458 = vmatpush1.msra.mxu0 %v1449
        %1459 = vmatprep.subr.mxu0 0.0
        %1460 = vmatpush1.msra.mxu0 %v1450
        %1461 = vmatprep.subr.mxu0 0.0
        %1462 = vmatpush1.msra.mxu0 0.0
        %1463 = vmatprep.subr.mxu0 0.0
        %1464 = vmatpush1.msra.mxu0 0.0
        %1465 = vmatprep.subr.mxu0 0.0
        %1466 = vmatpush1.msra.mxu0 0.0
        %1467 = vmatprep.subr.mxu0 0.0
        %1468 = vmatpush1.msra.mxu0 0.0
        %1469 = vmatprep.subr.mxu0 0.0
        %1470 = vmatpush1.msra.mxu0 0.0
        %1471 = vmatprep.subr.mxu0 0.0
        %1472 = vmatpush1.msra.mxu0 0.0
        %1473 = vmatprep.subr.mxu0 0.0
        %1474 = vmatpush1.msra.mxu0 0.0
        %1475 = vmatprep.subr.mxu0 0.0
        %1476 = vmatpush1.msra.mxu0 0.0
        %1477 = vmatprep.subr.mxu0 0.0
        %1478 = vmatpush1.msra.mxu0 0.0
        %1479 = vmatprep.subr.mxu0 0.0
        %1480 = vmatpush1.msra.mxu0 0.0
        %1481 = vmatprep.subr.mxu0 0.0
        %1482 = vmatpush1.msra.mxu0 0.0
        %1483 = vmatprep.subr.mxu0 0.0
        %1484 = vmatpush1.msra.mxu0 0.0
        %1485 = vmatprep.subr.mxu0 0.0
        %1486 = vmatpush1.msra.mxu0 0.0
        %1487 = vmatprep.subr.mxu0 0.0
        %1488 = vmatpush1.msra.mxu0 0.0
        %1489 = vmatprep.subr.mxu0 0.0
        %1490 = vmatpush1.msra.mxu0 0.0
        %1491 = vmatprep.subr.mxu0 0.0
        %1492 = vmatpush1.msra.mxu0 0.0
        %1493 = vmatprep.subr.mxu0 0.0
        %1494 = vmatpush1.msra.mxu0 0.0
        %1495 = vmatprep.subr.mxu0 0.0
        %1496 = vmatpush1.msra.mxu0 0.0
        %1497 = vmatprep.subr.mxu0 0.0
        %1498 = vmatpush1.msra.mxu0 0.0
        %1499 = vmatprep.subr.mxu0 0.0
        %1500 = vmatpush1.msra.mxu0 0.0
        %1501 = vmatprep.subr.mxu0 0.0
        %1502 = vmatpush1.msra.mxu0 0.0
        %1503 = vmatprep.subr.mxu0 0.0
        %1504 = vmatpush1.msra.mxu0 0.0
        %1505 = vmatprep.subr.mxu0 0.0
        %1506 = vmatpush1.msra.mxu0 0.0
        %1507 = vmatprep.subr.mxu0 0.0
        %1508 = vmatpush1.msra.mxu0 0.0
        %1509 = vmatprep.subr.mxu0 0.0
        %1510 = vmatpush1.msra.mxu0 0.0
        %1511 = vmatprep.subr.mxu0 0.0
        %1512 = vmatpush1.msra.mxu0 0.0
        %1513 = vmatprep.subr.mxu0 0.0
        %1514 = vmatpush1.msra.mxu0 0.0
        %1515 = vmatprep.subr.mxu0 0.0
        %1516 = vmatpush1.msra.mxu0 0.0
        %1517 = vmatprep.subr.mxu0 0.0
        %1518 = vmatpush1.msra.mxu0 0.0
        %1519 = vmatprep.subr.mxu0 0.0
        %1520 = vmatpush1.msra.mxu0 0.0
        %1521 = vmatprep.mubr.f32.mxu0 0.0
        %1522 = vmatmul.mubr.f32.gmra.mrb[0].mxu0 %v1452
        %v1523 = vpop.f32.mrb[0].mxu0
        %v1524 = vadd.f32 0.0, %v1523
        %v1525 = vpop.f32.mrb[0].mxu0
        %1526 = vmatprep.mubr.f32.mxu0 0.0
        %1527 = vmatmul.mubr.f32.gmra.mrb[0].mxu0 %v1455
        %v1528 = vpop.f32.mrb[0].mxu0
        %v1529 = vadd.f32 0.0, %v1528
        %v1530 = vpop.f32.mrb[0].mxu0
        %1531 = vdwg.mxu0
        %v1532 = vadd.f32 %v1342, %v1524
        %v1533 = vadd.f32 %v1343, %v1529
        %v1534 = vld [vmem:[%s2 + $0xd8] sm:$0xff]
        %v1535 = vld [vmem:[%s2 + $0xe0] sm:$0xff]
        %v1536 = vld [vmem:[%s2 + $0xe8] sm:$0xff]
        %v1537 = vld [vmem:[%s2 + $0xf0] sm:$0xff]
        %v1539 = vsel %vm473, %v1532, 0
        %v1542 = vsel %vm473, %v1533, 0
        %1544 = vmatprep.subr.mxu0 0.0
        %1545 = vmatpush1.msra.mxu0 %v1534
        %1546 = vmatprep.subr.mxu0 0.0
        %1547 = vmatpush1.msra.mxu0 %v1535
        %1548 = vmatprep.subr.mxu0 0.0
        %1549 = vmatpush1.msra.mxu0 %v1536
        %1550 = vmatprep.subr.mxu0 0.0
        %1551 = vmatpush1.msra.mxu0 %v1537
        %1552 = vmatprep.subr.mxu0 0.0
        %1553 = vmatpush1.msra.mxu0 0.0
        %1554 = vmatprep.subr.mxu0 0.0
        %1555 = vmatpush1.msra.mxu0 0.0
        %1556 = vmatprep.subr.mxu0 0.0
        %1557 = vmatpush1.msra.mxu0 0.0
        %1558 = vmatprep.subr.mxu0 0.0
        %1559 = vmatpush1.msra.mxu0 0.0
        %1560 = vmatprep.subr.mxu0 0.0
        %1561 = vmatpush1.msra.mxu0 0.0
        %1562 = vmatprep.subr.mxu0 0.0
        %1563 = vmatpush1.msra.mxu0 0.0
        %1564 = vmatprep.subr.mxu0 0.0
        %1565 = vmatpush1.msra.mxu0 0.0
        %1566 = vmatprep.subr.mxu0 0.0
        %1567 = vmatpush1.msra.mxu0 0.0
        %1568 = vmatprep.subr.mxu0 0.0
        %1569 = vmatpush1.msra.mxu0 0.0
        %1570 = vmatprep.subr.mxu0 0.0
        %1571 = vmatpush1.msra.mxu0 0.0
        %1572 = vmatprep.subr.mxu0 0.0
        %1573 = vmatpush1.msra.mxu0 0.0
        %1574 = vmatprep.subr.mxu0 0.0
        %1575 = vmatpush1.msra.mxu0 0.0
        %1576 = vmatprep.subr.mxu0 0.0
        %1577 = vmatpush1.msra.mxu0 0.0
        %1578 = vmatprep.subr.mxu0 0.0
        %1579 = vmatpush1.msra.mxu0 0.0
        %1580 = vmatprep.subr.mxu0 0.0
        %1581 = vmatpush1.msra.mxu0 0.0
        %1582 = vmatprep.subr.mxu0 0.0
        %1583 = vmatpush1.msra.mxu0 0.0
        %1584 = vmatprep.subr.mxu0 0.0
        %1585 = vmatpush1.msra.mxu0 0.0
        %1586 = vmatprep.subr.mxu0 0.0
        %1587 = vmatpush1.msra.mxu0 0.0
        %1588 = vmatprep.subr.mxu0 0.0
        %1589 = vmatpush1.msra.mxu0 0.0
        %1590 = vmatprep.subr.mxu0 0.0
        %1591 = vmatpush1.msra.mxu0 0.0
        %1592 = vmatprep.subr.mxu0 0.0
        %1593 = vmatpush1.msra.mxu0 0.0
        %1594 = vmatprep.subr.mxu0 0.0
        %1595 = vmatpush1.msra.mxu0 0.0
        %1596 = vmatprep.subr.mxu0 0.0
        %1597 = vmatpush1.msra.mxu0 0.0
        %1598 = vmatprep.subr.mxu0 0.0
        %1599 = vmatpush1.msra.mxu0 0.0
        %1600 = vmatprep.subr.mxu0 0.0
        %1601 = vmatpush1.msra.mxu0 0.0
        %1602 = vmatprep.subr.mxu0 0.0
        %1603 = vmatpush1.msra.mxu0 0.0
        %1604 = vmatprep.subr.mxu0 0.0
        %1605 = vmatpush1.msra.mxu0 0.0
        %1606 = vmatprep.subr.mxu0 0.0
        %1607 = vmatpush1.msra.mxu0 0.0
        %1608 = vmatprep.mubr.f32.mxu0 0.0
        %1609 = vmatmul.mubr.f32.gmra.mrb[0].mxu0 %v1539
        %v1610 = vpop.f32.mrb[0].mxu0
        %v1611 = vadd.f32 0.0, %v1610
        %v1612 = vpop.f32.mrb[0].mxu0
        %1613 = vmatprep.mubr.f32.mxu0 0.0
        %1614 = vmatmul.mubr.f32.gmra.mrb[0].mxu0 %v1542
        %v1615 = vpop.f32.mrb[0].mxu0
        %v1616 = vadd.f32 0.0, %v1615
        %v1617 = vpop.f32.mrb[0].mxu0
        %1618 = vdwg.mxu0
        %v1619 = vadd.f32 %v429, %v1611
        %v1620 = vadd.f32 %v430, %v1616
        %v1621 = vld [vmem:[%s2 + $0x69] sm:$0x1]
        %v1622 = vlaneseq
        %v1623 = vshrl.u32 %v1622, 7
        %v1624 = vsub.s32 0, %v1623
        %v1625 = vrot.slane %v1621, %v1624
        %v1626 = vadd.f32 %v1619, %v1625
        %v1627 = vadd.f32 %v1620, %v1625
        %v1628 = vld [vmem:[%s2 + $0x6a] sm:$0x1]
        %v1629 = vld [vmem:[%s2 + $0x6b] sm:$0x1]
        %v1630 = vsel %vm473, %v1626, 0.0
        %1631 = vadd.xlane.f32.xlu0 %v1630
        %v1632 = vpop.xlane.xlu0 %1631
        %v1633 = vsel %vm473, %v1627, 0.0
        %1634 = vadd.xlane.f32.xlu0 %v1633
        %v1635 = vpop.xlane.xlu0 %1634
        %v1636 = vmul.f32 %v1632, %v480
        %v1637 = vmul.f32 %v1635, %v480
        %v1638 = vsub.f32 %v1626, %v1636
        %v1639 = vsub.f32 %v1627, %v1637
        %v1640 = vmul.f32 %v1638, %v1638
        %v1641 = vmul.f32 %v1639, %v1639
        %v1642 = vsel %vm473, %v1640, 0.0
        %1643 = vadd.xlane.f32.xlu0 %v1642
        %v1644 = vpop.xlane.xlu0 %1643
        %v1645 = vsel %vm473, %v1641, 0.0
        %1646 = vadd.xlane.f32.xlu0 %v1645
        %v1647 = vpop.xlane.xlu0 %1646
        %v1648 = vmul.f32 %v1644, %v480
        %v1649 = vmul.f32 %v1647, %v480
        %v1650 = vadd.f32 %v1648, 1e-05
        %v1651 = vadd.f32 %v1649, 1e-05
        %v1652 = vrsqrt.pop %v1650
        %v1653 = vrsqrt.pop %v1651
        %v1654 = vmul.f32 %v1638, %v1652
        %v1655 = vmul.f32 %v1639, %v1653
        %v1656 = vlaneseq
        %v1657 = vshrl.u32 %v1656, 7
        %v1658 = vsub.s32 0, %v1657
        %v1659 = vrot.slane %v1628, %v1658
        %v1660 = vmul.f32 %v1654, %v1659
        %v1661 = vmul.f32 %v1655, %v1659
        %v1662 = vlaneseq
        %v1663 = vshrl.u32 %v1662, 7
        %v1664 = vsub.s32 0, %v1663
        %v1665 = vrot.slane %v1629, %v1664
        %v1666 = vadd.f32 %v1660, %v1665
        %v1667 = vadd.f32 %v1661, %v1665
        %v1668 = vld [vmem:[%s3] sm:$0xff]
        %v1669 = vld [vmem:[%s3 + $0x8] sm:$0xff]
        %v1670 = vld [vmem:[%s3 + $0x10] sm:$0xff]
        %v1671 = vld [vmem:[%s3 + $0x18] sm:$0xff]
        %v1672 = vld [vmem:[%s3 + $0x20] sm:$0x1]
        %v1673 = vlaneseq
        %v1674 = vshrl.u32 %v1673, 7
        %v1675 = vsub.s32 0, %v1674
        %v1676 = vrot.slane %v1672, %v1675
        %v1678 = vsel %vm473, %v1666, 0
        %v1681 = vsel %vm473, %v1667, 0
        %1683 = vmatprep.subr.mxu0 0.0
        %1684 = vmatpush1.msra.mxu0 %v1668
        %1685 = vmatprep.subr.mxu0 0.0
        %1686 = vmatpush1.msra.mxu0 %v1669
        %1687 = vmatprep.subr.mxu0 0.0
        %1688 = vmatpush1.msra.mxu0 %v1670
        %1689 = vmatprep.subr.mxu0 0.0
        %1690 = vmatpush1.msra.mxu0 %v1671
        %1691 = vmatprep.subr.mxu0 0.0
        %1692 = vmatpush1.msra.mxu0 0.0
        %1693 = vmatprep.subr.mxu0 0.0
        %1694 = vmatpush1.msra.mxu0 0.0
        %1695 = vmatprep.subr.mxu0 0.0
        %1696 = vmatpush1.msra.mxu0 0.0
        %1697 = vmatprep.subr.mxu0 0.0
        %1698 = vmatpush1.msra.mxu0 0.0
        %1699 = vmatprep.subr.mxu0 0.0
        %1700 = vmatpush1.msra.mxu0 0.0
        %1701 = vmatprep.subr.mxu0 0.0
        %1702 = vmatpush1.msra.mxu0 0.0
        %1703 = vmatprep.subr.mxu0 0.0
        %1704 = vmatpush1.msra.mxu0 0.0
        %1705 = vmatprep.subr.mxu0 0.0
        %1706 = vmatpush1.msra.mxu0 0.0
        %1707 = vmatprep.subr.mxu0 0.0
        %1708 = vmatpush1.msra.mxu0 0.0
        %1709 = vmatprep.subr.mxu0 0.0
        %1710 = vmatpush1.msra.mxu0 0.0
        %1711 = vmatprep.subr.mxu0 0.0
        %1712 = vmatpush1.msra.mxu0 0.0
        %1713 = vmatprep.subr.mxu0 0.0
        %1714 = vmatpush1.msra.mxu0 0.0
        %1715 = vmatprep.subr.mxu0 0.0
        %1716 = vmatpush1.msra.mxu0 0.0
        %1717 = vmatprep.subr.mxu0 0.0
        %1718 = vmatpush1.msra.mxu0 0.0
        %1719 = vmatprep.subr.mxu0 0.0
        %1720 = vmatpush1.msra.mxu0 0.0
        %1721 = vmatprep.subr.mxu0 0.0
        %1722 = vmatpush1.msra.mxu0 0.0
        %1723 = vmatprep.subr.mxu0 0.0
        %1724 = vmatpush1.msra.mxu0 0.0
        %1725 = vmatprep.subr.mxu0 0.0
        %1726 = vmatpush1.msra.mxu0 0.0
        %1727 = vmatprep.subr.mxu0 0.0
        %1728 = vmatpush1.msra.mxu0 0.0
        %1729 = vmatprep.subr.mxu0 0.0
        %1730 = vmatpush1.msra.mxu0 0.0
        %1731 = vmatprep.subr.mxu0 0.0
        %1732 = vmatpush1.msra.mxu0 0.0
        %1733 = vmatprep.subr.mxu0 0.0
        %1734 = vmatpush1.msra.mxu0 0.0
        %1735 = vmatprep.subr.mxu0 0.0
        %1736 = vmatpush1.msra.mxu0 0.0
        %1737 = vmatprep.subr.mxu0 0.0
        %1738 = vmatpush1.msra.mxu0 0.0
        %1739 = vmatprep.subr.mxu0 0.0
        %1740 = vmatpush1.msra.mxu0 0.0
        %1741 = vmatprep.subr.mxu0 0.0
        %1742 = vmatpush1.msra.mxu0 0.0
        %1743 = vmatprep.subr.mxu0 0.0
        %1744 = vmatpush1.msra.mxu0 0.0
        %1745 = vmatprep.subr.mxu0 0.0
        %1746 = vmatpush1.msra.mxu0 0.0
        %1747 = vmatprep.mubr.f32.mxu0 0.0
        %1748 = vmatmul.mubr.f32.gmra.mrb[0].mxu0 %v1678
        %v1749 = vpop.f32.mrb[0].mxu0
        %v1750 = vadd.f32 %v1676, %v1749
        %v1751 = vpop.f32.mrb[0].mxu0
        %1752 = vmatprep.mubr.f32.mxu0 0.0
        %1753 = vmatmul.mubr.f32.gmra.mrb[0].mxu0 %v1681
        %v1754 = vpop.f32.mrb[0].mxu0
        %v1755 = vadd.f32 %v1676, %v1754
        %v1756 = vpop.f32.mrb[0].mxu0
        %1757 = vdwg.mxu0
        %v1758 = vmul.f32 %v1750, 0.5
        %v1759 = vmul.f32 %v1755, 0.5
        %v1760 = vmul.f32 %v1750, 0.044715
        %v1761 = vmul.f32 %v1755, 0.044715
        %v1762 = vmul.f32 %v1760, %v1750
        %v1763 = vmul.f32 %v1761, %v1755
        %v1764 = vmul.f32 %v1762, %v1750
        %v1765 = vmul.f32 %v1763, %v1755
        %v1766 = vadd.f32 %v1750, %v1764
        %v1767 = vadd.f32 %v1755, %v1765
        %v1768 = vmul.f32 %v1766, 0.7978846
        %v1769 = vmul.f32 %v1767, 0.7978846
        %v1770 = vtanh.pop %v1768
        %v1771 = vtanh.pop %v1769
        %v1772 = vadd.f32 %v1770, 1.0
        %v1773 = vadd.f32 %v1771, 1.0
        %v1774 = vmul.f32 %v1758, %v1772
        %v1775 = vmul.f32 %v1759, %v1773
        %v1776 = vld [vmem:[%s2 + $0xf8] sm:$0xff]
        %v1777 = vld [vmem:[%s2 + $0x100] sm:$0xff]
        %v1778 = vld [vmem:[%s2 + $0x108] sm:$0xff]
        %v1779 = vld [vmem:[%s2 + $0x110] sm:$0xff]
        %v1780 = vld [vmem:[%s2 + $0x118] sm:$0xff]
        %v1781 = vld [vmem:[%s2 + $0x120] sm:$0xff]
        %v1782 = vld [vmem:[%s2 + $0x128] sm:$0xff]
        %v1783 = vld [vmem:[%s2 + $0x130] sm:$0xff]
        %v1784 = vld [vmem:[%s2 + $0x138] sm:$0xff]
        %v1785 = vld [vmem:[%s2 + $0x140] sm:$0xff]
        %v1786 = vld [vmem:[%s2 + $0x148] sm:$0xff]
        %v1787 = vld [vmem:[%s2 + $0x150] sm:$0xff]
        %v1788 = vld [vmem:[%s2 + $0x158] sm:$0xff]
        %v1789 = vld [vmem:[%s2 + $0x160] sm:$0xff]
        %v1790 = vld [vmem:[%s2 + $0x168] sm:$0xff]
        %v1791 = vld [vmem:[%s2 + $0x170] sm:$0xff]
        %1792 = vmatprep.subr.mxu0 0.0
        %1793 = vmatpush1.msra.mxu0 %v1776
        %1794 = vmatprep.subr.mxu0 0.0
        %1795 = vmatpush1.msra.mxu0 %v1777
        %1796 = vmatprep.subr.mxu0 0.0
        %1797 = vmatpush1.msra.mxu0 %v1778
        %1798 = vmatprep.subr.mxu0 0.0
        %1799 = vmatpush1.msra.mxu0 %v1779
        %1800 = vmatprep.subr.mxu0 0.0
        %1801 = vmatpush1.msra.mxu0 %v1780
        %1802 = vmatprep.subr.mxu0 0.0
        %1803 = vmatpush1.msra.mxu0 %v1781
        %1804 = vmatprep.subr.mxu0 0.0
        %1805 = vmatpush1.msra.mxu0 %v1782
        %1806 = vmatprep.subr.mxu0 0.0
        %1807 = vmatpush1.msra.mxu0 %v1783
        %1808 = vmatprep.subr.mxu0 0.0
        %1809 = vmatpush1.msra.mxu0 %v1784
        %1810 = vmatprep.subr.mxu0 0.0
        %1811 = vmatpush1.msra.mxu0 %v1785
        %1812 = vmatprep.subr.mxu0 0.0
        %1813 = vmatpush1.msra.mxu0 %v1786
        %1814 = vmatprep.subr.mxu0 0.0
        %1815 = vmatpush1.msra.mxu0 %v1787
        %1816 = vmatprep.subr.mxu0 0.0
        %1817 = vmatpush1.msra.mxu0 %v1788
        %1818 = vmatprep.subr.mxu0 0.0
        %1819 = vmatpush1.msra.mxu0 %v1789
        %1820 = vmatprep.subr.mxu0 0.0
        %1821 = vmatpush1.msra.mxu0 %v1790
        %1822 = vmatprep.subr.mxu0 0.0
        %1823 = vmatpush1.msra.mxu0 %v1791
        %1824 = vmatprep.subr.mxu0 0.0
        %1825 = vmatpush1.msra.mxu0 0.0
        %1826 = vmatprep.subr.mxu0 0.0
        %1827 = vmatpush1.msra.mxu0 0.0
        %1828 = vmatprep.subr.mxu0 0.0
        %1829 = vmatpush1.msra.mxu0 0.0
        %1830 = vmatprep.subr.mxu0 0.0
        %1831 = vmatpush1.msra.mxu0 0.0
        %1832 = vmatprep.subr.mxu0 0.0
        %1833 = vmatpush1.msra.mxu0 0.0
        %1834 = vmatprep.subr.mxu0 0.0
        %1835 = vmatpush1.msra.mxu0 0.0
        %1836 = vmatprep.subr.mxu0 0.0
        %1837 = vmatpush1.msra.mxu0 0.0
        %1838 = vmatprep.subr.mxu0 0.0
        %1839 = vmatpush1.msra.mxu0 0.0
        %1840 = vmatprep.subr.mxu0 0.0
        %1841 = vmatpush1.msra.mxu0 0.0
        %1842 = vmatprep.subr.mxu0 0.0
        %1843 = vmatpush1.msra.mxu0 0.0
        %1844 = vmatprep.subr.mxu0 0.0
        %1845 = vmatpush1.msra.mxu0 0.0
        %1846 = vmatprep.subr.mxu0 0.0
        %1847 = vmatpush1.msra.mxu0 0.0
        %1848 = vmatprep.subr.mxu0 0.0
        %1849 = vmatpush1.msra.mxu0 0.0
        %1850 = vmatprep.subr.mxu0 0.0
        %1851 = vmatpush1.msra.mxu0 0.0
        %1852 = vmatprep.subr.mxu0 0.0
        %1853 = vmatpush1.msra.mxu0 0.0
        %1854 = vmatprep.subr.mxu0 0.0
        %1855 = vmatpush1.msra.mxu0 0.0
        %1856 = vmatprep.mubr.f32.mxu0 0.0
        %1857 = vmatmul.mubr.f32.gmra.mrb[0].mxu0 %v1774
        %v1858 = vpop.f32.mrb[0].mxu0
        %v1859 = vadd.f32 0.0, %v1858
        %v1860 = vpop.f32.mrb[0].mxu0
        %1861 = vmatprep.mubr.f32.mxu0 0.0
        %1862 = vmatmul.mubr.f32.gmra.mrb[0].mxu0 %v1775
        %v1863 = vpop.f32.mrb[0].mxu0
        %v1864 = vadd.f32 0.0, %v1863
        %v1865 = vpop.f32.mrb[0].mxu0
        %1866 = vdwg.mxu0
        %v1867 = vadd.f32 %v1626, %v1859
        %v1868 = vadd.f32 %v1627, %v1864
        %v1869 = vld [vmem:[%s2 + $0x6c] sm:$0x1]
        %v1870 = vlaneseq
        %v1871 = vshrl.u32 %v1870, 7
        %v1872 = vsub.s32 0, %v1871
        %v1873 = vrot.slane %v1869, %v1872
        %v1874 = vadd.f32 %v1867, %v1873
        %v1875 = vadd.f32 %v1868, %v1873
        %v1876 = vld [vmem:[%s2 + $0x6d] sm:$0x1]
        %v1877 = vld [vmem:[%s2 + $0x6e] sm:$0x1]
        %v1878 = vsel %vm473, %v1874, 0.0
        %1879 = vadd.xlane.f32.xlu0 %v1878
        %v1880 = vpop.xlane.xlu0 %1879
        %v1881 = vsel %vm473, %v1875, 0.0
        %1882 = vadd.xlane.f32.xlu0 %v1881
        %v1883 = vpop.xlane.xlu0 %1882
        %v1884 = vmul.f32 %v1880, %v480
        %v1885 = vmul.f32 %v1883, %v480
        %v1886 = vsub.f32 %v1874, %v1884
        %v1887 = vsub.f32 %v1875, %v1885
        %v1888 = vmul.f32 %v1886, %v1886
        %v1889 = vmul.f32 %v1887, %v1887
        %v1890 = vsel %vm473, %v1888, 0.0
        %1891 = vadd.xlane.f32.xlu0 %v1890
        %v1892 = vpop.xlane.xlu0 %1891
        %v1893 = vsel %vm473, %v1889, 0.0
        %1894 = vadd.xlane.f32.xlu0 %v1893
        %v1895 = vpop.xlane.xlu0 %1894
        %v1896 = vmul.f32 %v1892, %v480
        %v1897 = vmul.f32 %v1895, %v480
        %v1898 = vadd.f32 %v1896, 1e-05
        %v1899 = vadd.f32 %v1897, 1e-05
        %v1900 = vrsqrt.pop %v1898
        %v1901 = vrsqrt.pop %v1899
        %v1902 = vmul.f32 %v1886, %v1900
        %v1903 = vmul.f32 %v1887, %v1901
        %v1904 = vlaneseq
        %v1905 = vshrl.u32 %v1904, 7
        %v1906 = vsub.s32 0, %v1905
        %v1907 = vrot.slane %v1876, %v1906
        %v1908 = vmul.f32 %v1902, %v1907
        %v1909 = vmul.f32 %v1903, %v1907
        %v1910 = vlaneseq
        %v1911 = vshrl.u32 %v1910, 7
        %v1912 = vsub.s32 0, %v1911
        %v1913 = vrot.slane %v1877, %v1912
        %v1914 = vadd.f32 %v1908, %v1913
        %v1915 = vadd.f32 %v1909, %v1913
        %v1916 = vld [vmem:[%s2 + $0x178] sm:$0xff]
        %v1917 = vld [vmem:[%s2 + $0x180] sm:$0xff]
        %v1918 = vld [vmem:[%s2 + $0x188] sm:$0xff]
        %v1919 = vld [vmem:[%s2 + $0x190] sm:$0xff]
        %v1920 = vld [vmem:[%s2 + $0x6f] sm:$0x1]
        %v1921 = vlaneseq
        %v1922 = vshrl.u32 %v1921, 7
        %v1923 = vsub.s32 0, %v1922
        %v1924 = vrot.slane %v1920, %v1923
        %v1926 = vsel %vm473, %v1914, 0
        %v1929 = vsel %vm473, %v1915, 0
        %1931 = vmatprep.subr.mxu0 0.0
        %1932 = vmatpush1.msra.mxu0 %v1916
        %1933 = vmatprep.subr.mxu0 0.0
        %1934 = vmatpush1.msra.mxu0 %v1917
        %1935 = vmatprep.subr.mxu0 0.0
        %1936 = vmatpush1.msra.mxu0 %v1918
        %1937 = vmatprep.subr.mxu0 0.0
        %1938 = vmatpush1.msra.mxu0 %v1919
        %1939 = vmatprep.subr.mxu0 0.0
        %1940 = vmatpush1.msra.mxu0 0.0
        %1941 = vmatprep.subr.mxu0 0.0
        %1942 = vmatpush1.msra.mxu0 0.0
        %1943 = vmatprep.subr.mxu0 0.0
        %1944 = vmatpush1.msra.mxu0 0.0
        %1945 = vmatprep.subr.mxu0 0.0
        %1946 = vmatpush1.msra.mxu0 0.0
        %1947 = vmatprep.subr.mxu0 0.0
        %1948 = vmatpush1.msra.mxu0 0.0
        %1949 = vmatprep.subr.mxu0 0.0
        %1950 = vmatpush1.msra.mxu0 0.0
        %1951 = vmatprep.subr.mxu0 0.0
        %1952 = vmatpush1.msra.mxu0 0.0
        %1953 = vmatprep.subr.mxu0 0.0
        %1954 = vmatpush1.msra.mxu0 0.0
        %1955 = vmatprep.subr.mxu0 0.0
        %1956 = vmatpush1.msra.mxu0 0.0
        %1957 = vmatprep.subr.mxu0 0.0
        %1958 = vmatpush1.msra.mxu0 0.0
        %1959 = vmatprep.subr.mxu0 0.0
        %1960 = vmatpush1.msra.mxu0 0.0
        %1961 = vmatprep.subr.mxu0 0.0
        %1962 = vmatpush1.msra.mxu0 0.0
        %1963 = vmatprep.subr.mxu0 0.0
        %1964 = vmatpush1.msra.mxu0 0.0
        %1965 = vmatprep.subr.mxu0 0.0
        %1966 = vmatpush1.msra.mxu0 0.0
        %1967 = vmatprep.subr.mxu0 0.0
        %1968 = vmatpush1.msra.mxu0 0.0
        %1969 = vmatprep.subr.mxu0 0.0
        %1970 = vmatpush1.msra.mxu0 0.0
        %1971 = vmatprep.subr.mxu0 0.0
        %1972 = vmatpush1.msra.mxu0 0.0
        %1973 = vmatprep.subr.mxu0 0.0
        %1974 = vmatpush1.msra.mxu0 0.0
        %1975 = vmatprep.subr.mxu0 0.0
        %1976 = vmatpush1.msra.mxu0 0.0
        %1977 = vmatprep.subr.mxu0 0.0
        %1978 = vmatpush1.msra.mxu0 0.0
        %1979 = vmatprep.subr.mxu0 0.0
        %1980 = vmatpush1.msra.mxu0 0.0
        %1981 = vmatprep.subr.mxu0 0.0
        %1982 = vmatpush1.msra.mxu0 0.0
        %1983 = vmatprep.subr.mxu0 0.0
        %1984 = vmatpush1.msra.mxu0 0.0
        %1985 = vmatprep.subr.mxu0 0.0
        %1986 = vmatpush1.msra.mxu0 0.0
        %1987 = vmatprep.subr.mxu0 0.0
        %1988 = vmatpush1.msra.mxu0 0.0
        %1989 = vmatprep.subr.mxu0 0.0
        %1990 = vmatpush1.msra.mxu0 0.0
        %1991 = vmatprep.subr.mxu0 0.0
        %1992 = vmatpush1.msra.mxu0 0.0
        %1993 = vmatprep.subr.mxu0 0.0
        %1994 = vmatpush1.msra.mxu0 0.0
        %1995 = vmatprep.mubr.f32.mxu0 0.0
        %1996 = vmatmul.mubr.f32.gmra.mrb[0].mxu0 %v1926
        %v1997 = vpop.f32.mrb[0].mxu0
        %v1998 = vadd.f32 %v1924, %v1997
        %v1999 = vpop.f32.mrb[0].mxu0
        %2000 = vmatprep.mubr.f32.mxu0 0.0
        %2001 = vmatmul.mubr.f32.gmra.mrb[0].mxu0 %v1929
        %v2002 = vpop.f32.mrb[0].mxu0
        %v2003 = vadd.f32 %v1924, %v2002
        %v2004 = vpop.f32.mrb[0].mxu0
        %2005 = vdwg.mxu0
        %v2006 = vld [vmem:[%s2 + $0x198] sm:$0xff]
        %v2007 = vld [vmem:[%s2 + $0x1a0] sm:$0xff]
        %v2008 = vld [vmem:[%s2 + $0x1a8] sm:$0xff]
        %v2009 = vld [vmem:[%s2 + $0x1b0] sm:$0xff]
        %v2010 = vld [vmem:[%s2 + $0x70] sm:$0x1]
        %v2011 = vlaneseq
        %v2012 = vshrl.u32 %v2011, 7
        %v2013 = vsub.s32 0, %v2012
        %v2014 = vrot.slane %v2010, %v2013
        %2015 = vmatprep.subr.mxu0 0.0
        %2016 = vmatpush1.msra.mxu0 %v2006
        %2017 = vmatprep.subr.mxu0 0.0
        %2018 = vmatpush1.msra.mxu0 %v2007
        %2019 = vmatprep.subr.mxu0 0.0
        %2020 = vmatpush1.msra.mxu0 %v2008
        %2021 = vmatprep.subr.mxu0 0.0
        %2022 = vmatpush1.msra.mxu0 %v2009
        %2023 = vmatprep.subr.mxu0 0.0
        %2024 = vmatpush1.msra.mxu0 0.0
        %2025 = vmatprep.subr.mxu0 0.0
        %2026 = vmatpush1.msra.mxu0 0.0
        %2027 = vmatprep.subr.mxu0 0.0
        %2028 = vmatpush1.msra.mxu0 0.0
        %2029 = vmatprep.subr.mxu0 0.0
        %2030 = vmatpush1.msra.mxu0 0.0
        %2031 = vmatprep.subr.mxu0 0.0
        %2032 = vmatpush1.msra.mxu0 0.0
        %2033 = vmatprep.subr.mxu0 0.0
        %2034 = vmatpush1.msra.mxu0 0.0
        %2035 = vmatprep.subr.mxu0 0.0
        %2036 = vmatpush1.msra.mxu0 0.0
        %2037 = vmatprep.subr.mxu0 0.0
        %2038 = vmatpush1.msra.mxu0 0.0
        %2039 = vmatprep.subr.mxu0 0.0
        %2040 = vmatpush1.msra.mxu0 0.0
        %2041 = vmatprep.subr.mxu0 0.0
        %2042 = vmatpush1.msra.mxu0 0.0
        %2043 = vmatprep.subr.mxu0 0.0
        %2044 = vmatpush1.msra.mxu0 0.0
        %2045 = vmatprep.subr.mxu0 0.0
        %2046 = vmatpush1.msra.mxu0 0.0
        %2047 = vmatprep.subr.mxu0 0.0
        %2048 = vmatpush1.msra.mxu0 0.0
        %2049 = vmatprep.subr.mxu0 0.0
        %2050 = vmatpush1.msra.mxu0 0.0
        %2051 = vmatprep.subr.mxu0 0.0
        %2052 = vmatpush1.msra.mxu0 0.0
        %2053 = vmatprep.subr.mxu0 0.0
        %2054 = vmatpush1.msra.mxu0 0.0
        %2055 = vmatprep.subr.mxu0 0.0
        %2056 = vmatpush1.msra.mxu0 0.0
        %2057 = vmatprep.subr.mxu0 0.0
        %2058 = vmatpush1.msra.mxu0 0.0
        %2059 = vmatprep.subr.mxu0 0.0
        %2060 = vmatpush1.msra.mxu0 0.0
        %2061 = vmatprep.subr.mxu0 0.0
        %2062 = vmatpush1.msra.mxu0 0.0
        %2063 = vmatprep.subr.mxu0 0.0
        %2064 = vmatpush1.msra.mxu0 0.0
        %2065 = vmatprep.subr.mxu0 0.0
        %2066 = vmatpush1.msra.mxu0 0.0
        %2067 = vmatprep.subr.mxu0 0.0
        %2068 = vmatpush1.msra.mxu0 0.0
        %2069 = vmatprep.subr.mxu0 0.0
        %2070 = vmatpush1.msra.mxu0 0.0
        %2071 = vmatprep.subr.mxu0 0.0
        %2072 = vmatpush1.msra.mxu0 0.0
        %2073 = vmatprep.subr.mxu0 0.0
        %2074 = vmatpush1.msra.mxu0 0.0
        %2075 = vmatprep.subr.mxu0 0.0
        %2076 = vmatpush1.msra.mxu0 0.0
        %2077 = vmatprep.subr.mxu0 0.0
        %2078 = vmatpush1.msra.mxu0 0.0
        %2079 = vmatprep.mubr.f32.mxu0 0.0
        %2080 = vmatmul.mubr.f32.gmra.mrb[0].mxu0 %v1926
        %v2081 = vpop.f32.mrb[0].mxu0
        %v2082 = vadd.f32 %v2014, %v2081
        %v2083 = vpop.f32.mrb[0].mxu0
        %2084 = vmatprep.mubr.f32.mxu0 0.0
        %2085 = vmatmul.mubr.f32.gmra.mrb[0].mxu0 %v1929
        %v2086 = vpop.f32.mrb[0].mxu0
        %v2087 = vadd.f32 %v2014, %v2086
        %v2088 = vpop.f32.mrb[0].mxu0
        %2089 = vdwg.mxu0
        %v2090 = vld [vmem:[%s2 + $0x1b8] sm:$0xff]
        %v2091 = vld [vmem:[%s2 + $0x1c0] sm:$0xff]
        %v2092 = vld [vmem:[%s2 + $0x1c8] sm:$0xff]
        %v2093 = vld [vmem:[%s2 + $0x1d0] sm:$0xff]
        %v2094 = vld [vmem:[%s2 + $0x71] sm:$0x1]
        %v2095 = vlaneseq
        %v2096 = vshrl.u32 %v2095, 7
        %v2097 = vsub.s32 0, %v2096
        %v2098 = vrot.slane %v2094, %v2097
        %2099 = vmatprep.subr.mxu0 0.0
        %2100 = vmatpush1.msra.mxu0 %v2090
        %2101 = vmatprep.subr.mxu0 0.0
        %2102 = vmatpush1.msra.mxu0 %v2091
        %2103 = vmatprep.subr.mxu0 0.0
        %2104 = vmatpush1.msra.mxu0 %v2092
        %2105 = vmatprep.subr.mxu0 0.0
        %2106 = vmatpush1.msra.mxu0 %v2093
        %2107 = vmatprep.subr.mxu0 0.0
        %2108 = vmatpush1.msra.mxu0 0.0
        %2109 = vmatprep.subr.mxu0 0.0
        %2110 = vmatpush1.msra.mxu0 0.0
        %2111 = vmatprep.subr.mxu0 0.0
        %2112 = vmatpush1.msra.mxu0 0.0
        %2113 = vmatprep.subr.mxu0 0.0
        %2114 = vmatpush1.msra.mxu0 0.0
        %2115 = vmatprep.subr.mxu0 0.0
        %2116 = vmatpush1.msra.mxu0 0.0
        %2117 = vmatprep.subr.mxu0 0.0
        %2118 = vmatpush1.msra.mxu0 0.0
        %2119 = vmatprep.subr.mxu0 0.0
        %2120 = vmatpush1.msra.mxu0 0.0
        %2121 = vmatprep.subr.mxu0 0.0
        %2122 = vmatpush1.msra.mxu0 0.0
        %2123 = vmatprep.subr.mxu0 0.0
        %2124 = vmatpush1.msra.mxu0 0.0
        %2125 = vmatprep.subr.mxu0 0.0
        %2126 = vmatpush1.msra.mxu0 0.0
        %2127 = vmatprep.subr.mxu0 0.0
        %2128 = vmatpush1.msra.mxu0 0.0
        %2129 = vmatprep.subr.mxu0 0.0
        %2130 = vmatpush1.msra.mxu0 0.0
        %2131 = vmatprep.subr.mxu0 0.0
        %2132 = vmatpush1.msra.mxu0 0.0
        %2133 = vmatprep.subr.mxu0 0.0
        %2134 = vmatpush1.msra.mxu0 0.0
        %2135 = vmatprep.subr.mxu0 0.0
        %2136 = vmatpush1.msra.mxu0 0.0
        %2137 = vmatprep.subr.mxu0 0.0
        %2138 = vmatpush1.msra.mxu0 0.0
        %2139 = vmatprep.subr.mxu0 0.0
        %2140 = vmatpush1.msra.mxu0 0.0
        %2141 = vmatprep.subr.mxu0 0.0
        %2142 = vmatpush1.msra.mxu0 0.0
        %2143 = vmatprep.subr.mxu0 0.0
        %2144 = vmatpush1.msra.mxu0 0.0
        %2145 = vmatprep.subr.mxu0 0.0
        %2146 = vmatpush1.msra.mxu0 0.0
        %2147 = vmatprep.subr.mxu0 0.0
        %2148 = vmatpush1.msra.mxu0 0.0
        %2149 = vmatprep.subr.mxu0 0.0
        %2150 = vmatpush1.msra.mxu0 0.0
        %2151 = vmatprep.subr.mxu0 0.0
        %2152 = vmatpush1.msra.mxu0 0.0
        %2153 = vmatprep.subr.mxu0 0.0
        %2154 = vmatpush1.msra.mxu0 0.0
        %2155 = vmatprep.subr.mxu0 0.0
        %2156 = vmatpush1.msra.mxu0 0.0
        %2157 = vmatprep.subr.mxu0 0.0
        %2158 = vmatpush1.msra.mxu0 0.0
        %2159 = vmatprep.subr.mxu0 0.0
        %2160 = vmatpush1.msra.mxu0 0.0
        %2161 = vmatprep.subr.mxu0 0.0
        %2162 = vmatpush1.msra.mxu0 0.0
        %2163 = vmatprep.mubr.f32.mxu0 0.0
        %2164 = vmatmul.mubr.f32.gmra.mrb[0].mxu0 %v1926
        %v2165 = vpop.f32.mrb[0].mxu0
        %v2166 = vadd.f32 %v2098, %v2165
        %v2167 = vpop.f32.mrb[0].mxu0
        %2168 = vmatprep.mubr.f32.mxu0 0.0
        %2169 = vmatmul.mubr.f32.gmra.mrb[0].mxu0 %v1929
        %v2170 = vpop.f32.mrb[0].mxu0
        %v2171 = vadd.f32 %v2098, %v2170
        %v2172 = vpop.f32.mrb[0].mxu0
        %2173 = vdwg.mxu0
        %v2174 = vmul.f32 %v1998, %v456
        %v2175 = vmul.f32 %v2003, %v456
        %v2177 = vsel %vm473, %v2174, 0
        %v2180 = vsel %vm473, %v2175, 0
        %v2183 = vsel %vm473, %v2082, 0
        %v2186 = vsel %vm473, %v2087, 0
        %2188 = vmatprep.subr.mxu0 0.0
        %2189 = vmatpush1.xpose.msra.mxu0 %v2183
        %2190 = vmatprep.subr.mxu0 0.0
        %2191 = vmatpush1.xpose.msra.mxu0 %v2186
        %2192 = vmatprep.subr.mxu0 0.0
        %2193 = vmatpush1.xpose.msra.mxu0 0.0
        %2194 = vmatprep.subr.mxu0 0.0
        %2195 = vmatpush1.xpose.msra.mxu0 0.0
        %2196 = vmatprep.subr.mxu0 0.0
        %2197 = vmatpush1.xpose.msra.mxu0 0.0
        %2198 = vmatprep.subr.mxu0 0.0
        %2199 = vmatpush1.xpose.msra.mxu0 0.0
        %2200 = vmatprep.subr.mxu0 0.0
        %2201 = vmatpush1.xpose.msra.mxu0 0.0
        %2202 = vmatprep.subr.mxu0 0.0
        %2203 = vmatpush1.xpose.msra.mxu0 0.0
        %2204 = vmatprep.subr.mxu0 0.0
        %2205 = vmatpush1.xpose.msra.mxu0 0.0
        %2206 = vmatprep.subr.mxu0 0.0
        %2207 = vmatpush1.xpose.msra.mxu0 0.0
        %2208 = vmatprep.subr.mxu0 0.0
        %2209 = vmatpush1.xpose.msra.mxu0 0.0
        %2210 = vmatprep.subr.mxu0 0.0
        %2211 = vmatpush1.xpose.msra.mxu0 0.0
        %2212 = vmatprep.subr.mxu0 0.0
        %2213 = vmatpush1.xpose.msra.mxu0 0.0
        %2214 = vmatprep.subr.mxu0 0.0
        %2215 = vmatpush1.xpose.msra.mxu0 0.0
        %2216 = vmatprep.subr.mxu0 0.0
        %2217 = vmatpush1.xpose.msra.mxu0 0.0
        %2218 = vmatprep.subr.mxu0 0.0
        %2219 = vmatpush1.xpose.msra.mxu0 0.0
        %2220 = vmatprep.subr.mxu0 0.0
        %2221 = vmatpush1.xpose.msra.mxu0 0.0
        %2222 = vmatprep.subr.mxu0 0.0
        %2223 = vmatpush1.xpose.msra.mxu0 0.0
        %2224 = vmatprep.subr.mxu0 0.0
        %2225 = vmatpush1.xpose.msra.mxu0 0.0
        %2226 = vmatprep.subr.mxu0 0.0
        %2227 = vmatpush1.xpose.msra.mxu0 0.0
        %2228 = vmatprep.subr.mxu0 0.0
        %2229 = vmatpush1.xpose.msra.mxu0 0.0
        %2230 = vmatprep.subr.mxu0 0.0
        %2231 = vmatpush1.xpose.msra.mxu0 0.0
        %2232 = vmatprep.subr.mxu0 0.0
        %2233 = vmatpush1.xpose.msra.mxu0 0.0
        %2234 = vmatprep.subr.mxu0 0.0
        %2235 = vmatpush1.xpose.msra.mxu0 0.0
        %2236 = vmatprep.subr.mxu0 0.0
        %2237 = vmatpush1.xpose.msra.mxu0 0.0
        %2238 = vmatprep.subr.mxu0 0.0
        %2239 = vmatpush1.xpose.msra.mxu0 0.0
        %2240 = vmatprep.subr.mxu0 0.0
        %2241 = vmatpush1.xpose.msra.mxu0 0.0
        %2242 = vmatprep.subr.mxu0 0.0
        %2243 = vmatpush1.xpose.msra.mxu0 0.0
        %2244 = vmatprep.subr.mxu0 0.0
        %2245 = vmatpush1.xpose.msra.mxu0 0.0
        %2246 = vmatprep.subr.mxu0 0.0
        %2247 = vmatpush1.xpose.msra.mxu0 0.0
        %2248 = vmatprep.subr.mxu0 0.0
        %2249 = vmatpush1.xpose.msra.mxu0 0.0
        %2250 = vmatprep.subr.mxu0 0.0
        %2251 = vmatpush1.xpose.msra.mxu0 0.0
        %2252 = vmatprep.mubr.f32.mxu0 0.0
        %2253 = vmatmul.mubr.f32.gmra.mrb[0].mxu0 %v2177
        %v2254 = vpop.f32.mrb[0].mxu0
        %v2255 = vadd.f32 %v451, %v2254
        %v2256 = vpop.f32.mrb[0].mxu0
        %2257 = vmatprep.mubr.f32.mxu0 0.0
        %2258 = vmatmul.mubr.f32.gmra.mrb[0].mxu0 %v2180
        %v2259 = vpop.f32.mrb[0].mxu0
        %v2260 = vadd.f32 %v452, %v2259
        %v2261 = vpop.f32.mrb[0].mxu0
        %2262 = vdwg.mxu0
        %v2263 = vsel %vm860, %v2255, -inf
        %2264 = vmax.xlane.f32.xlu0 %v2263
        %v2265 = vpop.xlane.xlu0 %2264
        %v2266 = vsel %vm860, %v2260, -inf
        %2267 = vmax.xlane.f32.xlu0 %v2266
        %v2268 = vpop.xlane.xlu0 %2267
        %v2269 = vsub.f32 %v2255, %v2265
        %v2270 = vsub.f32 %v2260, %v2268
        %v2271 = vmul.f32 %v2269, 1.442695
        %v2272 = vpow.pop %v2271
        %v2273 = vmul.f32 %v2270, 1.442695
        %v2274 = vpow.pop %v2273
        %v2275 = vsel %vm860, %v2272, 0.0
        %2276 = vadd.xlane.f32.xlu0 %v2275
        %v2277 = vpop.xlane.xlu0 %2276
        %v2278 = vsel %vm860, %v2274, 0.0
        %2279 = vadd.xlane.f32.xlu0 %v2278
        %v2280 = vpop.xlane.xlu0 %2279
        %v2281 = vrcp.pop %v2277
        %v2282 = vrcp.pop %v2280
        %v2283 = vmul.f32 %v2272, %v2281
        %v2284 = vmul.f32 %v2274, %v2282
        %v2285 = vmul.f32 %v2166, %v456
        %v2286 = vmul.f32 %v2171, %v456
        %v2287 = vmul.f32 %v1998, %v460
        %v2288 = vmul.f32 %v2003, %v460
        %v2290 = vsel %vm473, %v2287, 0
        %v2293 = vsel %vm473, %v2288, 0
        %2295 = vmatprep.subr.mxu0 0.0
        %2296 = vmatpush1.xpose.msra.mxu0 %v2183
        %2297 = vmatprep.subr.mxu0 0.0
        %2298 = vmatpush1.xpose.msra.mxu0 %v2186
        %2299 = vmatprep.subr.mxu0 0.0
        %2300 = vmatpush1.xpose.msra.mxu0 0.0
        %2301 = vmatprep.subr.mxu0 0.0
        %2302 = vmatpush1.xpose.msra.mxu0 0.0
        %2303 = vmatprep.subr.mxu0 0.0
        %2304 = vmatpush1.xpose.msra.mxu0 0.0
        %2305 = vmatprep.subr.mxu0 0.0
        %2306 = vmatpush1.xpose.msra.mxu0 0.0
        %2307 = vmatprep.subr.mxu0 0.0
        %2308 = vmatpush1.xpose.msra.mxu0 0.0
        %2309 = vmatprep.subr.mxu0 0.0
        %2310 = vmatpush1.xpose.msra.mxu0 0.0
        %2311 = vmatprep.subr.mxu0 0.0
        %2312 = vmatpush1.xpose.msra.mxu0 0.0
        %2313 = vmatprep.subr.mxu0 0.0
        %2314 = vmatpush1.xpose.msra.mxu0 0.0
        %2315 = vmatprep.subr.mxu0 0.0
        %2316 = vmatpush1.xpose.msra.mxu0 0.0
        %2317 = vmatprep.subr.mxu0 0.0
        %2318 = vmatpush1.xpose.msra.mxu0 0.0
        %2319 = vmatprep.subr.mxu0 0.0
        %2320 = vmatpush1.xpose.msra.mxu0 0.0
        %2321 = vmatprep.subr.mxu0 0.0
        %2322 = vmatpush1.xpose.msra.mxu0 0.0
        %2323 = vmatprep.subr.mxu0 0.0
        %2324 = vmatpush1.xpose.msra.mxu0 0.0
        %2325 = vmatprep.subr.mxu0 0.0
        %2326 = vmatpush1.xpose.msra.mxu0 0.0
        %2327 = vmatprep.subr.mxu0 0.0
        %2328 = vmatpush1.xpose.msra.mxu0 0.0
        %2329 = vmatprep.subr.mxu0 0.0
        %2330 = vmatpush1.xpose.msra.mxu0 0.0
        %2331 = vmatprep.subr.mxu0 0.0
        %2332 = vmatpush1.xpose.msra.mxu0 0.0
        %2333 = vmatprep.subr.mxu0 0.0
        %2334 = vmatpush1.xpose.msra.mxu0 0.0
        %2335 = vmatprep.subr.mxu0 0.0
        %2336 = vmatpush1.xpose.msra.mxu0 0.0
        %2337 = vmatprep.subr.mxu0 0.0
        %2338 = vmatpush1.xpose.msra.mxu0 0.0
        %2339 = vmatprep.subr.mxu0 0.0
        %2340 = vmatpush1.xpose.msra.mxu0 0.0
        %2341 = vmatprep.subr.mxu0 0.0
        %2342 = vmatpush1.xpose.msra.mxu0 0.0
        %2343 = vmatprep.subr.mxu0 0.0
        %2344 = vmatpush1.xpose.msra.mxu0 0.0
        %2345 = vmatprep.subr.mxu0 0.0
        %2346 = vmatpush1.xpose.msra.mxu0 0.0
        %2347 = vmatprep.subr.mxu0 0.0
        %2348 = vmatpush1.xpose.msra.mxu0 0.0
        %2349 = vmatprep.subr.mxu0 0.0
        %2350 = vmatpush1.xpose.msra.mxu0 0.0
        %2351 = vmatprep.subr.mxu0 0.0
        %2352 = vmatpush1.xpose.msra.mxu0 0.0
        %2353 = vmatprep.subr.mxu0 0.0
        %2354 = vmatpush1.xpose.msra.mxu0 0.0
        %2355 = vmatprep.subr.mxu0 0.0
        %2356 = vmatpush1.xpose.msra.mxu0 0.0
        %2357 = vmatprep.subr.mxu0 0.0
        %2358 = vmatpush1.xpose.msra.mxu0 0.0
        %2359 = vmatprep.mubr.f32.mxu0 0.0
        %2360 = vmatmul.mubr.f32.gmra.mrb[0].mxu0 %v2290
        %v2361 = vpop.f32.mrb[0].mxu0
        %v2362 = vadd.f32 %v451, %v2361
        %v2363 = vpop.f32.mrb[0].mxu0
        %2364 = vmatprep.mubr.f32.mxu0 0.0
        %2365 = vmatmul.mubr.f32.gmra.mrb[0].mxu0 %v2293
        %v2366 = vpop.f32.mrb[0].mxu0
        %v2367 = vadd.f32 %v452, %v2366
        %v2368 = vpop.f32.mrb[0].mxu0
        %2369 = vdwg.mxu0
        %v2370 = vsel %vm860, %v2362, -inf
        %2371 = vmax.xlane.f32.xlu0 %v2370
        %v2372 = vpop.xlane.xlu0 %2371
        %v2373 = vsel %vm860, %v2367, -inf
        %2374 = vmax.xlane.f32.xlu0 %v2373
        %v2375 = vpop.xlane.xlu0 %2374
        %v2376 = vsub.f32 %v2362, %v2372
        %v2377 = vsub.f32 %v2367, %v2375
        %v2378 = vmul.f32 %v2376, 1.442695
        %v2379 = vpow.pop %v2378
        %v2380 = vmul.f32 %v2377, 1.442695
        %v2381 = vpow.pop %v2380
        %v2382 = vsel %vm860, %v2379, 0.0
        %2383 = vadd.xlane.f32.xlu0 %v2382
        %v2384 = vpop.xlane.xlu0 %2383
        %v2385 = vsel %vm860, %v2381, 0.0
        %2386 = vadd.xlane.f32.xlu0 %v2385
        %v2387 = vpop.xlane.xlu0 %2386
        %v2388 = vrcp.pop %v2384
        %v2389 = vrcp.pop %v2387
        %v2390 = vmul.f32 %v2379, %v2388
        %v2391 = vmul.f32 %v2381, %v2389
        %v2392 = vmul.f32 %v2166, %v460
        %v2393 = vmul.f32 %v2171, %v460
        %v2395 = vsel %vm860, %v2390, 0
        %v2398 = vsel %vm860, %v2391, 0
        %2400 = vmatprep.subr.mxu0 0.0
        %2401 = vmatpush1.msra.mxu0 %v2392
        %2402 = vmatprep.subr.mxu0 0.0
        %2403 = vmatpush1.msra.mxu0 %v2393
        %2404 = vmatprep.subr.mxu0 0.0
        %2405 = vmatpush1.msra.mxu0 0.0
        %2406 = vmatprep.subr.mxu0 0.0
        %2407 = vmatpush1.msra.mxu0 0.0
        %2408 = vmatprep.subr.mxu0 0.0
        %2409 = vmatpush1.msra.mxu0 0.0
        %2410 = vmatprep.subr.mxu0 0.0
        %2411 = vmatpush1.msra.mxu0 0.0
        %2412 = vmatprep.subr.mxu0 0.0
        %2413 = vmatpush1.msra.mxu0 0.0
        %2414 = vmatprep.subr.mxu0 0.0
        %2415 = vmatpush1.msra.mxu0 0.0
        %2416 = vmatprep.subr.mxu0 0.0
        %2417 = vmatpush1.msra.mxu0 0.0
        %2418 = vmatprep.subr.mxu0 0.0
        %2419 = vmatpush1.msra.mxu0 0.0
        %2420 = vmatprep.subr.mxu0 0.0
        %2421 = vmatpush1.msra.mxu0 0.0
        %2422 = vmatprep.subr.mxu0 0.0
        %2423 = vmatpush1.msra.mxu0 0.0
        %2424 = vmatprep.subr.mxu0 0.0
        %2425 = vmatpush1.msra.mxu0 0.0
        %2426 = vmatprep.subr.mxu0 0.0
        %2427 = vmatpush1.msra.mxu0 0.0
        %2428 = vmatprep.subr.mxu0 0.0
        %2429 = vmatpush1.msra.mxu0 0.0
        %2430 = vmatprep.subr.mxu0 0.0
        %2431 = vmatpush1.msra.mxu0 0.0
        %2432 = vmatprep.subr.mxu0 0.0
        %2433 = vmatpush1.msra.mxu0 0.0
        %2434 = vmatprep.subr.mxu0 0.0
        %2435 = vmatpush1.msra.mxu0 0.0
        %2436 = vmatprep.subr.mxu0 0.0
        %2437 = vmatpush1.msra.mxu0 0.0
        %2438 = vmatprep.subr.mxu0 0.0
        %2439 = vmatpush1.msra.mxu0 0.0
        %2440 = vmatprep.subr.mxu0 0.0
        %2441 = vmatpush1.msra.mxu0 0.0
        %2442 = vmatprep.subr.mxu0 0.0
        %2443 = vmatpush1.msra.mxu0 0.0
        %2444 = vmatprep.subr.mxu0 0.0
        %2445 = vmatpush1.msra.mxu0 0.0
        %2446 = vmatprep.subr.mxu0 0.0
        %2447 = vmatpush1.msra.mxu0 0.0
        %2448 = vmatprep.subr.mxu0 0.0
        %2449 = vmatpush1.msra.mxu0 0.0
        %2450 = vmatprep.subr.mxu0 0.0
        %2451 = vmatpush1.msra.mxu0 0.0
        %2452 = vmatprep.subr.mxu0 0.0
        %2453 = vmatpush1.msra.mxu0 0.0
        %2454 = vmatprep.subr.mxu0 0.0
        %2455 = vmatpush1.msra.mxu0 0.0
        %2456 = vmatprep.subr.mxu0 0.0
        %2457 = vmatpush1.msra.mxu0 0.0
        %2458 = vmatprep.subr.mxu0 0.0
        %2459 = vmatpush1.msra.mxu0 0.0
        %2460 = vmatprep.subr.mxu0 0.0
        %2461 = vmatpush1.msra.mxu0 0.0
        %2462 = vmatprep.subr.mxu0 0.0
        %2463 = vmatpush1.msra.mxu0 0.0
        %2464 = vmatprep.mubr.f32.mxu0 0.0
        %2465 = vmatmul.mubr.f32.gmra.mrb[0].mxu0 %v2395
        %v2466 = vpop.f32.mrb[0].mxu0
        %v2467 = vadd.f32 0.0, %v2466
        %v2468 = vpop.f32.mrb[0].mxu0
        %2469 = vmatprep.mubr.f32.mxu0 0.0
        %2470 = vmatmul.mubr.f32.gmra.mrb[0].mxu0 %v2398
        %v2471 = vpop.f32.mrb[0].mxu0
        %v2472 = vadd.f32 0.0, %v2471
        %v2473 = vpop.f32.mrb[0].mxu0
        %2474 = vdwg.mxu0
        %v2476 = vsel %vm860, %v2283, 0
        %v2479 = vsel %vm860, %v2284, 0
        %2481 = vmatprep.subr.mxu0 0.0
        %2482 = vmatpush1.msra.mxu0 %v2285
        %2483 = vmatprep.subr.mxu0 0.0
        %2484 = vmatpush1.msra.mxu0 %v2286
        %2485 = vmatprep.subr.mxu0 0.0
        %2486 = vmatpush1.msra.mxu0 0.0
        %2487 = vmatprep.subr.mxu0 0.0
        %2488 = vmatpush1.msra.mxu0 0.0
        %2489 = vmatprep.subr.mxu0 0.0
        %2490 = vmatpush1.msra.mxu0 0.0
        %2491 = vmatprep.subr.mxu0 0.0
        %2492 = vmatpush1.msra.mxu0 0.0
        %2493 = vmatprep.subr.mxu0 0.0
        %2494 = vmatpush1.msra.mxu0 0.0
        %2495 = vmatprep.subr.mxu0 0.0
        %2496 = vmatpush1.msra.mxu0 0.0
        %2497 = vmatprep.subr.mxu0 0.0
        %2498 = vmatpush1.msra.mxu0 0.0
        %2499 = vmatprep.subr.mxu0 0.0
        %2500 = vmatpush1.msra.mxu0 0.0
        %2501 = vmatprep.subr.mxu0 0.0
        %2502 = vmatpush1.msra.mxu0 0.0
        %2503 = vmatprep.subr.mxu0 0.0
        %2504 = vmatpush1.msra.mxu0 0.0
        %2505 = vmatprep.subr.mxu0 0.0
        %2506 = vmatpush1.msra.mxu0 0.0
        %2507 = vmatprep.subr.mxu0 0.0
        %2508 = vmatpush1.msra.mxu0 0.0
        %2509 = vmatprep.subr.mxu0 0.0
        %2510 = vmatpush1.msra.mxu0 0.0
        %2511 = vmatprep.subr.mxu0 0.0
        %2512 = vmatpush1.msra.mxu0 0.0
        %2513 = vmatprep.subr.mxu0 0.0
        %2514 = vmatpush1.msra.mxu0 0.0
        %2515 = vmatprep.subr.mxu0 0.0
        %2516 = vmatpush1.msra.mxu0 0.0
        %2517 = vmatprep.subr.mxu0 0.0
        %2518 = vmatpush1.msra.mxu0 0.0
        %2519 = vmatprep.subr.mxu0 0.0
        %2520 = vmatpush1.msra.mxu0 0.0
        %2521 = vmatprep.subr.mxu0 0.0
        %2522 = vmatpush1.msra.mxu0 0.0
        %2523 = vmatprep.subr.mxu0 0.0
        %2524 = vmatpush1.msra.mxu0 0.0
        %2525 = vmatprep.subr.mxu0 0.0
        %2526 = vmatpush1.msra.mxu0 0.0
        %2527 = vmatprep.subr.mxu0 0.0
        %2528 = vmatpush1.msra.mxu0 0.0
        %2529 = vmatprep.subr.mxu0 0.0
        %2530 = vmatpush1.msra.mxu0 0.0
        %2531 = vmatprep.subr.mxu0 0.0
        %2532 = vmatpush1.msra.mxu0 0.0
        %2533 = vmatprep.subr.mxu0 0.0
        %2534 = vmatpush1.msra.mxu0 0.0
        %2535 = vmatprep.subr.mxu0 0.0
        %2536 = vmatpush1.msra.mxu0 0.0
        %2537 = vmatprep.subr.mxu0 0.0
        %2538 = vmatpush1.msra.mxu0 0.0
        %2539 = vmatprep.subr.mxu0 0.0
        %2540 = vmatpush1.msra.mxu0 0.0
        %2541 = vmatprep.subr.mxu0 0.0
        %2542 = vmatpush1.msra.mxu0 0.0
        %2543 = vmatprep.subr.mxu0 0.0
        %2544 = vmatpush1.msra.mxu0 0.0
        %2545 = vmatprep.mubr.f32.mxu0 0.0
        %2546 = vmatmul.mubr.f32.gmra.mrb[0].mxu0 %v2476
        %v2547 = vpop.f32.mrb[0].mxu0
        %v2548 = vadd.f32 %v2467, %v2547
        %v2549 = vpop.f32.mrb[0].mxu0
        %2550 = vmatprep.mubr.f32.mxu0 0.0
        %2551 = vmatmul.mubr.f32.gmra.mrb[0].mxu0 %v2479
        %v2552 = vpop.f32.mrb[0].mxu0
        %v2553 = vadd.f32 %v2472, %v2552
        %v2554 = vpop.f32.mrb[0].mxu0
        %2555 = vdwg.mxu0
        %v2556 = vmul.f32 %v1998, %v465
        %v2557 = vmul.f32 %v2003, %v465
        %v2559 = vsel %vm473, %v2556, 0
        %v2562 = vsel %vm473, %v2557, 0
        %2564 = vmatprep.subr.mxu0 0.0
        %2565 = vmatpush1.xpose.msra.mxu0 %v2183
        %2566 = vmatprep.subr.mxu0 0.0
        %2567 = vmatpush1.xpose.msra.mxu0 %v2186
        %2568 = vmatprep.subr.mxu0 0.0
        %2569 = vmatpush1.xpose.msra.mxu0 0.0
        %2570 = vmatprep.subr.mxu0 0.0
        %2571 = vmatpush1.xpose.msra.mxu0 0.0
        %2572 = vmatprep.subr.mxu0 0.0
        %2573 = vmatpush1.xpose.msra.mxu0 0.0
        %2574 = vmatprep.subr.mxu0 0.0
        %2575 = vmatpush1.xpose.msra.mxu0 0.0
        %2576 = vmatprep.subr.mxu0 0.0
        %2577 = vmatpush1.xpose.msra.mxu0 0.0
        %2578 = vmatprep.subr.mxu0 0.0
        %2579 = vmatpush1.xpose.msra.mxu0 0.0
        %2580 = vmatprep.subr.mxu0 0.0
        %2581 = vmatpush1.xpose.msra.mxu0 0.0
        %2582 = vmatprep.subr.mxu0 0.0
        %2583 = vmatpush1.xpose.msra.mxu0 0.0
        %2584 = vmatprep.subr.mxu0 0.0
        %2585 = vmatpush1.xpose.msra.mxu0 0.0
        %2586 = vmatprep.subr.mxu0 0.0
        %2587 = vmatpush1.xpose.msra.mxu0 0.0
        %2588 = vmatprep.subr.mxu0 0.0
        %2589 = vmatpush1.xpose.msra.mxu0 0.0
        %2590 = vmatprep.subr.mxu0 0.0
        %2591 = vmatpush1.xpose.msra.mxu0 0.0
        %2592 = vmatprep.subr.mxu0 0.0
        %2593 = vmatpush1.xpose.msra.mxu0 0.0
        %2594 = vmatprep.subr.mxu0 0.0
        %2595 = vmatpush1.xpose.msra.mxu0 0.0
        %2596 = vmatprep.subr.mxu0 0.0
        %2597 = vmatpush1.xpose.msra.mxu0 0.0
        %2598 = vmatprep.subr.mxu0 0.0
        %2599 = vmatpush1.xpose.msra.mxu0 0.0
        %2600 = vmatprep.subr.mxu0 0.0
        %2601 = vmatpush1.xpose.msra.mxu0 0.0
        %2602 = vmatprep.subr.mxu0 0.0
        %2603 = vmatpush1.xpose.msra.mxu0 0.0
        %2604 = vmatprep.subr.mxu0 0.0
        %2605 = vmatpush1.xpose.msra.mxu0 0.0
        %2606 = vmatprep.subr.mxu0 0.0
        %2607 = vmatpush1.xpose.msra.mxu0 0.0
        %2608 = vmatprep.subr.mxu0 0.0
        %2609 = vmatpush1.xpose.msra.mxu0 0.0
        %2610 = vmatprep.subr.mxu0 0.0
        %2611 = vmatpush1.xpose.msra.mxu0 0.0
        %2612 = vmatprep.subr.mxu0 0.0
        %2613 = vmatpush1.xpose.msra.mxu0 0.0
        %2614 = vmatprep.subr.mxu0 0.0
        %2615 = vmatpush1.xpose.msra.mxu0 0.0
        %2616 = vmatprep.subr.mxu0 0.0
        %2617 = vmatpush1.xpose.msra.mxu0 0.0
        %2618 = vmatprep.subr.mxu0 0.0
        %2619 = vmatpush1.xpose.msra.mxu0 0.0
        %2620 = vmatprep.subr.mxu0 0.0
        %2621 = vmatpush1.xpose.msra.mxu0 0.0
        %2622 = vmatprep.subr.mxu0 0.0
        %2623 = vmatpush1.xpose.msra.mxu0 0.0
        %2624 = vmatprep.subr.mxu0 0.0
        %2625 = vmatpush1.xpose.msra.mxu0 0.0
        %2626 = vmatprep.subr.mxu0 0.0
        %2627 = vmatpush1.xpose.msra.mxu0 0.0
        %2628 = vmatprep.mubr.f32.mxu0 0.0
        %2629 = vmatmul.mubr.f32.gmra.mrb[0].mxu0 %v2559
        %v2630 = vpop.f32.mrb[0].mxu0
        %v2631 = vadd.f32 %v451, %v2630
        %v2632 = vpop.f32.mrb[0].mxu0
        %2633 = vmatprep.mubr.f32.mxu0 0.0
        %2634 = vmatmul.mubr.f32.gmra.mrb[0].mxu0 %v2562
        %v2635 = vpop.f32.mrb[0].mxu0
        %v2636 = vadd.f32 %v452, %v2635
        %v2637 = vpop.f32.mrb[0].mxu0
        %2638 = vdwg.mxu0
        %v2639 = vsel %vm860, %v2631, -inf
        %2640 = vmax.xlane.f32.xlu0 %v2639
        %v2641 = vpop.xlane.xlu0 %2640
        %v2642 = vsel %vm860, %v2636, -inf
        %2643 = vmax.xlane.f32.xlu0 %v2642
        %v2644 = vpop.xlane.xlu0 %2643
        %v2645 = vsub.f32 %v2631, %v2641
        %v2646 = vsub.f32 %v2636, %v2644
        %v2647 = vmul.f32 %v2645, 1.442695
        %v2648 = vpow.pop %v2647
        %v2649 = vmul.f32 %v2646, 1.442695
        %v2650 = vpow.pop %v2649
        %v2651 = vsel %vm860, %v2648, 0.0
        %2652 = vadd.xlane.f32.xlu0 %v2651
        %v2653 = vpop.xlane.xlu0 %2652
        %v2654 = vsel %vm860, %v2650, 0.0
        %2655 = vadd.xlane.f32.xlu0 %v2654
        %v2656 = vpop.xlane.xlu0 %2655
        %v2657 = vrcp.pop %v2653
        %v2658 = vrcp.pop %v2656
        %v2659 = vmul.f32 %v2648, %v2657
        %v2660 = vmul.f32 %v2650, %v2658
        %v2661 = vmul.f32 %v2166, %v465
        %v2662 = vmul.f32 %v2171, %v465
        %v2664 = vsel %vm860, %v2659, 0
        %v2667 = vsel %vm860, %v2660, 0
        %2669 = vmatprep.subr.mxu0 0.0
        %2670 = vmatpush1.msra.mxu0 %v2661
        %2671 = vmatprep.subr.mxu0 0.0
        %2672 = vmatpush1.msra.mxu0 %v2662
        %2673 = vmatprep.subr.mxu0 0.0
        %2674 = vmatpush1.msra.mxu0 0.0
        %2675 = vmatprep.subr.mxu0 0.0
        %2676 = vmatpush1.msra.mxu0 0.0
        %2677 = vmatprep.subr.mxu0 0.0
        %2678 = vmatpush1.msra.mxu0 0.0
        %2679 = vmatprep.subr.mxu0 0.0
        %2680 = vmatpush1.msra.mxu0 0.0
        %2681 = vmatprep.subr.mxu0 0.0
        %2682 = vmatpush1.msra.mxu0 0.0
        %2683 = vmatprep.subr.mxu0 0.0
        %2684 = vmatpush1.msra.mxu0 0.0
        %2685 = vmatprep.subr.mxu0 0.0
        %2686 = vmatpush1.msra.mxu0 0.0
        %2687 = vmatprep.subr.mxu0 0.0
        %2688 = vmatpush1.msra.mxu0 0.0
        %2689 = vmatprep.subr.mxu0 0.0
        %2690 = vmatpush1.msra.mxu0 0.0
        %2691 = vmatprep.subr.mxu0 0.0
        %2692 = vmatpush1.msra.mxu0 0.0
        %2693 = vmatprep.subr.mxu0 0.0
        %2694 = vmatpush1.msra.mxu0 0.0
        %2695 = vmatprep.subr.mxu0 0.0
        %2696 = vmatpush1.msra.mxu0 0.0
        %2697 = vmatprep.subr.mxu0 0.0
        %2698 = vmatpush1.msra.mxu0 0.0
        %2699 = vmatprep.subr.mxu0 0.0
        %2700 = vmatpush1.msra.mxu0 0.0
        %2701 = vmatprep.subr.mxu0 0.0
        %2702 = vmatpush1.msra.mxu0 0.0
        %2703 = vmatprep.subr.mxu0 0.0
        %2704 = vmatpush1.msra.mxu0 0.0
        %2705 = vmatprep.subr.mxu0 0.0
        %2706 = vmatpush1.msra.mxu0 0.0
        %2707 = vmatprep.subr.mxu0 0.0
        %2708 = vmatpush1.msra.mxu0 0.0
        %2709 = vmatprep.subr.mxu0 0.0
        %2710 = vmatpush1.msra.mxu0 0.0
        %2711 = vmatprep.subr.mxu0 0.0
        %2712 = vmatpush1.msra.mxu0 0.0
        %2713 = vmatprep.subr.mxu0 0.0
        %2714 = vmatpush1.msra.mxu0 0.0
        %2715 = vmatprep.subr.mxu0 0.0
        %2716 = vmatpush1.msra.mxu0 0.0
        %2717 = vmatprep.subr.mxu0 0.0
        %2718 = vmatpush1.msra.mxu0 0.0
        %2719 = vmatprep.subr.mxu0 0.0
        %2720 = vmatpush1.msra.mxu0 0.0
        %2721 = vmatprep.subr.mxu0 0.0
        %2722 = vmatpush1.msra.mxu0 0.0
        %2723 = vmatprep.subr.mxu0 0.0
        %2724 = vmatpush1.msra.mxu0 0.0
        %2725 = vmatprep.subr.mxu0 0.0
        %2726 = vmatpush1.msra.mxu0 0.0
        %2727 = vmatprep.subr.mxu0 0.0
        %2728 = vmatpush1.msra.mxu0 0.0
        %2729 = vmatprep.subr.mxu0 0.0
        %2730 = vmatpush1.msra.mxu0 0.0
        %2731 = vmatprep.subr.mxu0 0.0
        %2732 = vmatpush1.msra.mxu0 0.0
        %2733 = vmatprep.mubr.f32.mxu0 0.0
        %2734 = vmatmul.mubr.f32.gmra.mrb[0].mxu0 %v2664
        %v2735 = vpop.f32.mrb[0].mxu0
        %v2736 = vadd.f32 0.0, %v2735
        %v2737 = vpop.f32.mrb[0].mxu0
        %2738 = vmatprep.mubr.f32.mxu0 0.0
        %2739 = vmatmul.mubr.f32.gmra.mrb[0].mxu0 %v2667
        %v2740 = vpop.f32.mrb[0].mxu0
        %v2741 = vadd.f32 0.0, %v2740
        %v2742 = vpop.f32.mrb[0].mxu0
        %2743 = vdwg.mxu0
        %v2744 = vadd.f32 %v2548, %v2736
        %v2745 = vadd.f32 %v2553, %v2741
        %v2746 = vmul.f32 %v1998, %v470
        %v2747 = vmul.f32 %v2003, %v470
        %v2749 = vsel %vm473, %v2746, 0
        %v2752 = vsel %vm473, %v2747, 0
        %2754 = vmatprep.subr.mxu0 0.0
        %2755 = vmatpush1.xpose.msra.mxu0 %v2183
        %2756 = vmatprep.subr.mxu0 0.0
        %2757 = vmatpush1.xpose.msra.mxu0 %v2186
        %2758 = vmatprep.subr.mxu0 0.0
        %2759 = vmatpush1.xpose.msra.mxu0 0.0
        %2760 = vmatprep.subr.mxu0 0.0
        %2761 = vmatpush1.xpose.msra.mxu0 0.0
        %2762 = vmatprep.subr.mxu0 0.0
        %2763 = vmatpush1.xpose.msra.mxu0 0.0
        %2764 = vmatprep.subr.mxu0 0.0
        %2765 = vmatpush1.xpose.msra.mxu0 0.0
        %2766 = vmatprep.subr.mxu0 0.0
        %2767 = vmatpush1.xpose.msra.mxu0 0.0
        %2768 = vmatprep.subr.mxu0 0.0
        %2769 = vmatpush1.xpose.msra.mxu0 0.0
        %2770 = vmatprep.subr.mxu0 0.0
        %2771 = vmatpush1.xpose.msra.mxu0 0.0
        %2772 = vmatprep.subr.mxu0 0.0
        %2773 = vmatpush1.xpose.msra.mxu0 0.0
        %2774 = vmatprep.subr.mxu0 0.0
        %2775 = vmatpush1.xpose.msra.mxu0 0.0
        %2776 = vmatprep.subr.mxu0 0.0
        %2777 = vmatpush1.xpose.msra.mxu0 0.0
        %2778 = vmatprep.subr.mxu0 0.0
        %2779 = vmatpush1.xpose.msra.mxu0 0.0
        %2780 = vmatprep.subr.mxu0 0.0
        %2781 = vmatpush1.xpose.msra.mxu0 0.0
        %2782 = vmatprep.subr.mxu0 0.0
        %2783 = vmatpush1.xpose.msra.mxu0 0.0
        %2784 = vmatprep.subr.mxu0 0.0
        %2785 = vmatpush1.xpose.msra.mxu0 0.0
        %2786 = vmatprep.subr.mxu0 0.0
        %2787 = vmatpush1.xpose.msra.mxu0 0.0
        %2788 = vmatprep.subr.mxu0 0.0
        %2789 = vmatpush1.xpose.msra.mxu0 0.0
        %2790 = vmatprep.subr.mxu0 0.0
        %2791 = vmatpush1.xpose.msra.mxu0 0.0
        %2792 = vmatprep.subr.mxu0 0.0
        %2793 = vmatpush1.xpose.msra.mxu0 0.0
        %2794 = vmatprep.subr.mxu0 0.0
        %2795 = vmatpush1.xpose.msra.mxu0 0.0
        %2796 = vmatprep.subr.mxu0 0.0
        %2797 = vmatpush1.xpose.msra.mxu0 0.0
        %2798 = vmatprep.subr.mxu0 0.0
        %2799 = vmatpush1.xpose.msra.mxu0 0.0
        %2800 = vmatprep.subr.mxu0 0.0
        %2801 = vmatpush1.xpose.msra.mxu0 0.0
        %2802 = vmatprep.subr.mxu0 0.0
        %2803 = vmatpush1.xpose.msra.mxu0 0.0
        %2804 = vmatprep.subr.mxu0 0.0
        %2805 = vmatpush1.xpose.msra.mxu0 0.0
        %2806 = vmatprep.subr.mxu0 0.0
        %2807 = vmatpush1.xpose.msra.mxu0 0.0
        %2808 = vmatprep.subr.mxu0 0.0
        %2809 = vmatpush1.xpose.msra.mxu0 0.0
        %2810 = vmatprep.subr.mxu0 0.0
        %2811 = vmatpush1.xpose.msra.mxu0 0.0
        %2812 = vmatprep.subr.mxu0 0.0
        %2813 = vmatpush1.xpose.msra.mxu0 0.0
        %2814 = vmatprep.subr.mxu0 0.0
        %2815 = vmatpush1.xpose.msra.mxu0 0.0
        %2816 = vmatprep.subr.mxu0 0.0
        %2817 = vmatpush1.xpose.msra.mxu0 0.0
        %2818 = vmatprep.mubr.f32.mxu0 0.0
        %2819 = vmatmul.mubr.f32.gmra.mrb[0].mxu0 %v2749
        %v2820 = vpop.f32.mrb[0].mxu0
        %v2821 = vadd.f32 %v451, %v2820
        %v2822 = vpop.f32.mrb[0].mxu0
        %2823 = vmatprep.mubr.f32.mxu0 0.0
        %2824 = vmatmul.mubr.f32.gmra.mrb[0].mxu0 %v2752
        %v2825 = vpop.f32.mrb[0].mxu0
        %v2826 = vadd.f32 %v452, %v2825
        %v2827 = vpop.f32.mrb[0].mxu0
        %2828 = vdwg.mxu0
        %v2829 = vsel %vm860, %v2821, -inf
        %2830 = vmax.xlane.f32.xlu0 %v2829
        %v2831 = vpop.xlane.xlu0 %2830
        %v2832 = vsel %vm860, %v2826, -inf
        %2833 = vmax.xlane.f32.xlu0 %v2832
        %v2834 = vpop.xlane.xlu0 %2833
        %v2835 = vsub.f32 %v2821, %v2831
        %v2836 = vsub.f32 %v2826, %v2834
        %v2837 = vmul.f32 %v2835, 1.442695
        %v2838 = vpow.pop %v2837
        %v2839 = vmul.f32 %v2836, 1.442695
        %v2840 = vpow.pop %v2839
        %v2841 = vsel %vm860, %v2838, 0.0
        %2842 = vadd.xlane.f32.xlu0 %v2841
        %v2843 = vpop.xlane.xlu0 %2842
        %v2844 = vsel %vm860, %v2840, 0.0
        %2845 = vadd.xlane.f32.xlu0 %v2844
        %v2846 = vpop.xlane.xlu0 %2845
        %v2847 = vrcp.pop %v2843
        %v2848 = vrcp.pop %v2846
        %v2849 = vmul.f32 %v2838, %v2847
        %v2850 = vmul.f32 %v2840, %v2848
        %v2851 = vmul.f32 %v2166, %v470
        %v2852 = vmul.f32 %v2171, %v470
        %v2854 = vsel %vm860, %v2849, 0
        %v2857 = vsel %vm860, %v2850, 0
        %2859 = vmatprep.subr.mxu0 0.0
        %2860 = vmatpush1.msra.mxu0 %v2851
        %2861 = vmatprep.subr.mxu0 0.0
        %2862 = vmatpush1.msra.mxu0 %v2852
        %2863 = vmatprep.subr.mxu0 0.0
        %2864 = vmatpush1.msra.mxu0 0.0
        %2865 = vmatprep.subr.mxu0 0.0
        %2866 = vmatpush1.msra.mxu0 0.0
        %2867 = vmatprep.subr.mxu0 0.0
        %2868 = vmatpush1.msra.mxu0 0.0
        %2869 = vmatprep.subr.mxu0 0.0
        %2870 = vmatpush1.msra.mxu0 0.0
        %2871 = vmatprep.subr.mxu0 0.0
        %2872 = vmatpush1.msra.mxu0 0.0
        %2873 = vmatprep.subr.mxu0 0.0
        %2874 = vmatpush1.msra.mxu0 0.0
        %2875 = vmatprep.subr.mxu0 0.0
        %2876 = vmatpush1.msra.mxu0 0.0
        %2877 = vmatprep.subr.mxu0 0.0
        %2878 = vmatpush1.msra.mxu0 0.0
        %2879 = vmatprep.subr.mxu0 0.0
        %2880 = vmatpush1.msra.mxu0 0.0
        %2881 = vmatprep.subr.mxu0 0.0
        %2882 = vmatpush1.msra.mxu0 0.0
        %2883 = vmatprep.subr.mxu0 0.0
        %2884 = vmatpush1.msra.mxu0 0.0
        %2885 = vmatprep.subr.mxu0 0.0
        %2886 = vmatpush1.msra.mxu0 0.0
        %2887 = vmatprep.subr.mxu0 0.0
        %2888 = vmatpush1.msra.mxu0 0.0
        %2889 = vmatprep.subr.mxu0 0.0
        %2890 = vmatpush1.msra.mxu0 0.0
        %2891 = vmatprep.subr.mxu0 0.0
        %2892 = vmatpush1.msra.mxu0 0.0
        %2893 = vmatprep.subr.mxu0 0.0
        %2894 = vmatpush1.msra.mxu0 0.0
        %2895 = vmatprep.subr.mxu0 0.0
        %2896 = vmatpush1.msra.mxu0 0.0
        %2897 = vmatprep.subr.mxu0 0.0
        %2898 = vmatpush1.msra.mxu0 0.0
        %2899 = vmatprep.subr.mxu0 0.0
        %2900 = vmatpush1.msra.mxu0 0.0
        %2901 = vmatprep.subr.mxu0 0.0
        %2902 = vmatpush1.msra.mxu0 0.0
        %2903 = vmatprep.subr.mxu0 0.0
        %2904 = vmatpush1.msra.mxu0 0.0
        %2905 = vmatprep.subr.mxu0 0.0
        %2906 = vmatpush1.msra.mxu0 0.0
        %2907 = vmatprep.subr.mxu0 0.0
        %2908 = vmatpush1.msra.mxu0 0.0
        %2909 = vmatprep.subr.mxu0 0.0
        %2910 = vmatpush1.msra.mxu0 0.0
        %2911 = vmatprep.subr.mxu0 0.0
        %2912 = vmatpush1.msra.mxu0 0.0
        %2913 = vmatprep.subr.mxu0 0.0
        %2914 = vmatpush1.msra.mxu0 0.0
        %2915 = vmatprep.subr.mxu0 0.0
        %2916 = vmatpush1.msra.mxu0 0.0
        %2917 = vmatprep.subr.mxu0 0.0
        %2918 = vmatpush1.msra.mxu0 0.0
        %2919 = vmatprep.subr.mxu0 0.0
        %2920 = vmatpush1.msra.mxu0 0.0
        %2921 = vmatprep.subr.mxu0 0.0
        %2922 = vmatpush1.msra.mxu0 0.0
        %2923 = vmatprep.mubr.f32.mxu0 0.0
        %2924 = vmatmul.mubr.f32.gmra.mrb[0].mxu0 %v2854
        %v2925 = vpop.f32.mrb[0].mxu0
        %v2926 = vadd.f32 0.0, %v2925
        %v2927 = vpop.f32.mrb[0].mxu0
        %2928 = vmatprep.mubr.f32.mxu0 0.0
        %2929 = vmatmul.mubr.f32.gmra.mrb[0].mxu0 %v2857
        %v2930 = vpop.f32.mrb[0].mxu0
        %v2931 = vadd.f32 0.0, %v2930
        %v2932 = vpop.f32.mrb[0].mxu0
        %2933 = vdwg.mxu0
        %v2934 = vadd.f32 %v2744, %v2926
        %v2935 = vadd.f32 %v2745, %v2931
        %v2936 = vld [vmem:[%s2 + $0x1d8] sm:$0xff]
        %v2937 = vld [vmem:[%s2 + $0x1e0] sm:$0xff]
        %v2938 = vld [vmem:[%s2 + $0x1e8] sm:$0xff]
        %v2939 = vld [vmem:[%s2 + $0x1f0] sm:$0xff]
        %v2941 = vsel %vm473, %v2934, 0
        %v2944 = vsel %vm473, %v2935, 0
        %2946 = vmatprep.subr.mxu0 0.0
        %2947 = vmatpush1.msra.mxu0 %v2936
        %2948 = vmatprep.subr.mxu0 0.0
        %2949 = vmatpush1.msra.mxu0 %v2937
        %2950 = vmatprep.subr.mxu0 0.0
        %2951 = vmatpush1.msra.mxu0 %v2938
        %2952 = vmatprep.subr.mxu0 0.0
        %2953 = vmatpush1.msra.mxu0 %v2939
        %2954 = vmatprep.subr.mxu0 0.0
        %2955 = vmatpush1.msra.mxu0 0.0
        %2956 = vmatprep.subr.mxu0 0.0
        %2957 = vmatpush1.msra.mxu0 0.0
        %2958 = vmatprep.subr.mxu0 0.0
        %2959 = vmatpush1.msra.mxu0 0.0
        %2960 = vmatprep.subr.mxu0 0.0
        %2961 = vmatpush1.msra.mxu0 0.0
        %2962 = vmatprep.subr.mxu0 0.0
        %2963 = vmatpush1.msra.mxu0 0.0
        %2964 = vmatprep.subr.mxu0 0.0
        %2965 = vmatpush1.msra.mxu0 0.0
        %2966 = vmatprep.subr.mxu0 0.0
        %2967 = vmatpush1.msra.mxu0 0.0
        %2968 = vmatprep.subr.mxu0 0.0
        %2969 = vmatpush1.msra.mxu0 0.0
        %2970 = vmatprep.subr.mxu0 0.0
        %2971 = vmatpush1.msra.mxu0 0.0
        %2972 = vmatprep.subr.mxu0 0.0
        %2973 = vmatpush1.msra.mxu0 0.0
        %2974 = vmatprep.subr.mxu0 0.0
        %2975 = vmatpush1.msra.mxu0 0.0
        %2976 = vmatprep.subr.mxu0 0.0
        %2977 = vmatpush1.msra.mxu0 0.0
        %2978 = vmatprep.subr.mxu0 0.0
        %2979 = vmatpush1.msra.mxu0 0.0
        %2980 = vmatprep.subr.mxu0 0.0
        %2981 = vmatpush1.msra.mxu0 0.0
        %2982 = vmatprep.subr.mxu0 0.0
        %2983 = vmatpush1.msra.mxu0 0.0
        %2984 = vmatprep.subr.mxu0 0.0
        %2985 = vmatpush1.msra.mxu0 0.0
        %2986 = vmatprep.subr.mxu0 0.0
        %2987 = vmatpush1.msra.mxu0 0.0
        %2988 = vmatprep.subr.mxu0 0.0
        %2989 = vmatpush1.msra.mxu0 0.0
        %2990 = vmatprep.subr.mxu0 0.0
        %2991 = vmatpush1.msra.mxu0 0.0
        %2992 = vmatprep.subr.mxu0 0.0
        %2993 = vmatpush1.msra.mxu0 0.0
        %2994 = vmatprep.subr.mxu0 0.0
        %2995 = vmatpush1.msra.mxu0 0.0
        %2996 = vmatprep.subr.mxu0 0.0
        %2997 = vmatpush1.msra.mxu0 0.0
        %2998 = vmatprep.subr.mxu0 0.0
        %2999 = vmatpush1.msra.mxu0 0.0
        %3000 = vmatprep.subr.mxu0 0.0
        %3001 = vmatpush1.msra.mxu0 0.0
        %3002 = vmatprep.subr.mxu0 0.0
        %3003 = vmatpush1.msra.mxu0 0.0
        %3004 = vmatprep.subr.mxu0 0.0
        %3005 = vmatpush1.msra.mxu0 0.0
        %3006 = vmatprep.subr.mxu0 0.0
        %3007 = vmatpush1.msra.mxu0 0.0
        %3008 = vmatprep.subr.mxu0 0.0
        %3009 = vmatpush1.msra.mxu0 0.0
        %3010 = vmatprep.mubr.f32.mxu0 0.0
        %3011 = vmatmul.mubr.f32.gmra.mrb[0].mxu0 %v2941
        %v3012 = vpop.f32.mrb[0].mxu0
        %v3013 = vadd.f32 0.0, %v3012
        %v3014 = vpop.f32.mrb[0].mxu0
        %3015 = vmatprep.mubr.f32.mxu0 0.0
        %3016 = vmatmul.mubr.f32.gmra.mrb[0].mxu0 %v2944
        %v3017 = vpop.f32.mrb[0].mxu0
        %v3018 = vadd.f32 0.0, %v3017
        %v3019 = vpop.f32.mrb[0].mxu0
        %3020 = vdwg.mxu0
        %v3021 = vadd.f32 %v1874, %v3013
        %v3022 = vadd.f32 %v1875, %v3018
        %v3023 = vld [vmem:[%s2 + $0x72] sm:$0x1]
        %v3024 = vlaneseq
        %v3025 = vshrl.u32 %v3024, 7
        %v3026 = vsub.s32 0, %v3025
        %v3027 = vrot.slane %v3023, %v3026
        %v3028 = vadd.f32 %v3021, %v3027
        %v3029 = vadd.f32 %v3022, %v3027
        %v3030 = vld [vmem:[%s2 + $0x73] sm:$0x1]
        %v3031 = vld [vmem:[%s2 + $0x74] sm:$0x1]
        %v3032 = vsel %vm473, %v3028, 0.0
        %3033 = vadd.xlane.f32.xlu0 %v3032
        %v3034 = vpop.xlane.xlu0 %3033
        %v3035 = vsel %vm473, %v3029, 0.0
        %3036 = vadd.xlane.f32.xlu0 %v3035
        %v3037 = vpop.xlane.xlu0 %3036
        %v3038 = vmul.f32 %v3034, %v480
        %v3039 = vmul.f32 %v3037, %v480
        %v3040 = vsub.f32 %v3028, %v3038
        %v3041 = vsub.f32 %v3029, %v3039
        %v3042 = vmul.f32 %v3040, %v3040
        %v3043 = vmul.f32 %v3041, %v3041
        %v3044 = vsel %vm473, %v3042, 0.0
        %3045 = vadd.xlane.f32.xlu0 %v3044
        %v3046 = vpop.xlane.xlu0 %3045
        %v3047 = vsel %vm473, %v3043, 0.0
        %3048 = vadd.xlane.f32.xlu0 %v3047
        %v3049 = vpop.xlane.xlu0 %3048
        %v3050 = vmul.f32 %v3046, %v480
        %v3051 = vmul.f32 %v3049, %v480
        %v3052 = vadd.f32 %v3050, 1e-05
        %v3053 = vadd.f32 %v3051, 1e-05
        %v3054 = vrsqrt.pop %v3052
        %v3055 = vrsqrt.pop %v3053
        %v3056 = vmul.f32 %v3040, %v3054
        %v3057 = vmul.f32 %v3041, %v3055
        %v3058 = vlaneseq
        %v3059 = vshrl.u32 %v3058, 7
        %v3060 = vsub.s32 0, %v3059
        %v3061 = vrot.slane %v3030, %v3060
        %v3062 = vmul.f32 %v3056, %v3061
        %v3063 = vmul.f32 %v3057, %v3061
        %v3064 = vlaneseq
        %v3065 = vshrl.u32 %v3064, 7
        %v3066 = vsub.s32 0, %v3065
        %v3067 = vrot.slane %v3031, %v3066
        %v3068 = vadd.f32 %v3062, %v3067
        %v3069 = vadd.f32 %v3063, %v3067
        %v3070 = vld [vmem:[%s3 + $0x28] sm:$0xff]
        %v3071 = vld [vmem:[%s3 + $0x30] sm:$0xff]
        %v3072 = vld [vmem:[%s3 + $0x38] sm:$0xff]
        %v3073 = vld [vmem:[%s3 + $0x40] sm:$0xff]
        %v3074 = vld [vmem:[%s3 + $0x48] sm:$0x1]
        %v3075 = vlaneseq
        %v3076 = vshrl.u32 %v3075, 7
        %v3077 = vsub.s32 0, %v3076
        %v3078 = vrot.slane %v3074, %v3077
        %v3080 = vsel %vm473, %v3068, 0
        %v3083 = vsel %vm473, %v3069, 0
        %3085 = vmatprep.subr.mxu0 0.0
        %3086 = vmatpush1.msra.mxu0 %v3070
        %3087 = vmatprep.subr.mxu0 0.0
        %3088 = vmatpush1.msra.mxu0 %v3071
        %3089 = vmatprep.subr.mxu0 0.0
        %3090 = vmatpush1.msra.mxu0 %v3072
        %3091 = vmatprep.subr.mxu0 0.0
        %3092 = vmatpush1.msra.mxu0 %v3073
        %3093 = vmatprep.subr.mxu0 0.0
        %3094 = vmatpush1.msra.mxu0 0.0
        %3095 = vmatprep.subr.mxu0 0.0
        %3096 = vmatpush1.msra.mxu0 0.0
        %3097 = vmatprep.subr.mxu0 0.0
        %3098 = vmatpush1.msra.mxu0 0.0
        %3099 = vmatprep.subr.mxu0 0.0
        %3100 = vmatpush1.msra.mxu0 0.0
        %3101 = vmatprep.subr.mxu0 0.0
        %3102 = vmatpush1.msra.mxu0 0.0
        %3103 = vmatprep.subr.mxu0 0.0
        %3104 = vmatpush1.msra.mxu0 0.0
        %3105 = vmatprep.subr.mxu0 0.0
        %3106 = vmatpush1.msra.mxu0 0.0
        %3107 = vmatprep.subr.mxu0 0.0
        %3108 = vmatpush1.msra.mxu0 0.0
        %3109 = vmatprep.subr.mxu0 0.0
        %3110 = vmatpush1.msra.mxu0 0.0
        %3111 = vmatprep.subr.mxu0 0.0
        %3112 = vmatpush1.msra.mxu0 0.0
        %3113 = vmatprep.subr.mxu0 0.0
        %3114 = vmatpush1.msra.mxu0 0.0
        %3115 = vmatprep.subr.mxu0 0.0
        %3116 = vmatpush1.msra.mxu0 0.0
        %3117 = vmatprep.subr.mxu0 0.0
        %3118 = vmatpush1.msra.mxu0 0.0
        %3119 = vmatprep.subr.mxu0 0.0
        %3120 = vmatpush1.msra.mxu0 0.0
        %3121 = vmatprep.subr.mxu0 0.0
        %3122 = vmatpush1.msra.mxu0 0.0
        %3123 = vmatprep.subr.mxu0 0.0
        %3124 = vmatpush1.msra.mxu0 0.0
        %3125 = vmatprep.subr.mxu0 0.0
        %3126 = vmatpush1.msra.mxu0 0.0
        %3127 = vmatprep.subr.mxu0 0.0
        %3128 = vmatpush1.msra.mxu0 0.0
        %3129 = vmatprep.subr.mxu0 0.0
        %3130 = vmatpush1.msra.mxu0 0.0
        %3131 = vmatprep.subr.mxu0 0.0
        %3132 = vmatpush1.msra.mxu0 0.0
        %3133 = vmatprep.subr.mxu0 0.0
        %3134 = vmatpush1.msra.mxu0 0.0
        %3135 = vmatprep.subr.mxu0 0.0
        %3136 = vmatpush1.msra.mxu0 0.0
        %3137 = vmatprep.subr.mxu0 0.0
        %3138 = vmatpush1.msra.mxu0 0.0
        %3139 = vmatprep.subr.mxu0 0.0
        %3140 = vmatpush1.msra.mxu0 0.0
        %3141 = vmatprep.subr.mxu0 0.0
        %3142 = vmatpush1.msra.mxu0 0.0
        %3143 = vmatprep.subr.mxu0 0.0
        %3144 = vmatpush1.msra.mxu0 0.0
        %3145 = vmatprep.subr.mxu0 0.0
        %3146 = vmatpush1.msra.mxu0 0.0
        %3147 = vmatprep.subr.mxu0 0.0
        %3148 = vmatpush1.msra.mxu0 0.0
        %3149 = vmatprep.mubr.f32.mxu0 0.0
        %3150 = vmatmul.mubr.f32.gmra.mrb[0].mxu0 %v3080
        %v3151 = vpop.f32.mrb[0].mxu0
        %v3152 = vadd.f32 %v3078, %v3151
        %v3153 = vpop.f32.mrb[0].mxu0
        %3154 = vmatprep.mubr.f32.mxu0 0.0
        %3155 = vmatmul.mubr.f32.gmra.mrb[0].mxu0 %v3083
        %v3156 = vpop.f32.mrb[0].mxu0
        %v3157 = vadd.f32 %v3078, %v3156
        %v3158 = vpop.f32.mrb[0].mxu0
        %3159 = vdwg.mxu0
        %v3160 = vmul.f32 %v3152, 0.5
        %v3161 = vmul.f32 %v3157, 0.5
        %v3162 = vmul.f32 %v3152, 0.044715
        %v3163 = vmul.f32 %v3157, 0.044715
        %v3164 = vmul.f32 %v3162, %v3152
        %v3165 = vmul.f32 %v3163, %v3157
        %v3166 = vmul.f32 %v3164, %v3152
        %v3167 = vmul.f32 %v3165, %v3157
        %v3168 = vadd.f32 %v3152, %v3166
        %v3169 = vadd.f32 %v3157, %v3167
        %v3170 = vmul.f32 %v3168, 0.7978846
        %v3171 = vmul.f32 %v3169, 0.7978846
        %v3172 = vtanh.pop %v3170
        %v3173 = vtanh.pop %v3171
        %v3174 = vadd.f32 %v3172, 1.0
        %v3175 = vadd.f32 %v3173, 1.0
        %v3176 = vmul.f32 %v3160, %v3174
        %v3177 = vmul.f32 %v3161, %v3175
        %v3178 = vld [vmem:[%s2 + $0x1f8] sm:$0xff]
        %v3179 = vld [vmem:[%s2 + $0x200] sm:$0xff]
        %v3180 = vld [vmem:[%s2 + $0x208] sm:$0xff]
        %v3181 = vld [vmem:[%s2 + $0x210] sm:$0xff]
        %v3182 = vld [vmem:[%s2 + $0x218] sm:$0xff]
        %v3183 = vld [vmem:[%s2 + $0x220] sm:$0xff]
        %v3184 = vld [vmem:[%s2 + $0x228] sm:$0xff]
        %v3185 = vld [vmem:[%s2 + $0x230] sm:$0xff]
        %v3186 = vld [vmem:[%s2 + $0x238] sm:$0xff]
        %v3187 = vld [vmem:[%s2 + $0x240] sm:$0xff]
        %v3188 = vld [vmem:[%s2 + $0x248] sm:$0xff]
        %v3189 = vld [vmem:[%s2 + $0x250] sm:$0xff]
        %v3190 = vld [vmem:[%s2 + $0x258] sm:$0xff]
        %v3191 = vld [vmem:[%s2 + $0x260] sm:$0xff]
        %v3192 = vld [vmem:[%s2 + $0x268] sm:$0xff]
        %v3193 = vld [vmem:[%s2 + $0x270] sm:$0xff]
        %3194 = vmatprep.subr.mxu0 0.0
        %3195 = vmatpush1.msra.mxu0 %v3178
        %3196 = vmatprep.subr.mxu0 0.0
        %3197 = vmatpush1.msra.mxu0 %v3179
        %3198 = vmatprep.subr.mxu0 0.0
        %3199 = vmatpush1.msra.mxu0 %v3180
        %3200 = vmatprep.subr.mxu0 0.0
        %3201 = vmatpush1.msra.mxu0 %v3181
        %3202 = vmatprep.subr.mxu0 0.0
        %3203 = vmatpush1.msra.mxu0 %v3182
        %3204 = vmatprep.subr.mxu0 0.0
        %3205 = vmatpush1.msra.mxu0 %v3183
        %3206 = vmatprep.subr.mxu0 0.0
        %3207 = vmatpush1.msra.mxu0 %v3184
        %3208 = vmatprep.subr.mxu0 0.0
        %3209 = vmatpush1.msra.mxu0 %v3185
        %3210 = vmatprep.subr.mxu0 0.0
        %3211 = vmatpush1.msra.mxu0 %v3186
        %3212 = vmatprep.subr.mxu0 0.0
        %3213 = vmatpush1.msra.mxu0 %v3187
        %3214 = vmatprep.subr.mxu0 0.0
        %3215 = vmatpush1.msra.mxu0 %v3188
        %3216 = vmatprep.subr.mxu0 0.0
        %3217 = vmatpush1.msra.mxu0 %v3189
        %3218 = vmatprep.subr.mxu0 0.0
        %3219 = vmatpush1.msra.mxu0 %v3190
        %3220 = vmatprep.subr.mxu0 0.0
        %3221 = vmatpush1.msra.mxu0 %v3191
        %3222 = vmatprep.subr.mxu0 0.0
        %3223 = vmatpush1.msra.mxu0 %v3192
        %3224 = vmatprep.subr.mxu0 0.0
        %3225 = vmatpush1.msra.mxu0 %v3193
        %3226 = vmatprep.subr.mxu0 0.0
        %3227 = vmatpush1.msra.mxu0 0.0
        %3228 = vmatprep.subr.mxu0 0.0
        %3229 = vmatpush1.msra.mxu0 0.0
        %3230 = vmatprep.subr.mxu0 0.0
        %3231 = vmatpush1.msra.mxu0 0.0
        %3232 = vmatprep.subr.mxu0 0.0
        %3233 = vmatpush1.msra.mxu0 0.0
        %3234 = vmatprep.subr.mxu0 0.0
        %3235 = vmatpush1.msra.mxu0 0.0
        %3236 = vmatprep.subr.mxu0 0.0
        %3237 = vmatpush1.msra.mxu0 0.0
        %3238 = vmatprep.subr.mxu0 0.0
        %3239 = vmatpush1.msra.mxu0 0.0
        %3240 = vmatprep.subr.mxu0 0.0
        %3241 = vmatpush1.msra.mxu0 0.0
        %3242 = vmatprep.subr.mxu0 0.0
        %3243 = vmatpush1.msra.mxu0 0.0
        %3244 = vmatprep.subr.mxu0 0.0
        %3245 = vmatpush1.msra.mxu0 0.0
        %3246 = vmatprep.subr.mxu0 0.0
        %3247 = vmatpush1.msra.mxu0 0.0
        %3248 = vmatprep.subr.mxu0 0.0
        %3249 = vmatpush1.msra.mxu0 0.0
        %3250 = vmatprep.subr.mxu0 0.0
        %3251 = vmatpush1.msra.mxu0 0.0
        %3252 = vmatprep.subr.mxu0 0.0
        %3253 = vmatpush1.msra.mxu0 0.0
        %3254 = vmatprep.subr.mxu0 0.0
        %3255 = vmatpush1.msra.mxu0 0.0
        %3256 = vmatprep.subr.mxu0 0.0
        %3257 = vmatpush1.msra.mxu0 0.0
        %3258 = vmatprep.mubr.f32.mxu0 0.0
        %3259 = vmatmul.mubr.f32.gmra.mrb[0].mxu0 %v3176
        %v3260 = vpop.f32.mrb[0].mxu0
        %v3261 = vpop.f32.mrb[0].mxu0
        %3262 = vmatprep.mubr.f32.mxu0 0.0
        %3263 = vmatmul.mubr.f32.gmra.mrb[0].mxu0 %v3177
        %v3264 = vpop.f32.mrb[0].mxu0
        %v3265 = vadd.f32 0.0, %v3264
        %v3266 = vpop.f32.mrb[0].mxu0
        %3267 = vdwg.mxu0
        %v3268 = vadd.f32 %v3029, %v3265
        %v3269 = vld [vmem:[%s2 + $0x75] sm:$0x1]
        %v3270 = vlaneseq
        %v3271 = vshrl.u32 %v3270, 7
        %v3272 = vsub.s32 0, %v3271
        %v3273 = vrot.slane %v3269, %v3272
        %v3274 = vadd.f32 %v3268, %v3273
        %v3275 = vld [vmem:[%s2 + $0x62] sm:$0x1]
        %v3276 = vld [vmem:[%s2 + $0x63] sm:$0x1]
        %v3277 = vsel %vm473, %v3274, 0.0
        %3278 = vadd.xlane.f32.xlu0 %v3277
        %v3279 = vpop.xlane.xlu0 %3278
        %v3280 = vmul.f32 %v3279, %v480
        %v3281 = vsub.f32 %v3274, %v3280
        %v3282 = vmul.f32 %v3281, %v3281
        %v3283 = vsel %vm473, %v3282, 0.0
        %3284 = vadd.xlane.f32.xlu0 %v3283
        %v3285 = vpop.xlane.xlu0 %3284
        %v3286 = vmul.f32 %v3285, %v480
        %v3287 = vadd.f32 %v3286, 1e-05
        %v3288 = vrsqrt.pop %v3287
        %v3289 = vmul.f32 %v3281, %v3288
        %v3290 = vlaneseq
        %v3291 = vshrl.u32 %v3290, 7
        %v3292 = vsub.s32 0, %v3291
        %v3293 = vrot.slane %v3275, %v3292
        %v3294 = vmul.f32 %v3289, %v3293
        %v3295 = vlaneseq
        %v3296 = vshrl.u32 %v3295, 7
        %v3297 = vsub.s32 0, %v3296
        %v3298 = vrot.slane %v3276, %v3297
        %v3299 = vadd.f32 %v3294, %v3298
        %v3300 = vld [vmem:[%s4 + $0xa0] sm:$0x1]
        %v3301 = vld [vmem:[%s4] sm:$0xff]
        %v3302 = vld [vmem:[%s4 + $0x8] sm:$0xff]
        %v3303 = vld [vmem:[%s4 + $0x10] sm:$0xff]
        %v3304 = vld [vmem:[%s4 + $0x18] sm:$0xff]
        %v3306 = vsel %vm473, %v3299, 0
        %3308 = vmatprep.subr.mxu0 0.0
        %3309 = vmatpush1.msra.mxu0 %v3301
        %3310 = vmatprep.subr.mxu0 0.0
        %3311 = vmatpush1.msra.mxu0 %v3302
        %3312 = vmatprep.subr.mxu0 0.0
        %3313 = vmatpush1.msra.mxu0 %v3303
        %3314 = vmatprep.subr.mxu0 0.0
        %3315 = vmatpush1.msra.mxu0 %v3304
        %3316 = vmatprep.subr.mxu0 0.0
        %3317 = vmatpush1.msra.mxu0 0.0
        %3318 = vmatprep.subr.mxu0 0.0
        %3319 = vmatpush1.msra.mxu0 0.0
        %3320 = vmatprep.subr.mxu0 0.0
        %3321 = vmatpush1.msra.mxu0 0.0
        %3322 = vmatprep.subr.mxu0 0.0
        %3323 = vmatpush1.msra.mxu0 0.0
        %3324 = vmatprep.subr.mxu0 0.0
        %3325 = vmatpush1.msra.mxu0 0.0
        %3326 = vmatprep.subr.mxu0 0.0
        %3327 = vmatpush1.msra.mxu0 0.0
        %3328 = vmatprep.subr.mxu0 0.0
        %3329 = vmatpush1.msra.mxu0 0.0
        %3330 = vmatprep.subr.mxu0 0.0
        %3331 = vmatpush1.msra.mxu0 0.0
        %3332 = vmatprep.subr.mxu0 0.0
        %3333 = vmatpush1.msra.mxu0 0.0
        %3334 = vmatprep.subr.mxu0 0.0
        %3335 = vmatpush1.msra.mxu0 0.0
        %3336 = vmatprep.subr.mxu0 0.0
        %3337 = vmatpush1.msra.mxu0 0.0
        %3338 = vmatprep.subr.mxu0 0.0
        %3339 = vmatpush1.msra.mxu0 0.0
        %3340 = vmatprep.subr.mxu0 0.0
        %3341 = vmatpush1.msra.mxu0 0.0
        %3342 = vmatprep.subr.mxu0 0.0
        %3343 = vmatpush1.msra.mxu0 0.0
        %3344 = vmatprep.subr.mxu0 0.0
        %3345 = vmatpush1.msra.mxu0 0.0
        %3346 = vmatprep.subr.mxu0 0.0
        %3347 = vmatpush1.msra.mxu0 0.0
        %3348 = vmatprep.subr.mxu0 0.0
        %3349 = vmatpush1.msra.mxu0 0.0
        %3350 = vmatprep.subr.mxu0 0.0
        %3351 = vmatpush1.msra.mxu0 0.0
        %3352 = vmatprep.subr.mxu0 0.0
        %3353 = vmatpush1.msra.mxu0 0.0
        %3354 = vmatprep.subr.mxu0 0.0
        %3355 = vmatpush1.msra.mxu0 0.0
        %3356 = vmatprep.subr.mxu0 0.0
        %3357 = vmatpush1.msra.mxu0 0.0
        %3358 = vmatprep.subr.mxu0 0.0
        %3359 = vmatpush1.msra.mxu0 0.0
        %3360 = vmatprep.subr.mxu0 0.0
        %3361 = vmatpush1.msra.mxu0 0.0
        %3362 = vmatprep.subr.mxu0 0.0
        %3363 = vmatpush1.msra.mxu0 0.0
        %3364 = vmatprep.subr.mxu0 0.0
        %3365 = vmatpush1.msra.mxu0 0.0
        %3366 = vmatprep.subr.mxu0 0.0
        %3367 = vmatpush1.msra.mxu0 0.0
        %3368 = vmatprep.subr.mxu0 0.0
        %3369 = vmatpush1.msra.mxu0 0.0
        %3370 = vmatprep.subr.mxu0 0.0
        %3371 = vmatpush1.msra.mxu0 0.0
        %3372 = vmatprep.mubr.f32.mxu0 0.0
        %3373 = vmatmul.mubr.f32.gmra.mrb[0].mxu0 %v3306
        %v3374 = vpop.f32.mrb[0].mxu0
        %v3375 = vadd.f32 0.0, %v3374
        %v3376 = vpop.f32.mrb[0].mxu0
        %3377 = vdwg.mxu0
        %v3378 = vadd.f32 %v3300, %v3375
        %v3379 = vld [vmem:[%s4 + $0x20] sm:$0xff]
        %v3380 = vld [vmem:[%s4 + $0x28] sm:$0xff]
        %v3381 = vld [vmem:[%s4 + $0x30] sm:$0xff]
        %v3382 = vld [vmem:[%s4 + $0x38] sm:$0xff]
        %v3383 = vrot.slane %v3299, 1
        %v3384 = vsel %vm473, %v3383, 0
        %3386 = vmatprep.subr.mxu0 0.0
        %3387 = vmatpush1.msra.mxu0 %v3379
        %3388 = vmatprep.subr.mxu0 0.0
        %3389 = vmatpush1.msra.mxu0 %v3380
        %3390 = vmatprep.subr.mxu0 0.0
        %3391 = vmatpush1.msra.mxu0 %v3381
        %3392 = vmatprep.subr.mxu0 0.0
        %3393 = vmatpush1.msra.mxu0 %v3382
        %3394 = vmatprep.subr.mxu0 0.0
        %3395 = vmatpush1.msra.mxu0 0.0
        %3396 = vmatprep.subr.mxu0 0.0
        %3397 = vmatpush1.msra.mxu0 0.0
        %3398 = vmatprep.subr.mxu0 0.0
        %3399 = vmatpush1.msra.mxu0 0.0
        %3400 = vmatprep.subr.mxu0 0.0
        %3401 = vmatpush1.msra.mxu0 0.0
        %3402 = vmatprep.subr.mxu0 0.0
        %3403 = vmatpush1.msra.mxu0 0.0
        %3404 = vmatprep.subr.mxu0 0.0
        %3405 = vmatpush1.msra.mxu0 0.0
        %3406 = vmatprep.subr.mxu0 0.0
        %3407 = vmatpush1.msra.mxu0 0.0
        %3408 = vmatprep.subr.mxu0 0.0
        %3409 = vmatpush1.msra.mxu0 0.0
        %3410 = vmatprep.subr.mxu0 0.0
        %3411 = vmatpush1.msra.mxu0 0.0
        %3412 = vmatprep.subr.mxu0 0.0
        %3413 = vmatpush1.msra.mxu0 0.0
        %3414 = vmatprep.subr.mxu0 0.0
        %3415 = vmatpush1.msra.mxu0 0.0
        %3416 = vmatprep.subr.mxu0 0.0
        %3417 = vmatpush1.msra.mxu0 0.0
        %3418 = vmatprep.subr.mxu0 0.0
        %3419 = vmatpush1.msra.mxu0 0.0
        %3420 = vmatprep.subr.mxu0 0.0
        %3421 = vmatpush1.msra.mxu0 0.0
        %3422 = vmatprep.subr.mxu0 0.0
        %3423 = vmatpush1.msra.mxu0 0.0
        %3424 = vmatprep.subr.mxu0 0.0
        %3425 = vmatpush1.msra.mxu0 0.0
        %3426 = vmatprep.subr.mxu0 0.0
        %3427 = vmatpush1.msra.mxu0 0.0
        %3428 = vmatprep.subr.mxu0 0.0
        %3429 = vmatpush1.msra.mxu0 0.0
        %3430 = vmatprep.subr.mxu0 0.0
        %3431 = vmatpush1.msra.mxu0 0.0
        %3432 = vmatprep.subr.mxu0 0.0
        %3433 = vmatpush1.msra.mxu0 0.0
        %3434 = vmatprep.subr.mxu0 0.0
        %3435 = vmatpush1.msra.mxu0 0.0
        %3436 = vmatprep.subr.mxu0 0.0
        %3437 = vmatpush1.msra.mxu0 0.0
        %3438 = vmatprep.subr.mxu0 0.0
        %3439 = vmatpush1.msra.mxu0 0.0
        %3440 = vmatprep.subr.mxu0 0.0
        %3441 = vmatpush1.msra.mxu0 0.0
        %3442 = vmatprep.subr.mxu0 0.0
        %3443 = vmatpush1.msra.mxu0 0.0
        %3444 = vmatprep.subr.mxu0 0.0
        %3445 = vmatpush1.msra.mxu0 0.0
        %3446 = vmatprep.subr.mxu0 0.0
        %3447 = vmatpush1.msra.mxu0 0.0
        %3448 = vmatprep.subr.mxu0 0.0
        %3449 = vmatpush1.msra.mxu0 0.0
        %3450 = vmatprep.mubr.f32.mxu0 0.0
        %3451 = vmatmul.mubr.f32.gmra.mrb[0].mxu0 %v3384
        %v3452 = vpop.f32.mrb[0].mxu0
        %v3453 = vadd.f32 0.0, %v3452
        %v3454 = vpop.f32.mrb[0].mxu0
        %3455 = vdwg.mxu0
        %v3456 = vadd.f32 %v3378, %v3453
        %v3457 = vld [vmem:[%s4 + $0x40] sm:$0xff]
        %v3458 = vld [vmem:[%s4 + $0x48] sm:$0xff]
        %v3459 = vld [vmem:[%s4 + $0x50] sm:$0xff]
        %v3460 = vld [vmem:[%s4 + $0x58] sm:$0xff]
        %v3461 = vrot.slane %v3299, 2
        %v3462 = vsel %vm473, %v3461, 0
        %3464 = vmatprep.subr.mxu0 0.0
        %3465 = vmatpush1.msra.mxu0 %v3457
        %3466 = vmatprep.subr.mxu0 0.0
        %3467 = vmatpush1.msra.mxu0 %v3458
        %3468 = vmatprep.subr.mxu0 0.0
        %3469 = vmatpush1.msra.mxu0 %v3459
        %3470 = vmatprep.subr.mxu0 0.0
        %3471 = vmatpush1.msra.mxu0 %v3460
        %3472 = vmatprep.subr.mxu0 0.0
        %3473 = vmatpush1.msra.mxu0 0.0
        %3474 = vmatprep.subr.mxu0 0.0
        %3475 = vmatpush1.msra.mxu0 0.0
        %3476 = vmatprep.subr.mxu0 0.0
        %3477 = vmatpush1.msra.mxu0 0.0
        %3478 = vmatprep.subr.mxu0 0.0
        %3479 = vmatpush1.msra.mxu0 0.0
        %3480 = vmatprep.subr.mxu0 0.0
        %3481 = vmatpush1.msra.mxu0 0.0
        %3482 = vmatprep.subr.mxu0 0.0
        %3483 = vmatpush1.msra.mxu0 0.0
        %3484 = vmatprep.subr.mxu0 0.0
        %3485 = vmatpush1.msra.mxu0 0.0
        %3486 = vmatprep.subr.mxu0 0.0
        %3487 = vmatpush1.msra.mxu0 0.0
        %3488 = vmatprep.subr.mxu0 0.0
        %3489 = vmatpush1.msra.mxu0 0.0
        %3490 = vmatprep.subr.mxu0 0.0
        %3491 = vmatpush1.msra.mxu0 0.0
        %3492 = vmatprep.subr.mxu0 0.0
        %3493 = vmatpush1.msra.mxu0 0.0
        %3494 = vmatprep.subr.mxu0 0.0
        %3495 = vmatpush1.msra.mxu0 0.0
        %3496 = vmatprep.subr.mxu0 0.0
        %3497 = vmatpush1.msra.mxu0 0.0
        %3498 = vmatprep.subr.mxu0 0.0
        %3499 = vmatpush1.msra.mxu0 0.0
        %3500 = vmatprep.subr.mxu0 0.0
        %3501 = vmatpush1.msra.mxu0 0.0
        %3502 = vmatprep.subr.mxu0 0.0
        %3503 = vmatpush1.msra.mxu0 0.0
        %3504 = vmatprep.subr.mxu0 0.0
        %3505 = vmatpush1.msra.mxu0 0.0
        %3506 = vmatprep.subr.mxu0 0.0
        %3507 = vmatpush1.msra.mxu0 0.0
        %3508 = vmatprep.subr.mxu0 0.0
        %3509 = vmatpush1.msra.mxu0 0.0
        %3510 = vmatprep.subr.mxu0 0.0
        %3511 = vmatpush1.msra.mxu0 0.0
        %3512 = vmatprep.subr.mxu0 0.0
        %3513 = vmatpush1.msra.mxu0 0.0
        %3514 = vmatprep.subr.mxu0 0.0
        %3515 = vmatpush1.msra.mxu0 0.0
        %3516 = vmatprep.subr.mxu0 0.0
        %3517 = vmatpush1.msra.mxu0 0.0
        %3518 = vmatprep.subr.mxu0 0.0
        %3519 = vmatpush1.msra.mxu0 0.0
        %3520 = vmatprep.subr.mxu0 0.0
        %3521 = vmatpush1.msra.mxu0 0.0
        %3522 = vmatprep.subr.mxu0 0.0
        %3523 = vmatpush1.msra.mxu0 0.0
        %3524 = vmatprep.subr.mxu0 0.0
        %3525 = vmatpush1.msra.mxu0 0.0
        %3526 = vmatprep.subr.mxu0 0.0
        %3527 = vmatpush1.msra.mxu0 0.0
        %3528 = vmatprep.mubr.f32.mxu0 0.0
        %3529 = vmatmul.mubr.f32.gmra.mrb[0].mxu0 %v3462
        %v3530 = vpop.f32.mrb[0].mxu0
        %v3531 = vadd.f32 0.0, %v3530
        %v3532 = vpop.f32.mrb[0].mxu0
        %3533 = vdwg.mxu0
        %v3534 = vadd.f32 %v3456, %v3531
        %v3535 = vld [vmem:[%s4 + $0x60] sm:$0xff]
        %v3536 = vld [vmem:[%s4 + $0x68] sm:$0xff]
        %v3537 = vld [vmem:[%s4 + $0x70] sm:$0xff]
        %v3538 = vld [vmem:[%s4 + $0x78] sm:$0xff]
        %v3539 = vrot.slane %v3299, 3
        %v3540 = vsel %vm473, %v3539, 0
        %3542 = vmatprep.subr.mxu0 0.0
        %3543 = vmatpush1.msra.mxu0 %v3535
        %3544 = vmatprep.subr.mxu0 0.0
        %3545 = vmatpush1.msra.mxu0 %v3536
        %3546 = vmatprep.subr.mxu0 0.0
        %3547 = vmatpush1.msra.mxu0 %v3537
        %3548 = vmatprep.subr.mxu0 0.0
        %3549 = vmatpush1.msra.mxu0 %v3538
        %3550 = vmatprep.subr.mxu0 0.0
        %3551 = vmatpush1.msra.mxu0 0.0
        %3552 = vmatprep.subr.mxu0 0.0
        %3553 = vmatpush1.msra.mxu0 0.0
        %3554 = vmatprep.subr.mxu0 0.0
        %3555 = vmatpush1.msra.mxu0 0.0
        %3556 = vmatprep.subr.mxu0 0.0
        %3557 = vmatpush1.msra.mxu0 0.0
        %3558 = vmatprep.subr.mxu0 0.0
        %3559 = vmatpush1.msra.mxu0 0.0
        %3560 = vmatprep.subr.mxu0 0.0
        %3561 = vmatpush1.msra.mxu0 0.0
        %3562 = vmatprep.subr.mxu0 0.0
        %3563 = vmatpush1.msra.mxu0 0.0
        %3564 = vmatprep.subr.mxu0 0.0
        %3565 = vmatpush1.msra.mxu0 0.0
        %3566 = vmatprep.subr.mxu0 0.0
        %3567 = vmatpush1.msra.mxu0 0.0
        %3568 = vmatprep.subr.mxu0 0.0
        %3569 = vmatpush1.msra.mxu0 0.0
        %3570 = vmatprep.subr.mxu0 0.0
        %3571 = vmatpush1.msra.mxu0 0.0
        %3572 = vmatprep.subr.mxu0 0.0
        %3573 = vmatpush1.msra.mxu0 0.0
        %3574 = vmatprep.subr.mxu0 0.0
        %3575 = vmatpush1.msra.mxu0 0.0
        %3576 = vmatprep.subr.mxu0 0.0
        %3577 = vmatpush1.msra.mxu0 0.0
        %3578 = vmatprep.subr.mxu0 0.0
        %3579 = vmatpush1.msra.mxu0 0.0
        %3580 = vmatprep.subr.mxu0 0.0
        %3581 = vmatpush1.msra.mxu0 0.0
        %3582 = vmatprep.subr.mxu0 0.0
        %3583 = vmatpush1.msra.mxu0 0.0
        %3584 = vmatprep.subr.mxu0 0.0
        %3585 = vmatpush1.msra.mxu0 0.0
        %3586 = vmatprep.subr.mxu0 0.0
        %3587 = vmatpush1.msra.mxu0 0.0
        %3588 = vmatprep.subr.mxu0 0.0
        %3589 = vmatpush1.msra.mxu0 0.0
        %3590 = vmatprep.subr.mxu0 0.0
        %3591 = vmatpush1.msra.mxu0 0.0
        %3592 = vmatprep.subr.mxu0 0.0
        %3593 = vmatpush1.msra.mxu0 0.0
        %3594 = vmatprep.subr.mxu0 0.0
        %3595 = vmatpush1.msra.mxu0 0.0
        %3596 = vmatprep.subr.mxu0 0.0
        %3597 = vmatpush1.msra.mxu0 0.0
        %3598 = vmatprep.subr.mxu0 0.0
        %3599 = vmatpush1.msra.mxu0 0.0
        %3600 = vmatprep.subr.mxu0 0.0
        %3601 = vmatpush1.msra.mxu0 0.0
        %3602 = vmatprep.subr.mxu0 0.0
        %3603 = vmatpush1.msra.mxu0 0.0
        %3604 = vmatprep.subr.mxu0 0.0
        %3605 = vmatpush1.msra.mxu0 0.0
        %3606 = vmatprep.mubr.f32.mxu0 0.0
        %3607 = vmatmul.mubr.f32.gmra.mrb[0].mxu0 %v3540
        %v3608 = vpop.f32.mrb[0].mxu0
        %v3609 = vadd.f32 0.0, %v3608
        %v3610 = vpop.f32.mrb[0].mxu0
        %3611 = vdwg.mxu0
        %v3612 = vadd.f32 %v3534, %v3609
        %v3613 = vld [vmem:[%s4 + $0x80] sm:$0xff]
        %v3614 = vld [vmem:[%s4 + $0x88] sm:$0xff]
        %v3615 = vld [vmem:[%s4 + $0x90] sm:$0xff]
        %v3616 = vld [vmem:[%s4 + $0x98] sm:$0xff]
        %v3617 = vrot.slane %v3299, 4
        %v3618 = vsel %vm473, %v3617, 0
        %3620 = vmatprep.subr.mxu0 0.0
        %3621 = vmatpush1.msra.mxu0 %v3613
        %3622 = vmatprep.subr.mxu0 0.0
        %3623 = vmatpush1.msra.mxu0 %v3614
        %3624 = vmatprep.subr.mxu0 0.0
        %3625 = vmatpush1.msra.mxu0 %v3615
        %3626 = vmatprep.subr.mxu0 0.0
        %3627 = vmatpush1.msra.mxu0 %v3616
        %3628 = vmatprep.subr.mxu0 0.0
        %3629 = vmatpush1.msra.mxu0 0.0
        %3630 = vmatprep.subr.mxu0 0.0
        %3631 = vmatpush1.msra.mxu0 0.0
        %3632 = vmatprep.subr.mxu0 0.0
        %3633 = vmatpush1.msra.mxu0 0.0
        %3634 = vmatprep.subr.mxu0 0.0
        %3635 = vmatpush1.msra.mxu0 0.0
        %3636 = vmatprep.subr.mxu0 0.0
        %3637 = vmatpush1.msra.mxu0 0.0
        %3638 = vmatprep.subr.mxu0 0.0
        %3639 = vmatpush1.msra.mxu0 0.0
        %3640 = vmatprep.subr.mxu0 0.0
        %3641 = vmatpush1.msra.mxu0 0.0
        %3642 = vmatprep.subr.mxu0 0.0
        %3643 = vmatpush1.msra.mxu0 0.0
        %3644 = vmatprep.subr.mxu0 0.0
        %3645 = vmatpush1.msra.mxu0 0.0
        %3646 = vmatprep.subr.mxu0 0.0
        %3647 = vmatpush1.msra.mxu0 0.0
        %3648 = vmatprep.subr.mxu0 0.0
        %3649 = vmatpush1.msra.mxu0 0.0
        %3650 = vmatprep.subr.mxu0 0.0
        %3651 = vmatpush1.msra.mxu0 0.0
        %3652 = vmatprep.subr.mxu0 0.0
        %3653 = vmatpush1.msra.mxu0 0.0
        %3654 = vmatprep.subr.mxu0 0.0
        %3655 = vmatpush1.msra.mxu0 0.0
        %3656 = vmatprep.subr.mxu0 0.0
        %3657 = vmatpush1.msra.mxu0 0.0
        %3658 = vmatprep.subr.mxu0 0.0
        %3659 = vmatpush1.msra.mxu0 0.0
        %3660 = vmatprep.subr.mxu0 0.0
        %3661 = vmatpush1.msra.mxu0 0.0
        %3662 = vmatprep.subr.mxu0 0.0
        %3663 = vmatpush1.msra.mxu0 0.0
        %3664 = vmatprep.subr.mxu0 0.0
        %3665 = vmatpush1.msra.mxu0 0.0
        %3666 = vmatprep.subr.mxu0 0.0
        %3667 = vmatpush1.msra.mxu0 0.0
        %3668 = vmatprep.subr.mxu0 0.0
        %3669 = vmatpush1.msra.mxu0 0.0
        %3670 = vmatprep.subr.mxu0 0.0
        %3671 = vmatpush1.msra.mxu0 0.0
        %3672 = vmatprep.subr.mxu0 0.0
        %3673 = vmatpush1.msra.mxu0 0.0
        %3674 = vmatprep.subr.mxu0 0.0
        %3675 = vmatpush1.msra.mxu0 0.0
        %3676 = vmatprep.subr.mxu0 0.0
        %3677 = vmatpush1.msra.mxu0 0.0
        %3678 = vmatprep.subr.mxu0 0.0
        %3679 = vmatpush1.msra.mxu0 0.0
        %3680 = vmatprep.subr.mxu0 0.0
        %3681 = vmatpush1.msra.mxu0 0.0
        %3682 = vmatprep.subr.mxu0 0.0
        %3683 = vmatpush1.msra.mxu0 0.0
        %3684 = vmatprep.mubr.f32.mxu0 0.0
        %3685 = vmatmul.mubr.f32.gmra.mrb[0].mxu0 %v3618
        %v3686 = vpop.f32.mrb[0].mxu0
        %v3687 = vadd.f32 0.0, %v3686
        %v3688 = vpop.f32.mrb[0].mxu0
        %3689 = vdwg.mxu0
        %v3690 = vadd.f32 %v3612, %v3687
        %v3691 = vld [vmem:[%s238 + $0x1] sm:$0x1]
        %v3692 = vmul.f32 %v3690, %v3691
        %v3693 = vld [vmem:[%s238] sm:$0x1]
        %v3694 = vadd.f32 %v3692, %v3693
        %vm3695 = vcmask 57344
        %3696 = vst.msk [vmem:[%s229] sm:$0x1] %vm3695, %v3694
        %s3697 = sand.u32 %s142, 1
        %s3698 = scalar_lea.sflag [#allocation3], %s3697
        %s3699 = sand.u32 %s142, 1
        %s3700 = scalar_lea.vmem [#allocation2], %s3699
        // Predicated region
        $region41: #{_forward_impl.1} parent=39 // pred_check
          %p3701 = pneg %p152
        $region42: #{_forward_impl.1} parent=39 // pred_check_branch
          %3703 = sbr.rel (%p3701) target = $region44
        $region43: #{_forward_impl.1} parent=39 // pred_region
          %s3705 = ssub.s32 16, 16
          %3706 = vsyncadd %s3698, %s3705
          %s3707 = smul.addr %s19, 16
          %s3708 = scalar_lea.hbm %s5, %s3707
          %s3710 = sshll.u32 %s3700, 4
          %s3711 = int_to_ptr.vmem [resolvable:$true] %s3710
          %3713 = dma.vmem_to_hbm [thread:$0]  %s3711, 16, %s3708, %s3698
        $region44: #{_forward_impl.1} parent=39 // pred_fallthru
          _
      $region40: #{_forward_impl.1} parent=5 // pred_fallthru
        _
      %p3714 = scmp.le.s32.totalorder 2, %s14
      // Predicated region
      $region45: #{_forward_impl.1} parent=5 // pred_check
        %p3715 = pneg %p3714
      $region46: #{_forward_impl.1} parent=5 // pred_check_branch
        %3717 = sbr.rel (%p3715) target = $region48
      $region47: #{_forward_impl.1} parent=5 // pred_region
        %s3718 = ssub.s32 %s14, 2
        // Predicated region
        $region49: #{_forward_impl.1} parent=47 // pred_check
          %p3719 = pneg %p158
        $region50: #{_forward_impl.1} parent=47 // pred_check_branch
          %3721 = sbr.rel (%p3719) target = $region52
        $region51: #{_forward_impl.1} parent=47 // pred_region
          %s3722 = sand.u32 %s143, 1
          %s3723 = scalar_lea.sflag [#allocation3], %s3722
          %s3724 = sand.u32 %s143, 1
          %s3725 = scalar_lea.vmem [#allocation2], %s3724
          %3726 = dma.done %s3723, 16
        $region52: #{_forward_impl.1} parent=47 // pred_fallthru
          _
      $region48: #{_forward_impl.1} parent=5 // pred_fallthru
        _
    $region6: #{_forward_impl.1} parent=1 // loop_footer
      %s18 = sadd.s32 1, %s14
    $region7: #{_forward_impl.1} parent=1 // loop_footer_branch
      %13 = sbr.rel target = $region3
    $region8: #{_forward_impl.1} parent=1 // loop_exit
      _
    %3727 = vsyncpa [#allocation3], 1
    %s3728 = scalar_lea.sflag [#allocation3], 1
    %3729 = vsyncpa %s3728, 1

</llo_original>
